<compile_context>
chip_gen: v7x
topology: tpu7x:2x2x1
jax: 0.10.0
libtpu: 0.0.40
codegen_flags: <defaults>
</compile_context>

<pallas_src>
import math

import jax
import jax.numpy as jnp
from jax import lax
from jax.experimental import pallas as pl
from jax.experimental.pallas import tpu as pltpu

# ----- fixed module hyper-parameters (deterministic init, matches __init__) -----
DT = 10.0                         # integration step (ms) -> time_steps = 50
N_CLASSES = 4
BATCH = 2
TIME_STEPS = int(500 / DT)        # 50
T_STIMULUS = int(500 / DT)        # 50  (== TIME_STEPS, so stimulus is always on)

A_P = 270.0
B_P = 108.0
D_P = 0.154
GAMMA = 0.641
TAU_S = 100.0
J_DIAG = 0.2609
J_OFF = -0.0497
J_EXT = 0.0156
I_0 = 0.3255
NOISE_AMPA = 0.02
TAU_AMPA = 2.0
THRESHOLD = 0.5

# pre-folded scalar constants (computed once in double precision)
NOISE_DECAY = math.exp(-DT / TAU_AMPA)
NOISE_SCALE = NOISE_AMPA * math.sqrt((1.0 - math.exp(-2.0 * DT / TAU_AMPA)) / 2.0)
DT_OVER_TAU_S = DT / TAU_S
GAMMA_DT = GAMMA * DT / 1000.0
J_SELF = J_DIAG - J_OFF           # coefficient of s_j in x_j = (s @ J)_j
J_SUM = J_OFF                     # coefficient of sum_k s_k


def _make_j_matrix(n_classes):
    J = jnp.full((n_classes, n_classes), J_OFF, dtype=jnp.float32)
    J = J.at[jnp.arange(n_classes), jnp.arange(n_classes)].set(J_DIAG)
    return J


def wong_wang_kernel(inp_ref, noise0_ref, noise_ref, out_ref):
    """Integrate the Wong-Wang dynamics and emit per-class decision times.

    inp_ref:    (B, C)      external stimulus (2-D input branch of the module)
    noise0_ref: (B, C)      standard-normal draw for the initial AMPA noise
    noise_ref:  (T, B, C)   standard-normal draws for each time step
    out_ref:    (B, C)      decision_times * dt / 1000 (seconds)
    """
    B, C = inp_ref.shape
    T = noise_ref.shape[0]

    # hoisted: t < t_stimulus always holds for this module configuration
    I_base = jnp.float32(I_0) + jnp.float32(J_EXT) * inp_ref[...]
    s0 = jnp.full((B, C), 0.1, dtype=jnp.float32)
    i_noise0 = noise0_ref[...] * jnp.float32(NOISE_AMPA)

    j_self = jnp.float32(J_SELF)
    j_sum = jnp.float32(J_SUM)
    dt_tau_s = jnp.float32(DT_OVER_TAU_S)
    gamma_dt = jnp.float32(GAMMA_DT)
    noise_decay = jnp.float32(NOISE_DECAY)
    noise_scale = jnp.float32(NOISE_SCALE)
    thr = jnp.float32(THRESHOLD)

    def body(t, carry):
        s, i_noise, found, dec_t = carry
        # x = s @ J + I_0 + I + I_noise, with J = J_OFF*ones + (J_DIAG-J_OFF)*I
        # (closed-form decomposition of the module's deterministic J init).
        row_sum = jnp.sum(s, axis=-1, keepdims=True)
        x = s * j_self + row_sum * j_sum + I_base + i_noise
        ax = jnp.float32(A_P) * x - jnp.float32(B_P)
        denom = 1.0 - jnp.exp(-jnp.float32(D_P) * ax) + jnp.float32(1e-6)
        H = jnp.maximum(ax * pl.reciprocal(denom, approx=False), 0.0)
        # Euler step with DT folded in: s += dt * (-(s/tau_s) + (1-s)*H*gamma/1000)
        s = s - s * dt_tau_s + (1.0 - s) * H * gamma_dt
        # OU AMPA-noise update (off the s-critical-path)
        i_noise = i_noise * noise_decay + noise_scale * noise_ref[t]
        # online "first threshold crossing": count steps until found flips to 1
        found = jnp.maximum(found, (s > thr).astype(jnp.float32))
        dec_t = dec_t + (1.0 - found)
        return s, i_noise, found, dec_t

    init = (s0,
            i_noise0,
            jnp.zeros((B, C), jnp.float32),
            jnp.zeros((B, C), jnp.float32))
    # T=50 is a compile-time constant: fully unroll for LLO scheduling visibility.
    _, _, found, dec_t = lax.fori_loop(0, T, body, init, unroll=True)

    # rows that never crossed get decision time = time_steps - 1
    dec_t = jnp.where(found > 0.0, dec_t, jnp.float32(T - 1))
    out_ref[...] = dec_t * jnp.float32(DT / 1000.0)


def wong_wang_decision(inp, noise0, noise_steps):
    vmem = pl.BlockSpec(memory_space=pltpu.MemorySpace.VMEM)
    return pl.pallas_call(
        wong_wang_kernel,
        out_shape=jax.ShapeDtypeStruct((inp.shape[0], inp.shape[1]), jnp.float32),
        in_specs=[vmem, vmem, vmem],
        out_specs=vmem,
    )(inp, noise0, noise_steps)


def wong_wang_reference(inp, j_matrix, noise0, noise_steps):
    """Pure-JAX reference mirroring the PyTorch forward (same pre-drawn noise)."""
    B, C = inp.shape
    T = noise_steps.shape[0]
    s = jnp.full((B, C), 0.1, jnp.float32)
    i_noise = noise0 * NOISE_AMPA
    I_stim = J_EXT * inp
    noise_decay = jnp.exp(jnp.float32(-DT / TAU_AMPA))
    noise_scale = NOISE_AMPA * jnp.sqrt((1.0 - jnp.exp(jnp.float32(-2.0 * DT / TAU_AMPA))) / 2.0)
    traj = []
    for t in range(T):
        x = s @ j_matrix + I_0 + I_stim + i_noise
        ax = A_P * x - B_P
        H = jnp.maximum(ax / (1.0 - jnp.exp(-D_P * ax) + 1e-6), 0.0)
        dsdt = -(s / TAU_S) + (1.0 - s) * H * GAMMA / 1000.0
        i_noise = i_noise * noise_decay + noise_scale * noise_steps[t]
        s = s + dsdt * DT
        traj.append(s)
    traj = jnp.stack(traj, axis=1)                       # (B, T, C)
    mask = (traj - THRESHOLD) > 0
    dec = jnp.argmax(mask.astype(jnp.float32), axis=1).astype(jnp.float32)
    dec = jnp.where(mask.sum(axis=1) == 0, jnp.float32(T - 1), dec)
    return dec * DT / 1000.0


if __name__ == "__main__":
    key = jax.random.PRNGKey(0)
    k_inp, k_n0, k_ns = jax.random.split(key, 3)

    # stimulus input: (batch, n_classes) — the 2-D input branch of forward()
    inp = jax.random.uniform(k_inp, (BATCH, N_CLASSES), dtype=jnp.float32)
    j_matrix = _make_j_matrix(N_CLASSES)
    noise0 = jax.random.normal(k_n0, (BATCH, N_CLASSES), dtype=jnp.float32)
    noise_steps = jax.random.normal(k_ns, (TIME_STEPS, BATCH, N_CLASSES), dtype=jnp.float32)

    out = wong_wang_decision(inp, noise0, noise_steps)
    out = jax.block_until_ready(out)

    ref = wong_wang_reference(inp, j_matrix, noise0, noise_steps)
    assert out.shape == (BATCH, N_CLASSES)
    # Decision times are integer multiples of DT/1000. The kernel uses a
    # mathematically-equivalent reassociation of s@J and the Euler update, so a
    # borderline threshold crossing could in principle shift by one DT; allow at
    # most a single-step discrepancy vs the matmul-based reference.
    max_err = float(jnp.max(jnp.abs(out - ref)))
    assert max_err <= DT / 1000.0 + 1e-6, (out, ref, max_err)

    print("KERNEL_OK")
</pallas_src>

<mosaic_0001>
module attributes {stable_mosaic.version = 11 : i64} {
  func.func @wong_wang_kernel(%arg0: memref<2x4xf32, #tpu.memory_space<vmem>>, %arg1: memref<2x4xf32, #tpu.memory_space<vmem>>, %arg2: memref<50x2x4xf32, #tpu.memory_space<vmem>>, %arg3: memref<2x4xf32, #tpu.memory_space<vmem>>) attributes {dimension_semantics = [], scalar_prefetch = 0 : i64, scratch_operands = 0 : i64, tpu.core_type = #tpu.core_type<tc>} {
    %c0 = arith.constant 0 : index
    %c0_0 = arith.constant 0 : index
    %0 = vector.load %arg0[%c0, %c0_0] : memref<2x4xf32, #tpu.memory_space<vmem>>, vector<2x4xf32>
    %cst = arith.constant 1.560000e-02 : f32
    %1 = vector.broadcast %cst : f32 to vector<2x4xf32>
    %2 = arith.mulf %1, %0 : vector<2x4xf32>
    %cst_1 = arith.constant 3.255000e-01 : f32
    %3 = vector.broadcast %cst_1 : f32 to vector<2x4xf32>
    %4 = arith.addf %3, %2 : vector<2x4xf32>
    %cst_2 = arith.constant 1.000000e-01 : f32
    %5 = vector.broadcast %cst_2 : f32 to vector<2x4xf32>
    %c0_3 = arith.constant 0 : index
    %c0_4 = arith.constant 0 : index
    %6 = vector.load %arg1[%c0_3, %c0_4] : memref<2x4xf32, #tpu.memory_space<vmem>>, vector<2x4xf32>
    %cst_5 = arith.constant 2.000000e-02 : f32
    %7 = vector.broadcast %cst_5 : f32 to vector<2x4xf32>
    %8 = arith.mulf %6, %7 : vector<2x4xf32>
    %cst_6 = arith.constant 0.000000e+00 : f32
    %9 = vector.broadcast %cst_6 : f32 to vector<2x4xf32>
    %cst_7 = arith.constant 0.000000e+00 : f32
    %10 = vector.broadcast %cst_7 : f32 to vector<2x4xf32>
    %cst_8 = arith.constant 3.106000e-01 : f32
    %cst_9 = arith.constant -4.970000e-02 : f32
    %cst_10 = arith.constant 1.000000e-01 : f32
    %cst_11 = arith.constant 6.410000e-03 : f32
    %cst_12 = arith.constant 0.006737947 : f32
    %cst_13 = arith.constant 0.0141418148 : f32
    %cst_14 = arith.constant 5.000000e-01 : f32
    %c0_i32 = arith.constant 0 : i32
    %cst_15 = arith.constant dense<0.000000e+00> : vector<2xf32>
    %11 = vector.multi_reduction <add>, %5, %cst_15 [1] : vector<2x4xf32> to vector<2xf32>
    %12 = vector.shape_cast %11 : vector<2xf32> to vector<2x1xf32>
    %13 = vector.broadcast %cst_8 : f32 to vector<2x4xf32>
    %14 = arith.mulf %5, %13 : vector<2x4xf32>
    %15 = vector.broadcast %cst_9 : f32 to vector<2x1xf32>
    %16 = arith.mulf %12, %15 : vector<2x1xf32>
    %17 = vector.broadcast %16 : vector<2x1xf32> to vector<2x4xf32>
    %18 = arith.addf %14, %17 : vector<2x4xf32>
    %19 = arith.addf %18, %4 : vector<2x4xf32>
    %20 = arith.addf %19, %8 : vector<2x4xf32>
    %cst_16 = arith.constant 2.700000e+02 : f32
    %21 = vector.broadcast %cst_16 : f32 to vector<2x4xf32>
    %22 = arith.mulf %21, %20 : vector<2x4xf32>
    %cst_17 = arith.constant 1.080000e+02 : f32
    %23 = vector.broadcast %cst_17 : f32 to vector<2x4xf32>
    %24 = arith.subf %22, %23 : vector<2x4xf32>
    %cst_18 = arith.constant 0.000000e+00 : f32
    %cst_19 = arith.constant 1.540000e-01 : f32
    %25 = arith.subf %cst_18, %cst_19 : f32
    %26 = vector.broadcast %25 : f32 to vector<2x4xf32>
    %27 = arith.mulf %26, %24 : vector<2x4xf32>
    %28 = math.exp %27 : vector<2x4xf32>
    %cst_20 = arith.constant 1.000000e+00 : f32
    %29 = vector.broadcast %cst_20 : f32 to vector<2x4xf32>
    %30 = arith.subf %29, %28 : vector<2x4xf32>
    %cst_21 = arith.constant 9.99999997E-7 : f32
    %31 = vector.broadcast %cst_21 : f32 to vector<2x4xf32>
    %32 = arith.addf %30, %31 : vector<2x4xf32>
    %33 = tpu.reciprocal %32 : vector<2x4xf32> -> vector<2x4xf32>
    %34 = arith.mulf %24, %33 : vector<2x4xf32>
    %cst_22 = arith.constant 0.000000e+00 : f32
    %35 = vector.broadcast %cst_22 : f32 to vector<2x4xf32>
    %36 = arith.maximumf %34, %35 : vector<2x4xf32>
    %37 = vector.broadcast %cst_10 : f32 to vector<2x4xf32>
    %38 = arith.mulf %5, %37 : vector<2x4xf32>
    %39 = arith.subf %5, %38 : vector<2x4xf32>
    %cst_23 = arith.constant 1.000000e+00 : f32
    %40 = vector.broadcast %cst_23 : f32 to vector<2x4xf32>
    %41 = arith.subf %40, %5 : vector<2x4xf32>
    %42 = arith.mulf %41, %36 : vector<2x4xf32>
    %43 = vector.broadcast %cst_11 : f32 to vector<2x4xf32>
    %44 = arith.mulf %42, %43 : vector<2x4xf32>
    %45 = arith.addf %39, %44 : vector<2x4xf32>
    %46 = vector.broadcast %cst_12 : f32 to vector<2x4xf32>
    %47 = arith.mulf %8, %46 : vector<2x4xf32>
    %48 = arith.index_cast %c0_i32 : i32 to index
    %c0_24 = arith.constant 0 : index
    %c0_25 = arith.constant 0 : index
    %49 = vector.load %arg2[%48, %c0_24, %c0_25] : memref<50x2x4xf32, #tpu.memory_space<vmem>>, vector<1x2x4xf32>
    %50 = vector.shape_cast %49 : vector<1x2x4xf32> to vector<2x4xf32>
    %51 = vector.broadcast %cst_13 : f32 to vector<2x4xf32>
    %52 = arith.mulf %51, %50 : vector<2x4xf32>
    %53 = arith.addf %47, %52 : vector<2x4xf32>
    %54 = vector.broadcast %cst_14 : f32 to vector<2x4xf32>
    %55 = arith.cmpf ogt, %45, %54 : vector<2x4xf32>
    %56 = arith.extui %55 : vector<2x4xi1> to vector<2x4xi32>
    %57 = arith.sitofp %56 : vector<2x4xi32> to vector<2x4xf32>
    %58 = arith.maximumf %9, %57 : vector<2x4xf32>
    %cst_26 = arith.constant 1.000000e+00 : f32
    %59 = vector.broadcast %cst_26 : f32 to vector<2x4xf32>
    %60 = arith.subf %59, %58 : vector<2x4xf32>
    %61 = arith.addf %10, %60 : vector<2x4xf32>
    %c1_i32 = arith.constant 1 : i32
    %cst_27 = arith.constant dense<0.000000e+00> : vector<2xf32>
    %62 = vector.multi_reduction <add>, %45, %cst_27 [1] : vector<2x4xf32> to vector<2xf32>
    %63 = vector.shape_cast %62 : vector<2xf32> to vector<2x1xf32>
    %64 = vector.broadcast %cst_8 : f32 to vector<2x4xf32>
    %65 = arith.mulf %45, %64 : vector<2x4xf32>
    %66 = vector.broadcast %cst_9 : f32 to vector<2x1xf32>
    %67 = arith.mulf %63, %66 : vector<2x1xf32>
    %68 = vector.broadcast %67 : vector<2x1xf32> to vector<2x4xf32>
    %69 = arith.addf %65, %68 : vector<2x4xf32>
    %70 = arith.addf %69, %4 : vector<2x4xf32>
    %71 = arith.addf %70, %53 : vector<2x4xf32>
    %cst_28 = arith.constant 2.700000e+02 : f32
    %72 = vector.broadcast %cst_28 : f32 to vector<2x4xf32>
    %73 = arith.mulf %72, %71 : vector<2x4xf32>
    %cst_29 = arith.constant 1.080000e+02 : f32
    %74 = vector.broadcast %cst_29 : f32 to vector<2x4xf32>
    %75 = arith.subf %73, %74 : vector<2x4xf32>
    %cst_30 = arith.constant 0.000000e+00 : f32
    %cst_31 = arith.constant 1.540000e-01 : f32
    %76 = arith.subf %cst_30, %cst_31 : f32
    %77 = vector.broadcast %76 : f32 to vector<2x4xf32>
    %78 = arith.mulf %77, %75 : vector<2x4xf32>
    %79 = math.exp %78 : vector<2x4xf32>
    %cst_32 = arith.constant 1.000000e+00 : f32
    %80 = vector.broadcast %cst_32 : f32 to vector<2x4xf32>
    %81 = arith.subf %80, %79 : vector<2x4xf32>
    %cst_33 = arith.constant 9.99999997E-7 : f32
    %82 = vector.broadcast %cst_33 : f32 to vector<2x4xf32>
    %83 = arith.addf %81, %82 : vector<2x4xf32>
    %84 = tpu.reciprocal %83 : vector<2x4xf32> -> vector<2x4xf32>
    %85 = arith.mulf %75, %84 : vector<2x4xf32>
    %cst_34 = arith.constant 0.000000e+00 : f32
    %86 = vector.broadcast %cst_34 : f32 to vector<2x4xf32>
    %87 = arith.maximumf %85, %86 : vector<2x4xf32>
    %88 = vector.broadcast %cst_10 : f32 to vector<2x4xf32>
    %89 = arith.mulf %45, %88 : vector<2x4xf32>
    %90 = arith.subf %45, %89 : vector<2x4xf32>
    %cst_35 = arith.constant 1.000000e+00 : f32
    %91 = vector.broadcast %cst_35 : f32 to vector<2x4xf32>
    %92 = arith.subf %91, %45 : vector<2x4xf32>
    %93 = arith.mulf %92, %87 : vector<2x4xf32>
    %94 = vector.broadcast %cst_11 : f32 to vector<2x4xf32>
    %95 = arith.mulf %93, %94 : vector<2x4xf32>
    %96 = arith.addf %90, %95 : vector<2x4xf32>
    %97 = vector.broadcast %cst_12 : f32 to vector<2x4xf32>
    %98 = arith.mulf %53, %97 : vector<2x4xf32>
    %99 = arith.index_cast %c1_i32 : i32 to index
    %c0_36 = arith.constant 0 : index
    %c0_37 = arith.constant 0 : index
    %100 = vector.load %arg2[%99, %c0_36, %c0_37] : memref<50x2x4xf32, #tpu.memory_space<vmem>>, vector<1x2x4xf32>
    %101 = vector.shape_cast %100 : vector<1x2x4xf32> to vector<2x4xf32>
    %102 = vector.broadcast %cst_13 : f32 to vector<2x4xf32>
    %103 = arith.mulf %102, %101 : vector<2x4xf32>
    %104 = arith.addf %98, %103 : vector<2x4xf32>
    %105 = vector.broadcast %cst_14 : f32 to vector<2x4xf32>
    %106 = arith.cmpf ogt, %96, %105 : vector<2x4xf32>
    %107 = arith.extui %106 : vector<2x4xi1> to vector<2x4xi32>
    %108 = arith.sitofp %107 : vector<2x4xi32> to vector<2x4xf32>
    %109 = arith.maximumf %58, %108 : vector<2x4xf32>
    %cst_38 = arith.constant 1.000000e+00 : f32
    %110 = vector.broadcast %cst_38 : f32 to vector<2x4xf32>
    %111 = arith.subf %110, %109 : vector<2x4xf32>
    %112 = arith.addf %61, %111 : vector<2x4xf32>
    %c2_i32 = arith.constant 2 : i32
    %cst_39 = arith.constant dense<0.000000e+00> : vector<2xf32>
    %113 = vector.multi_reduction <add>, %96, %cst_39 [1] : vector<2x4xf32> to vector<2xf32>
    %114 = vector.shape_cast %113 : vector<2xf32> to vector<2x1xf32>
    %115 = vector.broadcast %cst_8 : f32 to vector<2x4xf32>
    %116 = arith.mulf %96, %115 : vector<2x4xf32>
    %117 = vector.broadcast %cst_9 : f32 to vector<2x1xf32>
    %118 = arith.mulf %114, %117 : vector<2x1xf32>
    %119 = vector.broadcast %118 : vector<2x1xf32> to vector<2x4xf32>
    %120 = arith.addf %116, %119 : vector<2x4xf32>
    %121 = arith.addf %120, %4 : vector<2x4xf32>
    %122 = arith.addf %121, %104 : vector<2x4xf32>
    %cst_40 = arith.constant 2.700000e+02 : f32
    %123 = vector.broadcast %cst_40 : f32 to vector<2x4xf32>
    %124 = arith.mulf %123, %122 : vector<2x4xf32>
    %cst_41 = arith.constant 1.080000e+02 : f32
    %125 = vector.broadcast %cst_41 : f32 to vector<2x4xf32>
    %126 = arith.subf %124, %125 : vector<2x4xf32>
    %cst_42 = arith.constant 0.000000e+00 : f32
    %cst_43 = arith.constant 1.540000e-01 : f32
    %127 = arith.subf %cst_42, %cst_43 : f32
    %128 = vector.broadcast %127 : f32 to vector<2x4xf32>
    %129 = arith.mulf %128, %126 : vector<2x4xf32>
    %130 = math.exp %129 : vector<2x4xf32>
    %cst_44 = arith.constant 1.000000e+00 : f32
    %131 = vector.broadcast %cst_44 : f32 to vector<2x4xf32>
    %132 = arith.subf %131, %130 : vector<2x4xf32>
    %cst_45 = arith.constant 9.99999997E-7 : f32
    %133 = vector.broadcast %cst_45 : f32 to vector<2x4xf32>
    %134 = arith.addf %132, %133 : vector<2x4xf32>
    %135 = tpu.reciprocal %134 : vector<2x4xf32> -> vector<2x4xf32>
    %136 = arith.mulf %126, %135 : vector<2x4xf32>
    %cst_46 = arith.constant 0.000000e+00 : f32
    %137 = vector.broadcast %cst_46 : f32 to vector<2x4xf32>
    %138 = arith.maximumf %136, %137 : vector<2x4xf32>
    %139 = vector.broadcast %cst_10 : f32 to vector<2x4xf32>
    %140 = arith.mulf %96, %139 : vector<2x4xf32>
    %141 = arith.subf %96, %140 : vector<2x4xf32>
    %cst_47 = arith.constant 1.000000e+00 : f32
    %142 = vector.broadcast %cst_47 : f32 to vector<2x4xf32>
    %143 = arith.subf %142, %96 : vector<2x4xf32>
    %144 = arith.mulf %143, %138 : vector<2x4xf32>
    %145 = vector.broadcast %cst_11 : f32 to vector<2x4xf32>
    %146 = arith.mulf %144, %145 : vector<2x4xf32>
    %147 = arith.addf %141, %146 : vector<2x4xf32>
    %148 = vector.broadcast %cst_12 : f32 to vector<2x4xf32>
    %149 = arith.mulf %104, %148 : vector<2x4xf32>
    %150 = arith.index_cast %c2_i32 : i32 to index
    %c0_48 = arith.constant 0 : index
    %c0_49 = arith.constant 0 : index
    %151 = vector.load %arg2[%150, %c0_48, %c0_49] : memref<50x2x4xf32, #tpu.memory_space<vmem>>, vector<1x2x4xf32>
    %152 = vector.shape_cast %151 : vector<1x2x4xf32> to vector<2x4xf32>
    %153 = vector.broadcast %cst_13 : f32 to vector<2x4xf32>
    %154 = arith.mulf %153, %152 : vector<2x4xf32>
    %155 = arith.addf %149, %154 : vector<2x4xf32>
    %156 = vector.broadcast %cst_14 : f32 to vector<2x4xf32>
    %157 = arith.cmpf ogt, %147, %156 : vector<2x4xf32>
    %158 = arith.extui %157 : vector<2x4xi1> to vector<2x4xi32>
    %159 = arith.sitofp %158 : vector<2x4xi32> to vector<2x4xf32>
    %160 = arith.maximumf %109, %159 : vector<2x4xf32>
    %cst_50 = arith.constant 1.000000e+00 : f32
    %161 = vector.broadcast %cst_50 : f32 to vector<2x4xf32>
    %162 = arith.subf %161, %160 : vector<2x4xf32>
    %163 = arith.addf %112, %162 : vector<2x4xf32>
    %c3_i32 = arith.constant 3 : i32
    %cst_51 = arith.constant dense<0.000000e+00> : vector<2xf32>
    %164 = vector.multi_reduction <add>, %147, %cst_51 [1] : vector<2x4xf32> to vector<2xf32>
    %165 = vector.shape_cast %164 : vector<2xf32> to vector<2x1xf32>
    %166 = vector.broadcast %cst_8 : f32 to vector<2x4xf32>
    %167 = arith.mulf %147, %166 : vector<2x4xf32>
    %168 = vector.broadcast %cst_9 : f32 to vector<2x1xf32>
    %169 = arith.mulf %165, %168 : vector<2x1xf32>
    %170 = vector.broadcast %169 : vector<2x1xf32> to vector<2x4xf32>
    %171 = arith.addf %167, %170 : vector<2x4xf32>
    %172 = arith.addf %171, %4 : vector<2x4xf32>
    %173 = arith.addf %172, %155 : vector<2x4xf32>
    %cst_52 = arith.constant 2.700000e+02 : f32
    %174 = vector.broadcast %cst_52 : f32 to vector<2x4xf32>
    %175 = arith.mulf %174, %173 : vector<2x4xf32>
    %cst_53 = arith.constant 1.080000e+02 : f32
    %176 = vector.broadcast %cst_53 : f32 to vector<2x4xf32>
    %177 = arith.subf %175, %176 : vector<2x4xf32>
    %cst_54 = arith.constant 0.000000e+00 : f32
    %cst_55 = arith.constant 1.540000e-01 : f32
    %178 = arith.subf %cst_54, %cst_55 : f32
    %179 = vector.broadcast %178 : f32 to vector<2x4xf32>
    %180 = arith.mulf %179, %177 : vector<2x4xf32>
    %181 = math.exp %180 : vector<2x4xf32>
    %cst_56 = arith.constant 1.000000e+00 : f32
    %182 = vector.broadcast %cst_56 : f32 to vector<2x4xf32>
    %183 = arith.subf %182, %181 : vector<2x4xf32>
    %cst_57 = arith.constant 9.99999997E-7 : f32
    %184 = vector.broadcast %cst_57 : f32 to vector<2x4xf32>
    %185 = arith.addf %183, %184 : vector<2x4xf32>
    %186 = tpu.reciprocal %185 : vector<2x4xf32> -> vector<2x4xf32>
    %187 = arith.mulf %177, %186 : vector<2x4xf32>
    %cst_58 = arith.constant 0.000000e+00 : f32
    %188 = vector.broadcast %cst_58 : f32 to vector<2x4xf32>
    %189 = arith.maximumf %187, %188 : vector<2x4xf32>
    %190 = vector.broadcast %cst_10 : f32 to vector<2x4xf32>
    %191 = arith.mulf %147, %190 : vector<2x4xf32>
    %192 = arith.subf %147, %191 : vector<2x4xf32>
    %cst_59 = arith.constant 1.000000e+00 : f32
    %193 = vector.broadcast %cst_59 : f32 to vector<2x4xf32>
    %194 = arith.subf %193, %147 : vector<2x4xf32>
    %195 = arith.mulf %194, %189 : vector<2x4xf32>
    %196 = vector.broadcast %cst_11 : f32 to vector<2x4xf32>
    %197 = arith.mulf %195, %196 : vector<2x4xf32>
    %198 = arith.addf %192, %197 : vector<2x4xf32>
    %199 = vector.broadcast %cst_12 : f32 to vector<2x4xf32>
    %200 = arith.mulf %155, %199 : vector<2x4xf32>
    %201 = arith.index_cast %c3_i32 : i32 to index
    %c0_60 = arith.constant 0 : index
    %c0_61 = arith.constant 0 : index
    %202 = vector.load %arg2[%201, %c0_60, %c0_61] : memref<50x2x4xf32, #tpu.memory_space<vmem>>, vector<1x2x4xf32>
    %203 = vector.shape_cast %202 : vector<1x2x4xf32> to vector<2x4xf32>
    %204 = vector.broadcast %cst_13 : f32 to vector<2x4xf32>
    %205 = arith.mulf %204, %203 : vector<2x4xf32>
    %206 = arith.addf %200, %205 : vector<2x4xf32>
    %207 = vector.broadcast %cst_14 : f32 to vector<2x4xf32>
    %208 = arith.cmpf ogt, %198, %207 : vector<2x4xf32>
    %209 = arith.extui %208 : vector<2x4xi1> to vector<2x4xi32>
    %210 = arith.sitofp %209 : vector<2x4xi32> to vector<2x4xf32>
    %211 = arith.maximumf %160, %210 : vector<2x4xf32>
    %cst_62 = arith.constant 1.000000e+00 : f32
    %212 = vector.broadcast %cst_62 : f32 to vector<2x4xf32>
    %213 = arith.subf %212, %211 : vector<2x4xf32>
    %214 = arith.addf %163, %213 : vector<2x4xf32>
    %c4_i32 = arith.constant 4 : i32
    %cst_63 = arith.constant dense<0.000000e+00> : vector<2xf32>
    %215 = vector.multi_reduction <add>, %198, %cst_63 [1] : vector<2x4xf32> to vector<2xf32>
    %216 = vector.shape_cast %215 : vector<2xf32> to vector<2x1xf32>
    %217 = vector.broadcast %cst_8 : f32 to vector<2x4xf32>
    %218 = arith.mulf %198, %217 : vector<2x4xf32>
    %219 = vector.broadcast %cst_9 : f32 to vector<2x1xf32>
    %220 = arith.mulf %216, %219 : vector<2x1xf32>
    %221 = vector.broadcast %220 : vector<2x1xf32> to vector<2x4xf32>
    %222 = arith.addf %218, %221 : vector<2x4xf32>
    %223 = arith.addf %222, %4 : vector<2x4xf32>
    %224 = arith.addf %223, %206 : vector<2x4xf32>
    %cst_64 = arith.constant 2.700000e+02 : f32
    %225 = vector.broadcast %cst_64 : f32 to vector<2x4xf32>
    %226 = arith.mulf %225, %224 : vector<2x4xf32>
    %cst_65 = arith.constant 1.080000e+02 : f32
    %227 = vector.broadcast %cst_65 : f32 to vector<2x4xf32>
    %228 = arith.subf %226, %227 : vector<2x4xf32>
    %cst_66 = arith.constant 0.000000e+00 : f32
    %cst_67 = arith.constant 1.540000e-01 : f32
    %229 = arith.subf %cst_66, %cst_67 : f32
    %230 = vector.broadcast %229 : f32 to vector<2x4xf32>
    %231 = arith.mulf %230, %228 : vector<2x4xf32>
    %232 = math.exp %231 : vector<2x4xf32>
    %cst_68 = arith.constant 1.000000e+00 : f32
    %233 = vector.broadcast %cst_68 : f32 to vector<2x4xf32>
    %234 = arith.subf %233, %232 : vector<2x4xf32>
    %cst_69 = arith.constant 9.99999997E-7 : f32
    %235 = vector.broadcast %cst_69 : f32 to vector<2x4xf32>
    %236 = arith.addf %234, %235 : vector<2x4xf32>
    %237 = tpu.reciprocal %236 : vector<2x4xf32> -> vector<2x4xf32>
    %238 = arith.mulf %228, %237 : vector<2x4xf32>
    %cst_70 = arith.constant 0.000000e+00 : f32
    %239 = vector.broadcast %cst_70 : f32 to vector<2x4xf32>
    %240 = arith.maximumf %238, %239 : vector<2x4xf32>
    %241 = vector.broadcast %cst_10 : f32 to vector<2x4xf32>
    %242 = arith.mulf %198, %241 : vector<2x4xf32>
    %243 = arith.subf %198, %242 : vector<2x4xf32>
    %cst_71 = arith.constant 1.000000e+00 : f32
    %244 = vector.broadcast %cst_71 : f32 to vector<2x4xf32>
    %245 = arith.subf %244, %198 : vector<2x4xf32>
    %246 = arith.mulf %245, %240 : vector<2x4xf32>
    %247 = vector.broadcast %cst_11 : f32 to vector<2x4xf32>
    %248 = arith.mulf %246, %247 : vector<2x4xf32>
    %249 = arith.addf %243, %248 : vector<2x4xf32>
    %250 = vector.broadcast %cst_12 : f32 to vector<2x4xf32>
    %251 = arith.mulf %206, %250 : vector<2x4xf32>
    %252 = arith.index_cast %c4_i32 : i32 to index
    %c0_72 = arith.constant 0 : index
    %c0_73 = arith.constant 0 : index
    %253 = vector.load %arg2[%252, %c0_72, %c0_73] : memref<50x2x4xf32, #tpu.memory_space<vmem>>, vector<1x2x4xf32>
    %254 = vector.shape_cast %253 : vector<1x2x4xf32> to vector<2x4xf32>
    %255 = vector.broadcast %cst_13 : f32 to vector<2x4xf32>
    %256 = arith.mulf %255, %254 : vector<2x4xf32>
    %257 = arith.addf %251, %256 : vector<2x4xf32>
    %258 = vector.broadcast %cst_14 : f32 to vector<2x4xf32>
    %259 = arith.cmpf ogt, %249, %258 : vector<2x4xf32>
    %260 = arith.extui %259 : vector<2x4xi1> to vector<2x4xi32>
    %261 = arith.sitofp %260 : vector<2x4xi32> to vector<2x4xf32>
    %262 = arith.maximumf %211, %261 : vector<2x4xf32>
    %cst_74 = arith.constant 1.000000e+00 : f32
    %263 = vector.broadcast %cst_74 : f32 to vector<2x4xf32>
    %264 = arith.subf %263, %262 : vector<2x4xf32>
    %265 = arith.addf %214, %264 : vector<2x4xf32>
    %c5_i32 = arith.constant 5 : i32
    %cst_75 = arith.constant dense<0.000000e+00> : vector<2xf32>
    %266 = vector.multi_reduction <add>, %249, %cst_75 [1] : vector<2x4xf32> to vector<2xf32>
    %267 = vector.shape_cast %266 : vector<2xf32> to vector<2x1xf32>
    %268 = vector.broadcast %cst_8 : f32 to vector<2x4xf32>
    %269 = arith.mulf %249, %268 : vector<2x4xf32>
    %270 = vector.broadcast %cst_9 : f32 to vector<2x1xf32>
    %271 = arith.mulf %267, %270 : vector<2x1xf32>
    %272 = vector.broadcast %271 : vector<2x1xf32> to vector<2x4xf32>
    %273 = arith.addf %269, %272 : vector<2x4xf32>
    %274 = arith.addf %273, %4 : vector<2x4xf32>
    %275 = arith.addf %274, %257 : vector<2x4xf32>
    %cst_76 = arith.constant 2.700000e+02 : f32
    %276 = vector.broadcast %cst_76 : f32 to vector<2x4xf32>
    %277 = arith.mulf %276, %275 : vector<2x4xf32>
    %cst_77 = arith.constant 1.080000e+02 : f32
    %278 = vector.broadcast %cst_77 : f32 to vector<2x4xf32>
    %279 = arith.subf %277, %278 : vector<2x4xf32>
    %cst_78 = arith.constant 0.000000e+00 : f32
    %cst_79 = arith.constant 1.540000e-01 : f32
    %280 = arith.subf %cst_78, %cst_79 : f32
    %281 = vector.broadcast %280 : f32 to vector<2x4xf32>
    %282 = arith.mulf %281, %279 : vector<2x4xf32>
    %283 = math.exp %282 : vector<2x4xf32>
    %cst_80 = arith.constant 1.000000e+00 : f32
    %284 = vector.broadcast %cst_80 : f32 to vector<2x4xf32>
    %285 = arith.subf %284, %283 : vector<2x4xf32>
    %cst_81 = arith.constant 9.99999997E-7 : f32
    %286 = vector.broadcast %cst_81 : f32 to vector<2x4xf32>
    %287 = arith.addf %285, %286 : vector<2x4xf32>
    %288 = tpu.reciprocal %287 : vector<2x4xf32> -> vector<2x4xf32>
    %289 = arith.mulf %279, %288 : vector<2x4xf32>
    %cst_82 = arith.constant 0.000000e+00 : f32
    %290 = vector.broadcast %cst_82 : f32 to vector<2x4xf32>
    %291 = arith.maximumf %289, %290 : vector<2x4xf32>
    %292 = vector.broadcast %cst_10 : f32 to vector<2x4xf32>
    %293 = arith.mulf %249, %292 : vector<2x4xf32>
    %294 = arith.subf %249, %293 : vector<2x4xf32>
    %cst_83 = arith.constant 1.000000e+00 : f32
    %295 = vector.broadcast %cst_83 : f32 to vector<2x4xf32>
    %296 = arith.subf %295, %249 : vector<2x4xf32>
    %297 = arith.mulf %296, %291 : vector<2x4xf32>
    %298 = vector.broadcast %cst_11 : f32 to vector<2x4xf32>
    %299 = arith.mulf %297, %298 : vector<2x4xf32>
    %300 = arith.addf %294, %299 : vector<2x4xf32>
    %301 = vector.broadcast %cst_12 : f32 to vector<2x4xf32>
    %302 = arith.mulf %257, %301 : vector<2x4xf32>
    %303 = arith.index_cast %c5_i32 : i32 to index
    %c0_84 = arith.constant 0 : index
    %c0_85 = arith.constant 0 : index
    %304 = vector.load %arg2[%303, %c0_84, %c0_85] : memref<50x2x4xf32, #tpu.memory_space<vmem>>, vector<1x2x4xf32>
    %305 = vector.shape_cast %304 : vector<1x2x4xf32> to vector<2x4xf32>
    %306 = vector.broadcast %cst_13 : f32 to vector<2x4xf32>
    %307 = arith.mulf %306, %305 : vector<2x4xf32>
    %308 = arith.addf %302, %307 : vector<2x4xf32>
    %309 = vector.broadcast %cst_14 : f32 to vector<2x4xf32>
    %310 = arith.cmpf ogt, %300, %309 : vector<2x4xf32>
    %311 = arith.extui %310 : vector<2x4xi1> to vector<2x4xi32>
    %312 = arith.sitofp %311 : vector<2x4xi32> to vector<2x4xf32>
    %313 = arith.maximumf %262, %312 : vector<2x4xf32>
    %cst_86 = arith.constant 1.000000e+00 : f32
    %314 = vector.broadcast %cst_86 : f32 to vector<2x4xf32>
    %315 = arith.subf %314, %313 : vector<2x4xf32>
    %316 = arith.addf %265, %315 : vector<2x4xf32>
    %c6_i32 = arith.constant 6 : i32
    %cst_87 = arith.constant dense<0.000000e+00> : vector<2xf32>
    %317 = vector.multi_reduction <add>, %300, %cst_87 [1] : vector<2x4xf32> to vector<2xf32>
    %318 = vector.shape_cast %317 : vector<2xf32> to vector<2x1xf32>
    %319 = vector.broadcast %cst_8 : f32 to vector<2x4xf32>
    %320 = arith.mulf %300, %319 : vector<2x4xf32>
    %321 = vector.broadcast %cst_9 : f32 to vector<2x1xf32>
    %322 = arith.mulf %318, %321 : vector<2x1xf32>
    %323 = vector.broadcast %322 : vector<2x1xf32> to vector<2x4xf32>
    %324 = arith.addf %320, %323 : vector<2x4xf32>
    %325 = arith.addf %324, %4 : vector<2x4xf32>
    %326 = arith.addf %325, %308 : vector<2x4xf32>
    %cst_88 = arith.constant 2.700000e+02 : f32
    %327 = vector.broadcast %cst_88 : f32 to vector<2x4xf32>
    %328 = arith.mulf %327, %326 : vector<2x4xf32>
    %cst_89 = arith.constant 1.080000e+02 : f32
    %329 = vector.broadcast %cst_89 : f32 to vector<2x4xf32>
    %330 = arith.subf %328, %329 : vector<2x4xf32>
    %cst_90 = arith.constant 0.000000e+00 : f32
    %cst_91 = arith.constant 1.540000e-01 : f32
    %331 = arith.subf %cst_90, %cst_91 : f32
    %332 = vector.broadcast %331 : f32 to vector<2x4xf32>
    %333 = arith.mulf %332, %330 : vector<2x4xf32>
    %334 = math.exp %333 : vector<2x4xf32>
    %cst_92 = arith.constant 1.000000e+00 : f32
    %335 = vector.broadcast %cst_92 : f32 to vector<2x4xf32>
    %336 = arith.subf %335, %334 : vector<2x4xf32>
    %cst_93 = arith.constant 9.99999997E-7 : f32
    %337 = vector.broadcast %cst_93 : f32 to vector<2x4xf32>
    %338 = arith.addf %336, %337 : vector<2x4xf32>
    %339 = tpu.reciprocal %338 : vector<2x4xf32> -> vector<2x4xf32>
    %340 = arith.mulf %330, %339 : vector<2x4xf32>
    %cst_94 = arith.constant 0.000000e+00 : f32
    %341 = vector.broadcast %cst_94 : f32 to vector<2x4xf32>
    %342 = arith.maximumf %340, %341 : vector<2x4xf32>
    %343 = vector.broadcast %cst_10 : f32 to vector<2x4xf32>
    %344 = arith.mulf %300, %343 : vector<2x4xf32>
    %345 = arith.subf %300, %344 : vector<2x4xf32>
    %cst_95 = arith.constant 1.000000e+00 : f32
    %346 = vector.broadcast %cst_95 : f32 to vector<2x4xf32>
    %347 = arith.subf %346, %300 : vector<2x4xf32>
    %348 = arith.mulf %347, %342 : vector<2x4xf32>
    %349 = vector.broadcast %cst_11 : f32 to vector<2x4xf32>
    %350 = arith.mulf %348, %349 : vector<2x4xf32>
    %351 = arith.addf %345, %350 : vector<2x4xf32>
    %352 = vector.broadcast %cst_12 : f32 to vector<2x4xf32>
    %353 = arith.mulf %308, %352 : vector<2x4xf32>
    %354 = arith.index_cast %c6_i32 : i32 to index
    %c0_96 = arith.constant 0 : index
    %c0_97 = arith.constant 0 : index
    %355 = vector.load %arg2[%354, %c0_96, %c0_97] : memref<50x2x4xf32, #tpu.memory_space<vmem>>, vector<1x2x4xf32>
    %356 = vector.shape_cast %355 : vector<1x2x4xf32> to vector<2x4xf32>
    %357 = vector.broadcast %cst_13 : f32 to vector<2x4xf32>
    %358 = arith.mulf %357, %356 : vector<2x4xf32>
    %359 = arith.addf %353, %358 : vector<2x4xf32>
    %360 = vector.broadcast %cst_14 : f32 to vector<2x4xf32>
    %361 = arith.cmpf ogt, %351, %360 : vector<2x4xf32>
    %362 = arith.extui %361 : vector<2x4xi1> to vector<2x4xi32>
    %363 = arith.sitofp %362 : vector<2x4xi32> to vector<2x4xf32>
    %364 = arith.maximumf %313, %363 : vector<2x4xf32>
    %cst_98 = arith.constant 1.000000e+00 : f32
    %365 = vector.broadcast %cst_98 : f32 to vector<2x4xf32>
    %366 = arith.subf %365, %364 : vector<2x4xf32>
    %367 = arith.addf %316, %366 : vector<2x4xf32>
    %c7_i32 = arith.constant 7 : i32
    %cst_99 = arith.constant dense<0.000000e+00> : vector<2xf32>
    %368 = vector.multi_reduction <add>, %351, %cst_99 [1] : vector<2x4xf32> to vector<2xf32>
    %369 = vector.shape_cast %368 : vector<2xf32> to vector<2x1xf32>
    %370 = vector.broadcast %cst_8 : f32 to vector<2x4xf32>
    %371 = arith.mulf %351, %370 : vector<2x4xf32>
    %372 = vector.broadcast %cst_9 : f32 to vector<2x1xf32>
    %373 = arith.mulf %369, %372 : vector<2x1xf32>
    %374 = vector.broadcast %373 : vector<2x1xf32> to vector<2x4xf32>
    %375 = arith.addf %371, %374 : vector<2x4xf32>
    %376 = arith.addf %375, %4 : vector<2x4xf32>
    %377 = arith.addf %376, %359 : vector<2x4xf32>
    %cst_100 = arith.constant 2.700000e+02 : f32
    %378 = vector.broadcast %cst_100 : f32 to vector<2x4xf32>
    %379 = arith.mulf %378, %377 : vector<2x4xf32>
    %cst_101 = arith.constant 1.080000e+02 : f32
    %380 = vector.broadcast %cst_101 : f32 to vector<2x4xf32>
    %381 = arith.subf %379, %380 : vector<2x4xf32>
    %cst_102 = arith.constant 0.000000e+00 : f32
    %cst_103 = arith.constant 1.540000e-01 : f32
    %382 = arith.subf %cst_102, %cst_103 : f32
    %383 = vector.broadcast %382 : f32 to vector<2x4xf32>
    %384 = arith.mulf %383, %381 : vector<2x4xf32>
    %385 = math.exp %384 : vector<2x4xf32>
    %cst_104 = arith.constant 1.000000e+00 : f32
    %386 = vector.broadcast %cst_104 : f32 to vector<2x4xf32>
    %387 = arith.subf %386, %385 : vector<2x4xf32>
    %cst_105 = arith.constant 9.99999997E-7 : f32
    %388 = vector.broadcast %cst_105 : f32 to vector<2x4xf32>
    %389 = arith.addf %387, %388 : vector<2x4xf32>
    %390 = tpu.reciprocal %389 : vector<2x4xf32> -> vector<2x4xf32>
    %391 = arith.mulf %381, %390 : vector<2x4xf32>
    %cst_106 = arith.constant 0.000000e+00 : f32
    %392 = vector.broadcast %cst_106 : f32 to vector<2x4xf32>
    %393 = arith.maximumf %391, %392 : vector<2x4xf32>
    %394 = vector.broadcast %cst_10 : f32 to vector<2x4xf32>
    %395 = arith.mulf %351, %394 : vector<2x4xf32>
    %396 = arith.subf %351, %395 : vector<2x4xf32>
    %cst_107 = arith.constant 1.000000e+00 : f32
    %397 = vector.broadcast %cst_107 : f32 to vector<2x4xf32>
    %398 = arith.subf %397, %351 : vector<2x4xf32>
    %399 = arith.mulf %398, %393 : vector<2x4xf32>
    %400 = vector.broadcast %cst_11 : f32 to vector<2x4xf32>
    %401 = arith.mulf %399, %400 : vector<2x4xf32>
    %402 = arith.addf %396, %401 : vector<2x4xf32>
    %403 = vector.broadcast %cst_12 : f32 to vector<2x4xf32>
    %404 = arith.mulf %359, %403 : vector<2x4xf32>
    %405 = arith.index_cast %c7_i32 : i32 to index
    %c0_108 = arith.constant 0 : index
    %c0_109 = arith.constant 0 : index
    %406 = vector.load %arg2[%405, %c0_108, %c0_109] : memref<50x2x4xf32, #tpu.memory_space<vmem>>, vector<1x2x4xf32>
    %407 = vector.shape_cast %406 : vector<1x2x4xf32> to vector<2x4xf32>
    %408 = vector.broadcast %cst_13 : f32 to vector<2x4xf32>
    %409 = arith.mulf %408, %407 : vector<2x4xf32>
    %410 = arith.addf %404, %409 : vector<2x4xf32>
    %411 = vector.broadcast %cst_14 : f32 to vector<2x4xf32>
    %412 = arith.cmpf ogt, %402, %411 : vector<2x4xf32>
    %413 = arith.extui %412 : vector<2x4xi1> to vector<2x4xi32>
    %414 = arith.sitofp %413 : vector<2x4xi32> to vector<2x4xf32>
    %415 = arith.maximumf %364, %414 : vector<2x4xf32>
    %cst_110 = arith.constant 1.000000e+00 : f32
    %416 = vector.broadcast %cst_110 : f32 to vector<2x4xf32>
    %417 = arith.subf %416, %415 : vector<2x4xf32>
    %418 = arith.addf %367, %417 : vector<2x4xf32>
    %c8_i32 = arith.constant 8 : i32
    %cst_111 = arith.constant dense<0.000000e+00> : vector<2xf32>
    %419 = vector.multi_reduction <add>, %402, %cst_111 [1] : vector<2x4xf32> to vector<2xf32>
    %420 = vector.shape_cast %419 : vector<2xf32> to vector<2x1xf32>
    %421 = vector.broadcast %cst_8 : f32 to vector<2x4xf32>
    %422 = arith.mulf %402, %421 : vector<2x4xf32>
    %423 = vector.broadcast %cst_9 : f32 to vector<2x1xf32>
    %424 = arith.mulf %420, %423 : vector<2x1xf32>
    %425 = vector.broadcast %424 : vector<2x1xf32> to vector<2x4xf32>
    %426 = arith.addf %422, %425 : vector<2x4xf32>
    %427 = arith.addf %426, %4 : vector<2x4xf32>
    %428 = arith.addf %427, %410 : vector<2x4xf32>
    %cst_112 = arith.constant 2.700000e+02 : f32
    %429 = vector.broadcast %cst_112 : f32 to vector<2x4xf32>
    %430 = arith.mulf %429, %428 : vector<2x4xf32>
    %cst_113 = arith.constant 1.080000e+02 : f32
    %431 = vector.broadcast %cst_113 : f32 to vector<2x4xf32>
    %432 = arith.subf %430, %431 : vector<2x4xf32>
    %cst_114 = arith.constant 0.000000e+00 : f32
    %cst_115 = arith.constant 1.540000e-01 : f32
    %433 = arith.subf %cst_114, %cst_115 : f32
    %434 = vector.broadcast %433 : f32 to vector<2x4xf32>
    %435 = arith.mulf %434, %432 : vector<2x4xf32>
    %436 = math.exp %435 : vector<2x4xf32>
    %cst_116 = arith.constant 1.000000e+00 : f32
    %437 = vector.broadcast %cst_116 : f32 to vector<2x4xf32>
    %438 = arith.subf %437, %436 : vector<2x4xf32>
    %cst_117 = arith.constant 9.99999997E-7 : f32
    %439 = vector.broadcast %cst_117 : f32 to vector<2x4xf32>
    %440 = arith.addf %438, %439 : vector<2x4xf32>
    %441 = tpu.reciprocal %440 : vector<2x4xf32> -> vector<2x4xf32>
    %442 = arith.mulf %432, %441 : vector<2x4xf32>
    %cst_118 = arith.constant 0.000000e+00 : f32
    %443 = vector.broadcast %cst_118 : f32 to vector<2x4xf32>
    %444 = arith.maximumf %442, %443 : vector<2x4xf32>
    %445 = vector.broadcast %cst_10 : f32 to vector<2x4xf32>
    %446 = arith.mulf %402, %445 : vector<2x4xf32>
    %447 = arith.subf %402, %446 : vector<2x4xf32>
    %cst_119 = arith.constant 1.000000e+00 : f32
    %448 = vector.broadcast %cst_119 : f32 to vector<2x4xf32>
    %449 = arith.subf %448, %402 : vector<2x4xf32>
    %450 = arith.mulf %449, %444 : vector<2x4xf32>
    %451 = vector.broadcast %cst_11 : f32 to vector<2x4xf32>
    %452 = arith.mulf %450, %451 : vector<2x4xf32>
    %453 = arith.addf %447, %452 : vector<2x4xf32>
    %454 = vector.broadcast %cst_12 : f32 to vector<2x4xf32>
    %455 = arith.mulf %410, %454 : vector<2x4xf32>
    %456 = arith.index_cast %c8_i32 : i32 to index
    %c0_120 = arith.constant 0 : index
    %c0_121 = arith.constant 0 : index
    %457 = vector.load %arg2[%456, %c0_120, %c0_121] : memref<50x2x4xf32, #tpu.memory_space<vmem>>, vector<1x2x4xf32>
    %458 = vector.shape_cast %457 : vector<1x2x4xf32> to vector<2x4xf32>
    %459 = vector.broadcast %cst_13 : f32 to vector<2x4xf32>
    %460 = arith.mulf %459, %458 : vector<2x4xf32>
    %461 = arith.addf %455, %460 : vector<2x4xf32>
    %462 = vector.broadcast %cst_14 : f32 to vector<2x4xf32>
    %463 = arith.cmpf ogt, %453, %462 : vector<2x4xf32>
    %464 = arith.extui %463 : vector<2x4xi1> to vector<2x4xi32>
    %465 = arith.sitofp %464 : vector<2x4xi32> to vector<2x4xf32>
    %466 = arith.maximumf %415, %465 : vector<2x4xf32>
    %cst_122 = arith.constant 1.000000e+00 : f32
    %467 = vector.broadcast %cst_122 : f32 to vector<2x4xf32>
    %468 = arith.subf %467, %466 : vector<2x4xf32>
    %469 = arith.addf %418, %468 : vector<2x4xf32>
    %c9_i32 = arith.constant 9 : i32
    %cst_123 = arith.constant dense<0.000000e+00> : vector<2xf32>
    %470 = vector.multi_reduction <add>, %453, %cst_123 [1] : vector<2x4xf32> to vector<2xf32>
    %471 = vector.shape_cast %470 : vector<2xf32> to vector<2x1xf32>
    %472 = vector.broadcast %cst_8 : f32 to vector<2x4xf32>
    %473 = arith.mulf %453, %472 : vector<2x4xf32>
    %474 = vector.broadcast %cst_9 : f32 to vector<2x1xf32>
    %475 = arith.mulf %471, %474 : vector<2x1xf32>
    %476 = vector.broadcast %475 : vector<2x1xf32> to vector<2x4xf32>
    %477 = arith.addf %473, %476 : vector<2x4xf32>
    %478 = arith.addf %477, %4 : vector<2x4xf32>
    %479 = arith.addf %478, %461 : vector<2x4xf32>
    %cst_124 = arith.constant 2.700000e+02 : f32
    %480 = vector.broadcast %cst_124 : f32 to vector<2x4xf32>
    %481 = arith.mulf %480, %479 : vector<2x4xf32>
    %cst_125 = arith.constant 1.080000e+02 : f32
    %482 = vector.broadcast %cst_125 : f32 to vector<2x4xf32>
    %483 = arith.subf %481, %482 : vector<2x4xf32>
    %cst_126 = arith.constant 0.000000e+00 : f32
    %cst_127 = arith.constant 1.540000e-01 : f32
    %484 = arith.subf %cst_126, %cst_127 : f32
    %485 = vector.broadcast %484 : f32 to vector<2x4xf32>
    %486 = arith.mulf %485, %483 : vector<2x4xf32>
    %487 = math.exp %486 : vector<2x4xf32>
    %cst_128 = arith.constant 1.000000e+00 : f32
    %488 = vector.broadcast %cst_128 : f32 to vector<2x4xf32>
    %489 = arith.subf %488, %487 : vector<2x4xf32>
    %cst_129 = arith.constant 9.99999997E-7 : f32
    %490 = vector.broadcast %cst_129 : f32 to vector<2x4xf32>
    %491 = arith.addf %489, %490 : vector<2x4xf32>
    %492 = tpu.reciprocal %491 : vector<2x4xf32> -> vector<2x4xf32>
    %493 = arith.mulf %483, %492 : vector<2x4xf32>
    %cst_130 = arith.constant 0.000000e+00 : f32
    %494 = vector.broadcast %cst_130 : f32 to vector<2x4xf32>
    %495 = arith.maximumf %493, %494 : vector<2x4xf32>
    %496 = vector.broadcast %cst_10 : f32 to vector<2x4xf32>
    %497 = arith.mulf %453, %496 : vector<2x4xf32>
    %498 = arith.subf %453, %497 : vector<2x4xf32>
    %cst_131 = arith.constant 1.000000e+00 : f32
    %499 = vector.broadcast %cst_131 : f32 to vector<2x4xf32>
    %500 = arith.subf %499, %453 : vector<2x4xf32>
    %501 = arith.mulf %500, %495 : vector<2x4xf32>
    %502 = vector.broadcast %cst_11 : f32 to vector<2x4xf32>
    %503 = arith.mulf %501, %502 : vector<2x4xf32>
    %504 = arith.addf %498, %503 : vector<2x4xf32>
    %505 = vector.broadcast %cst_12 : f32 to vector<2x4xf32>
    %506 = arith.mulf %461, %505 : vector<2x4xf32>
    %507 = arith.index_cast %c9_i32 : i32 to index
    %c0_132 = arith.constant 0 : index
    %c0_133 = arith.constant 0 : index
    %508 = vector.load %arg2[%507, %c0_132, %c0_133] : memref<50x2x4xf32, #tpu.memory_space<vmem>>, vector<1x2x4xf32>
    %509 = vector.shape_cast %508 : vector<1x2x4xf32> to vector<2x4xf32>
    %510 = vector.broadcast %cst_13 : f32 to vector<2x4xf32>
    %511 = arith.mulf %510, %509 : vector<2x4xf32>
    %512 = arith.addf %506, %511 : vector<2x4xf32>
    %513 = vector.broadcast %cst_14 : f32 to vector<2x4xf32>
    %514 = arith.cmpf ogt, %504, %513 : vector<2x4xf32>
    %515 = arith.extui %514 : vector<2x4xi1> to vector<2x4xi32>
    %516 = arith.sitofp %515 : vector<2x4xi32> to vector<2x4xf32>
    %517 = arith.maximumf %466, %516 : vector<2x4xf32>
    %cst_134 = arith.constant 1.000000e+00 : f32
    %518 = vector.broadcast %cst_134 : f32 to vector<2x4xf32>
    %519 = arith.subf %518, %517 : vector<2x4xf32>
    %520 = arith.addf %469, %519 : vector<2x4xf32>
    %c10_i32 = arith.constant 10 : i32
    %cst_135 = arith.constant dense<0.000000e+00> : vector<2xf32>
    %521 = vector.multi_reduction <add>, %504, %cst_135 [1] : vector<2x4xf32> to vector<2xf32>
    %522 = vector.shape_cast %521 : vector<2xf32> to vector<2x1xf32>
    %523 = vector.broadcast %cst_8 : f32 to vector<2x4xf32>
    %524 = arith.mulf %504, %523 : vector<2x4xf32>
    %525 = vector.broadcast %cst_9 : f32 to vector<2x1xf32>
    %526 = arith.mulf %522, %525 : vector<2x1xf32>
    %527 = vector.broadcast %526 : vector<2x1xf32> to vector<2x4xf32>
    %528 = arith.addf %524, %527 : vector<2x4xf32>
    %529 = arith.addf %528, %4 : vector<2x4xf32>
    %530 = arith.addf %529, %512 : vector<2x4xf32>
    %cst_136 = arith.constant 2.700000e+02 : f32
    %531 = vector.broadcast %cst_136 : f32 to vector<2x4xf32>
    %532 = arith.mulf %531, %530 : vector<2x4xf32>
    %cst_137 = arith.constant 1.080000e+02 : f32
    %533 = vector.broadcast %cst_137 : f32 to vector<2x4xf32>
    %534 = arith.subf %532, %533 : vector<2x4xf32>
    %cst_138 = arith.constant 0.000000e+00 : f32
    %cst_139 = arith.constant 1.540000e-01 : f32
    %535 = arith.subf %cst_138, %cst_139 : f32
    %536 = vector.broadcast %535 : f32 to vector<2x4xf32>
    %537 = arith.mulf %536, %534 : vector<2x4xf32>
    %538 = math.exp %537 : vector<2x4xf32>
    %cst_140 = arith.constant 1.000000e+00 : f32
    %539 = vector.broadcast %cst_140 : f32 to vector<2x4xf32>
    %540 = arith.subf %539, %538 : vector<2x4xf32>
    %cst_141 = arith.constant 9.99999997E-7 : f32
    %541 = vector.broadcast %cst_141 : f32 to vector<2x4xf32>
    %542 = arith.addf %540, %541 : vector<2x4xf32>
    %543 = tpu.reciprocal %542 : vector<2x4xf32> -> vector<2x4xf32>
    %544 = arith.mulf %534, %543 : vector<2x4xf32>
    %cst_142 = arith.constant 0.000000e+00 : f32
    %545 = vector.broadcast %cst_142 : f32 to vector<2x4xf32>
    %546 = arith.maximumf %544, %545 : vector<2x4xf32>
    %547 = vector.broadcast %cst_10 : f32 to vector<2x4xf32>
    %548 = arith.mulf %504, %547 : vector<2x4xf32>
    %549 = arith.subf %504, %548 : vector<2x4xf32>
    %cst_143 = arith.constant 1.000000e+00 : f32
    %550 = vector.broadcast %cst_143 : f32 to vector<2x4xf32>
    %551 = arith.subf %550, %504 : vector<2x4xf32>
    %552 = arith.mulf %551, %546 : vector<2x4xf32>
    %553 = vector.broadcast %cst_11 : f32 to vector<2x4xf32>
    %554 = arith.mulf %552, %553 : vector<2x4xf32>
    %555 = arith.addf %549, %554 : vector<2x4xf32>
    %556 = vector.broadcast %cst_12 : f32 to vector<2x4xf32>
    %557 = arith.mulf %512, %556 : vector<2x4xf32>
    %558 = arith.index_cast %c10_i32 : i32 to index
    %c0_144 = arith.constant 0 : index
    %c0_145 = arith.constant 0 : index
    %559 = vector.load %arg2[%558, %c0_144, %c0_145] : memref<50x2x4xf32, #tpu.memory_space<vmem>>, vector<1x2x4xf32>
    %560 = vector.shape_cast %559 : vector<1x2x4xf32> to vector<2x4xf32>
    %561 = vector.broadcast %cst_13 : f32 to vector<2x4xf32>
    %562 = arith.mulf %561, %560 : vector<2x4xf32>
    %563 = arith.addf %557, %562 : vector<2x4xf32>
    %564 = vector.broadcast %cst_14 : f32 to vector<2x4xf32>
    %565 = arith.cmpf ogt, %555, %564 : vector<2x4xf32>
    %566 = arith.extui %565 : vector<2x4xi1> to vector<2x4xi32>
    %567 = arith.sitofp %566 : vector<2x4xi32> to vector<2x4xf32>
    %568 = arith.maximumf %517, %567 : vector<2x4xf32>
    %cst_146 = arith.constant 1.000000e+00 : f32
    %569 = vector.broadcast %cst_146 : f32 to vector<2x4xf32>
    %570 = arith.subf %569, %568 : vector<2x4xf32>
    %571 = arith.addf %520, %570 : vector<2x4xf32>
    %c11_i32 = arith.constant 11 : i32
    %cst_147 = arith.constant dense<0.000000e+00> : vector<2xf32>
    %572 = vector.multi_reduction <add>, %555, %cst_147 [1] : vector<2x4xf32> to vector<2xf32>
    %573 = vector.shape_cast %572 : vector<2xf32> to vector<2x1xf32>
    %574 = vector.broadcast %cst_8 : f32 to vector<2x4xf32>
    %575 = arith.mulf %555, %574 : vector<2x4xf32>
    %576 = vector.broadcast %cst_9 : f32 to vector<2x1xf32>
    %577 = arith.mulf %573, %576 : vector<2x1xf32>
    %578 = vector.broadcast %577 : vector<2x1xf32> to vector<2x4xf32>
    %579 = arith.addf %575, %578 : vector<2x4xf32>
    %580 = arith.addf %579, %4 : vector<2x4xf32>
    %581 = arith.addf %580, %563 : vector<2x4xf32>
    %cst_148 = arith.constant 2.700000e+02 : f32
    %582 = vector.broadcast %cst_148 : f32 to vector<2x4xf32>
    %583 = arith.mulf %582, %581 : vector<2x4xf32>
    %cst_149 = arith.constant 1.080000e+02 : f32
    %584 = vector.broadcast %cst_149 : f32 to vector<2x4xf32>
    %585 = arith.subf %583, %584 : vector<2x4xf32>
    %cst_150 = arith.constant 0.000000e+00 : f32
    %cst_151 = arith.constant 1.540000e-01 : f32
    %586 = arith.subf %cst_150, %cst_151 : f32
    %587 = vector.broadcast %586 : f32 to vector<2x4xf32>
    %588 = arith.mulf %587, %585 : vector<2x4xf32>
    %589 = math.exp %588 : vector<2x4xf32>
    %cst_152 = arith.constant 1.000000e+00 : f32
    %590 = vector.broadcast %cst_152 : f32 to vector<2x4xf32>
    %591 = arith.subf %590, %589 : vector<2x4xf32>
    %cst_153 = arith.constant 9.99999997E-7 : f32
    %592 = vector.broadcast %cst_153 : f32 to vector<2x4xf32>
    %593 = arith.addf %591, %592 : vector<2x4xf32>
    %594 = tpu.reciprocal %593 : vector<2x4xf32> -> vector<2x4xf32>
    %595 = arith.mulf %585, %594 : vector<2x4xf32>
    %cst_154 = arith.constant 0.000000e+00 : f32
    %596 = vector.broadcast %cst_154 : f32 to vector<2x4xf32>
    %597 = arith.maximumf %595, %596 : vector<2x4xf32>
    %598 = vector.broadcast %cst_10 : f32 to vector<2x4xf32>
    %599 = arith.mulf %555, %598 : vector<2x4xf32>
    %600 = arith.subf %555, %599 : vector<2x4xf32>
    %cst_155 = arith.constant 1.000000e+00 : f32
    %601 = vector.broadcast %cst_155 : f32 to vector<2x4xf32>
    %602 = arith.subf %601, %555 : vector<2x4xf32>
    %603 = arith.mulf %602, %597 : vector<2x4xf32>
    %604 = vector.broadcast %cst_11 : f32 to vector<2x4xf32>
    %605 = arith.mulf %603, %604 : vector<2x4xf32>
    %606 = arith.addf %600, %605 : vector<2x4xf32>
    %607 = vector.broadcast %cst_12 : f32 to vector<2x4xf32>
    %608 = arith.mulf %563, %607 : vector<2x4xf32>
    %609 = arith.index_cast %c11_i32 : i32 to index
    %c0_156 = arith.constant 0 : index
    %c0_157 = arith.constant 0 : index
    %610 = vector.load %arg2[%609, %c0_156, %c0_157] : memref<50x2x4xf32, #tpu.memory_space<vmem>>, vector<1x2x4xf32>
    %611 = vector.shape_cast %610 : vector<1x2x4xf32> to vector<2x4xf32>
    %612 = vector.broadcast %cst_13 : f32 to vector<2x4xf32>
    %613 = arith.mulf %612, %611 : vector<2x4xf32>
    %614 = arith.addf %608, %613 : vector<2x4xf32>
    %615 = vector.broadcast %cst_14 : f32 to vector<2x4xf32>
    %616 = arith.cmpf ogt, %606, %615 : vector<2x4xf32>
    %617 = arith.extui %616 : vector<2x4xi1> to vector<2x4xi32>
    %618 = arith.sitofp %617 : vector<2x4xi32> to vector<2x4xf32>
    %619 = arith.maximumf %568, %618 : vector<2x4xf32>
    %cst_158 = arith.constant 1.000000e+00 : f32
    %620 = vector.broadcast %cst_158 : f32 to vector<2x4xf32>
    %621 = arith.subf %620, %619 : vector<2x4xf32>
    %622 = arith.addf %571, %621 : vector<2x4xf32>
    %c12_i32 = arith.constant 12 : i32
    %cst_159 = arith.constant dense<0.000000e+00> : vector<2xf32>
    %623 = vector.multi_reduction <add>, %606, %cst_159 [1] : vector<2x4xf32> to vector<2xf32>
    %624 = vector.shape_cast %623 : vector<2xf32> to vector<2x1xf32>
    %625 = vector.broadcast %cst_8 : f32 to vector<2x4xf32>
    %626 = arith.mulf %606, %625 : vector<2x4xf32>
    %627 = vector.broadcast %cst_9 : f32 to vector<2x1xf32>
    %628 = arith.mulf %624, %627 : vector<2x1xf32>
    %629 = vector.broadcast %628 : vector<2x1xf32> to vector<2x4xf32>
    %630 = arith.addf %626, %629 : vector<2x4xf32>
    %631 = arith.addf %630, %4 : vector<2x4xf32>
    %632 = arith.addf %631, %614 : vector<2x4xf32>
    %cst_160 = arith.constant 2.700000e+02 : f32
    %633 = vector.broadcast %cst_160 : f32 to vector<2x4xf32>
    %634 = arith.mulf %633, %632 : vector<2x4xf32>
    %cst_161 = arith.constant 1.080000e+02 : f32
    %635 = vector.broadcast %cst_161 : f32 to vector<2x4xf32>
    %636 = arith.subf %634, %635 : vector<2x4xf32>
    %cst_162 = arith.constant 0.000000e+00 : f32
    %cst_163 = arith.constant 1.540000e-01 : f32
    %637 = arith.subf %cst_162, %cst_163 : f32
    %638 = vector.broadcast %637 : f32 to vector<2x4xf32>
    %639 = arith.mulf %638, %636 : vector<2x4xf32>
    %640 = math.exp %639 : vector<2x4xf32>
    %cst_164 = arith.constant 1.000000e+00 : f32
    %641 = vector.broadcast %cst_164 : f32 to vector<2x4xf32>
    %642 = arith.subf %641, %640 : vector<2x4xf32>
    %cst_165 = arith.constant 9.99999997E-7 : f32
    %643 = vector.broadcast %cst_165 : f32 to vector<2x4xf32>
    %644 = arith.addf %642, %643 : vector<2x4xf32>
    %645 = tpu.reciprocal %644 : vector<2x4xf32> -> vector<2x4xf32>
    %646 = arith.mulf %636, %645 : vector<2x4xf32>
    %cst_166 = arith.constant 0.000000e+00 : f32
    %647 = vector.broadcast %cst_166 : f32 to vector<2x4xf32>
    %648 = arith.maximumf %646, %647 : vector<2x4xf32>
    %649 = vector.broadcast %cst_10 : f32 to vector<2x4xf32>
    %650 = arith.mulf %606, %649 : vector<2x4xf32>
    %651 = arith.subf %606, %650 : vector<2x4xf32>
    %cst_167 = arith.constant 1.000000e+00 : f32
    %652 = vector.broadcast %cst_167 : f32 to vector<2x4xf32>
    %653 = arith.subf %652, %606 : vector<2x4xf32>
    %654 = arith.mulf %653, %648 : vector<2x4xf32>
    %655 = vector.broadcast %cst_11 : f32 to vector<2x4xf32>
    %656 = arith.mulf %654, %655 : vector<2x4xf32>
    %657 = arith.addf %651, %656 : vector<2x4xf32>
    %658 = vector.broadcast %cst_12 : f32 to vector<2x4xf32>
    %659 = arith.mulf %614, %658 : vector<2x4xf32>
    %660 = arith.index_cast %c12_i32 : i32 to index
    %c0_168 = arith.constant 0 : index
    %c0_169 = arith.constant 0 : index
    %661 = vector.load %arg2[%660, %c0_168, %c0_169] : memref<50x2x4xf32, #tpu.memory_space<vmem>>, vector<1x2x4xf32>
    %662 = vector.shape_cast %661 : vector<1x2x4xf32> to vector<2x4xf32>
    %663 = vector.broadcast %cst_13 : f32 to vector<2x4xf32>
    %664 = arith.mulf %663, %662 : vector<2x4xf32>
    %665 = arith.addf %659, %664 : vector<2x4xf32>
    %666 = vector.broadcast %cst_14 : f32 to vector<2x4xf32>
    %667 = arith.cmpf ogt, %657, %666 : vector<2x4xf32>
    %668 = arith.extui %667 : vector<2x4xi1> to vector<2x4xi32>
    %669 = arith.sitofp %668 : vector<2x4xi32> to vector<2x4xf32>
    %670 = arith.maximumf %619, %669 : vector<2x4xf32>
    %cst_170 = arith.constant 1.000000e+00 : f32
    %671 = vector.broadcast %cst_170 : f32 to vector<2x4xf32>
    %672 = arith.subf %671, %670 : vector<2x4xf32>
    %673 = arith.addf %622, %672 : vector<2x4xf32>
    %c13_i32 = arith.constant 13 : i32
    %cst_171 = arith.constant dense<0.000000e+00> : vector<2xf32>
    %674 = vector.multi_reduction <add>, %657, %cst_171 [1] : vector<2x4xf32> to vector<2xf32>
    %675 = vector.shape_cast %674 : vector<2xf32> to vector<2x1xf32>
    %676 = vector.broadcast %cst_8 : f32 to vector<2x4xf32>
    %677 = arith.mulf %657, %676 : vector<2x4xf32>
    %678 = vector.broadcast %cst_9 : f32 to vector<2x1xf32>
    %679 = arith.mulf %675, %678 : vector<2x1xf32>
    %680 = vector.broadcast %679 : vector<2x1xf32> to vector<2x4xf32>
    %681 = arith.addf %677, %680 : vector<2x4xf32>
    %682 = arith.addf %681, %4 : vector<2x4xf32>
    %683 = arith.addf %682, %665 : vector<2x4xf32>
    %cst_172 = arith.constant 2.700000e+02 : f32
    %684 = vector.broadcast %cst_172 : f32 to vector<2x4xf32>
    %685 = arith.mulf %684, %683 : vector<2x4xf32>
    %cst_173 = arith.constant 1.080000e+02 : f32
    %686 = vector.broadcast %cst_173 : f32 to vector<2x4xf32>
    %687 = arith.subf %685, %686 : vector<2x4xf32>
    %cst_174 = arith.constant 0.000000e+00 : f32
    %cst_175 = arith.constant 1.540000e-01 : f32
    %688 = arith.subf %cst_174, %cst_175 : f32
    %689 = vector.broadcast %688 : f32 to vector<2x4xf32>
    %690 = arith.mulf %689, %687 : vector<2x4xf32>
    %691 = math.exp %690 : vector<2x4xf32>
    %cst_176 = arith.constant 1.000000e+00 : f32
    %692 = vector.broadcast %cst_176 : f32 to vector<2x4xf32>
    %693 = arith.subf %692, %691 : vector<2x4xf32>
    %cst_177 = arith.constant 9.99999997E-7 : f32
    %694 = vector.broadcast %cst_177 : f32 to vector<2x4xf32>
    %695 = arith.addf %693, %694 : vector<2x4xf32>
    %696 = tpu.reciprocal %695 : vector<2x4xf32> -> vector<2x4xf32>
    %697 = arith.mulf %687, %696 : vector<2x4xf32>
    %cst_178 = arith.constant 0.000000e+00 : f32
    %698 = vector.broadcast %cst_178 : f32 to vector<2x4xf32>
    %699 = arith.maximumf %697, %698 : vector<2x4xf32>
    %700 = vector.broadcast %cst_10 : f32 to vector<2x4xf32>
    %701 = arith.mulf %657, %700 : vector<2x4xf32>
    %702 = arith.subf %657, %701 : vector<2x4xf32>
    %cst_179 = arith.constant 1.000000e+00 : f32
    %703 = vector.broadcast %cst_179 : f32 to vector<2x4xf32>
    %704 = arith.subf %703, %657 : vector<2x4xf32>
    %705 = arith.mulf %704, %699 : vector<2x4xf32>
    %706 = vector.broadcast %cst_11 : f32 to vector<2x4xf32>
    %707 = arith.mulf %705, %706 : vector<2x4xf32>
    %708 = arith.addf %702, %707 : vector<2x4xf32>
    %709 = vector.broadcast %cst_12 : f32 to vector<2x4xf32>
    %710 = arith.mulf %665, %709 : vector<2x4xf32>
    %711 = arith.index_cast %c13_i32 : i32 to index
    %c0_180 = arith.constant 0 : index
    %c0_181 = arith.constant 0 : index
    %712 = vector.load %arg2[%711, %c0_180, %c0_181] : memref<50x2x4xf32, #tpu.memory_space<vmem>>, vector<1x2x4xf32>
    %713 = vector.shape_cast %712 : vector<1x2x4xf32> to vector<2x4xf32>
    %714 = vector.broadcast %cst_13 : f32 to vector<2x4xf32>
    %715 = arith.mulf %714, %713 : vector<2x4xf32>
    %716 = arith.addf %710, %715 : vector<2x4xf32>
    %717 = vector.broadcast %cst_14 : f32 to vector<2x4xf32>
    %718 = arith.cmpf ogt, %708, %717 : vector<2x4xf32>
    %719 = arith.extui %718 : vector<2x4xi1> to vector<2x4xi32>
    %720 = arith.sitofp %719 : vector<2x4xi32> to vector<2x4xf32>
    %721 = arith.maximumf %670, %720 : vector<2x4xf32>
    %cst_182 = arith.constant 1.000000e+00 : f32
    %722 = vector.broadcast %cst_182 : f32 to vector<2x4xf32>
    %723 = arith.subf %722, %721 : vector<2x4xf32>
    %724 = arith.addf %673, %723 : vector<2x4xf32>
    %c14_i32 = arith.constant 14 : i32
    %cst_183 = arith.constant dense<0.000000e+00> : vector<2xf32>
    %725 = vector.multi_reduction <add>, %708, %cst_183 [1] : vector<2x4xf32> to vector<2xf32>
    %726 = vector.shape_cast %725 : vector<2xf32> to vector<2x1xf32>
    %727 = vector.broadcast %cst_8 : f32 to vector<2x4xf32>
    %728 = arith.mulf %708, %727 : vector<2x4xf32>
    %729 = vector.broadcast %cst_9 : f32 to vector<2x1xf32>
    %730 = arith.mulf %726, %729 : vector<2x1xf32>
    %731 = vector.broadcast %730 : vector<2x1xf32> to vector<2x4xf32>
    %732 = arith.addf %728, %731 : vector<2x4xf32>
    %733 = arith.addf %732, %4 : vector<2x4xf32>
    %734 = arith.addf %733, %716 : vector<2x4xf32>
    %cst_184 = arith.constant 2.700000e+02 : f32
    %735 = vector.broadcast %cst_184 : f32 to vector<2x4xf32>
    %736 = arith.mulf %735, %734 : vector<2x4xf32>
    %cst_185 = arith.constant 1.080000e+02 : f32
    %737 = vector.broadcast %cst_185 : f32 to vector<2x4xf32>
    %738 = arith.subf %736, %737 : vector<2x4xf32>
    %cst_186 = arith.constant 0.000000e+00 : f32
    %cst_187 = arith.constant 1.540000e-01 : f32
    %739 = arith.subf %cst_186, %cst_187 : f32
    %740 = vector.broadcast %739 : f32 to vector<2x4xf32>
    %741 = arith.mulf %740, %738 : vector<2x4xf32>
    %742 = math.exp %741 : vector<2x4xf32>
    %cst_188 = arith.constant 1.000000e+00 : f32
    %743 = vector.broadcast %cst_188 : f32 to vector<2x4xf32>
    %744 = arith.subf %743, %742 : vector<2x4xf32>
    %cst_189 = arith.constant 9.99999997E-7 : f32
    %745 = vector.broadcast %cst_189 : f32 to vector<2x4xf32>
    %746 = arith.addf %744, %745 : vector<2x4xf32>
    %747 = tpu.reciprocal %746 : vector<2x4xf32> -> vector<2x4xf32>
    %748 = arith.mulf %738, %747 : vector<2x4xf32>
    %cst_190 = arith.constant 0.000000e+00 : f32
    %749 = vector.broadcast %cst_190 : f32 to vector<2x4xf32>
    %750 = arith.maximumf %748, %749 : vector<2x4xf32>
    %751 = vector.broadcast %cst_10 : f32 to vector<2x4xf32>
    %752 = arith.mulf %708, %751 : vector<2x4xf32>
    %753 = arith.subf %708, %752 : vector<2x4xf32>
    %cst_191 = arith.constant 1.000000e+00 : f32
    %754 = vector.broadcast %cst_191 : f32 to vector<2x4xf32>
    %755 = arith.subf %754, %708 : vector<2x4xf32>
    %756 = arith.mulf %755, %750 : vector<2x4xf32>
    %757 = vector.broadcast %cst_11 : f32 to vector<2x4xf32>
    %758 = arith.mulf %756, %757 : vector<2x4xf32>
    %759 = arith.addf %753, %758 : vector<2x4xf32>
    %760 = vector.broadcast %cst_12 : f32 to vector<2x4xf32>
    %761 = arith.mulf %716, %760 : vector<2x4xf32>
    %762 = arith.index_cast %c14_i32 : i32 to index
    %c0_192 = arith.constant 0 : index
    %c0_193 = arith.constant 0 : index
    %763 = vector.load %arg2[%762, %c0_192, %c0_193] : memref<50x2x4xf32, #tpu.memory_space<vmem>>, vector<1x2x4xf32>
    %764 = vector.shape_cast %763 : vector<1x2x4xf32> to vector<2x4xf32>
    %765 = vector.broadcast %cst_13 : f32 to vector<2x4xf32>
    %766 = arith.mulf %765, %764 : vector<2x4xf32>
    %767 = arith.addf %761, %766 : vector<2x4xf32>
    %768 = vector.broadcast %cst_14 : f32 to vector<2x4xf32>
    %769 = arith.cmpf ogt, %759, %768 : vector<2x4xf32>
    %770 = arith.extui %769 : vector<2x4xi1> to vector<2x4xi32>
    %771 = arith.sitofp %770 : vector<2x4xi32> to vector<2x4xf32>
    %772 = arith.maximumf %721, %771 : vector<2x4xf32>
    %cst_194 = arith.constant 1.000000e+00 : f32
    %773 = vector.broadcast %cst_194 : f32 to vector<2x4xf32>
    %774 = arith.subf %773, %772 : vector<2x4xf32>
    %775 = arith.addf %724, %774 : vector<2x4xf32>
    %c15_i32 = arith.constant 15 : i32
    %cst_195 = arith.constant dense<0.000000e+00> : vector<2xf32>
    %776 = vector.multi_reduction <add>, %759, %cst_195 [1] : vector<2x4xf32> to vector<2xf32>
    %777 = vector.shape_cast %776 : vector<2xf32> to vector<2x1xf32>
    %778 = vector.broadcast %cst_8 : f32 to vector<2x4xf32>
    %779 = arith.mulf %759, %778 : vector<2x4xf32>
    %780 = vector.broadcast %cst_9 : f32 to vector<2x1xf32>
    %781 = arith.mulf %777, %780 : vector<2x1xf32>
    %782 = vector.broadcast %781 : vector<2x1xf32> to vector<2x4xf32>
    %783 = arith.addf %779, %782 : vector<2x4xf32>
    %784 = arith.addf %783, %4 : vector<2x4xf32>
    %785 = arith.addf %784, %767 : vector<2x4xf32>
    %cst_196 = arith.constant 2.700000e+02 : f32
    %786 = vector.broadcast %cst_196 : f32 to vector<2x4xf32>
    %787 = arith.mulf %786, %785 : vector<2x4xf32>
    %cst_197 = arith.constant 1.080000e+02 : f32
    %788 = vector.broadcast %cst_197 : f32 to vector<2x4xf32>
    %789 = arith.subf %787, %788 : vector<2x4xf32>
    %cst_198 = arith.constant 0.000000e+00 : f32
    %cst_199 = arith.constant 1.540000e-01 : f32
    %790 = arith.subf %cst_198, %cst_199 : f32
    %791 = vector.broadcast %790 : f32 to vector<2x4xf32>
    %792 = arith.mulf %791, %789 : vector<2x4xf32>
    %793 = math.exp %792 : vector<2x4xf32>
    %cst_200 = arith.constant 1.000000e+00 : f32
    %794 = vector.broadcast %cst_200 : f32 to vector<2x4xf32>
    %795 = arith.subf %794, %793 : vector<2x4xf32>
    %cst_201 = arith.constant 9.99999997E-7 : f32
    %796 = vector.broadcast %cst_201 : f32 to vector<2x4xf32>
    %797 = arith.addf %795, %796 : vector<2x4xf32>
    %798 = tpu.reciprocal %797 : vector<2x4xf32> -> vector<2x4xf32>
    %799 = arith.mulf %789, %798 : vector<2x4xf32>
    %cst_202 = arith.constant 0.000000e+00 : f32
    %800 = vector.broadcast %cst_202 : f32 to vector<2x4xf32>
    %801 = arith.maximumf %799, %800 : vector<2x4xf32>
    %802 = vector.broadcast %cst_10 : f32 to vector<2x4xf32>
    %803 = arith.mulf %759, %802 : vector<2x4xf32>
    %804 = arith.subf %759, %803 : vector<2x4xf32>
    %cst_203 = arith.constant 1.000000e+00 : f32
    %805 = vector.broadcast %cst_203 : f32 to vector<2x4xf32>
    %806 = arith.subf %805, %759 : vector<2x4xf32>
    %807 = arith.mulf %806, %801 : vector<2x4xf32>
    %808 = vector.broadcast %cst_11 : f32 to vector<2x4xf32>
    %809 = arith.mulf %807, %808 : vector<2x4xf32>
    %810 = arith.addf %804, %809 : vector<2x4xf32>
    %811 = vector.broadcast %cst_12 : f32 to vector<2x4xf32>
    %812 = arith.mulf %767, %811 : vector<2x4xf32>
    %813 = arith.index_cast %c15_i32 : i32 to index
    %c0_204 = arith.constant 0 : index
    %c0_205 = arith.constant 0 : index
    %814 = vector.load %arg2[%813, %c0_204, %c0_205] : memref<50x2x4xf32, #tpu.memory_space<vmem>>, vector<1x2x4xf32>
    %815 = vector.shape_cast %814 : vector<1x2x4xf32> to vector<2x4xf32>
    %816 = vector.broadcast %cst_13 : f32 to vector<2x4xf32>
    %817 = arith.mulf %816, %815 : vector<2x4xf32>
    %818 = arith.addf %812, %817 : vector<2x4xf32>
    %819 = vector.broadcast %cst_14 : f32 to vector<2x4xf32>
    %820 = arith.cmpf ogt, %810, %819 : vector<2x4xf32>
    %821 = arith.extui %820 : vector<2x4xi1> to vector<2x4xi32>
    %822 = arith.sitofp %821 : vector<2x4xi32> to vector<2x4xf32>
    %823 = arith.maximumf %772, %822 : vector<2x4xf32>
    %cst_206 = arith.constant 1.000000e+00 : f32
    %824 = vector.broadcast %cst_206 : f32 to vector<2x4xf32>
    %825 = arith.subf %824, %823 : vector<2x4xf32>
    %826 = arith.addf %775, %825 : vector<2x4xf32>
    %c16_i32 = arith.constant 16 : i32
    %cst_207 = arith.constant dense<0.000000e+00> : vector<2xf32>
    %827 = vector.multi_reduction <add>, %810, %cst_207 [1] : vector<2x4xf32> to vector<2xf32>
    %828 = vector.shape_cast %827 : vector<2xf32> to vector<2x1xf32>
    %829 = vector.broadcast %cst_8 : f32 to vector<2x4xf32>
    %830 = arith.mulf %810, %829 : vector<2x4xf32>
    %831 = vector.broadcast %cst_9 : f32 to vector<2x1xf32>
    %832 = arith.mulf %828, %831 : vector<2x1xf32>
    %833 = vector.broadcast %832 : vector<2x1xf32> to vector<2x4xf32>
    %834 = arith.addf %830, %833 : vector<2x4xf32>
    %835 = arith.addf %834, %4 : vector<2x4xf32>
    %836 = arith.addf %835, %818 : vector<2x4xf32>
    %cst_208 = arith.constant 2.700000e+02 : f32
    %837 = vector.broadcast %cst_208 : f32 to vector<2x4xf32>
    %838 = arith.mulf %837, %836 : vector<2x4xf32>
    %cst_209 = arith.constant 1.080000e+02 : f32
    %839 = vector.broadcast %cst_209 : f32 to vector<2x4xf32>
    %840 = arith.subf %838, %839 : vector<2x4xf32>
    %cst_210 = arith.constant 0.000000e+00 : f32
    %cst_211 = arith.constant 1.540000e-01 : f32
    %841 = arith.subf %cst_210, %cst_211 : f32
    %842 = vector.broadcast %841 : f32 to vector<2x4xf32>
    %843 = arith.mulf %842, %840 : vector<2x4xf32>
    %844 = math.exp %843 : vector<2x4xf32>
    %cst_212 = arith.constant 1.000000e+00 : f32
    %845 = vector.broadcast %cst_212 : f32 to vector<2x4xf32>
    %846 = arith.subf %845, %844 : vector<2x4xf32>
    %cst_213 = arith.constant 9.99999997E-7 : f32
    %847 = vector.broadcast %cst_213 : f32 to vector<2x4xf32>
    %848 = arith.addf %846, %847 : vector<2x4xf32>
    %849 = tpu.reciprocal %848 : vector<2x4xf32> -> vector<2x4xf32>
    %850 = arith.mulf %840, %849 : vector<2x4xf32>
    %cst_214 = arith.constant 0.000000e+00 : f32
    %851 = vector.broadcast %cst_214 : f32 to vector<2x4xf32>
    %852 = arith.maximumf %850, %851 : vector<2x4xf32>
    %853 = vector.broadcast %cst_10 : f32 to vector<2x4xf32>
    %854 = arith.mulf %810, %853 : vector<2x4xf32>
    %855 = arith.subf %810, %854 : vector<2x4xf32>
    %cst_215 = arith.constant 1.000000e+00 : f32
    %856 = vector.broadcast %cst_215 : f32 to vector<2x4xf32>
    %857 = arith.subf %856, %810 : vector<2x4xf32>
    %858 = arith.mulf %857, %852 : vector<2x4xf32>
    %859 = vector.broadcast %cst_11 : f32 to vector<2x4xf32>
    %860 = arith.mulf %858, %859 : vector<2x4xf32>
    %861 = arith.addf %855, %860 : vector<2x4xf32>
    %862 = vector.broadcast %cst_12 : f32 to vector<2x4xf32>
    %863 = arith.mulf %818, %862 : vector<2x4xf32>
    %864 = arith.index_cast %c16_i32 : i32 to index
    %c0_216 = arith.constant 0 : index
    %c0_217 = arith.constant 0 : index
    %865 = vector.load %arg2[%864, %c0_216, %c0_217] : memref<50x2x4xf32, #tpu.memory_space<vmem>>, vector<1x2x4xf32>
    %866 = vector.shape_cast %865 : vector<1x2x4xf32> to vector<2x4xf32>
    %867 = vector.broadcast %cst_13 : f32 to vector<2x4xf32>
    %868 = arith.mulf %867, %866 : vector<2x4xf32>
    %869 = arith.addf %863, %868 : vector<2x4xf32>
    %870 = vector.broadcast %cst_14 : f32 to vector<2x4xf32>
    %871 = arith.cmpf ogt, %861, %870 : vector<2x4xf32>
    %872 = arith.extui %871 : vector<2x4xi1> to vector<2x4xi32>
    %873 = arith.sitofp %872 : vector<2x4xi32> to vector<2x4xf32>
    %874 = arith.maximumf %823, %873 : vector<2x4xf32>
    %cst_218 = arith.constant 1.000000e+00 : f32
    %875 = vector.broadcast %cst_218 : f32 to vector<2x4xf32>
    %876 = arith.subf %875, %874 : vector<2x4xf32>
    %877 = arith.addf %826, %876 : vector<2x4xf32>
    %c17_i32 = arith.constant 17 : i32
    %cst_219 = arith.constant dense<0.000000e+00> : vector<2xf32>
    %878 = vector.multi_reduction <add>, %861, %cst_219 [1] : vector<2x4xf32> to vector<2xf32>
    %879 = vector.shape_cast %878 : vector<2xf32> to vector<2x1xf32>
    %880 = vector.broadcast %cst_8 : f32 to vector<2x4xf32>
    %881 = arith.mulf %861, %880 : vector<2x4xf32>
    %882 = vector.broadcast %cst_9 : f32 to vector<2x1xf32>
    %883 = arith.mulf %879, %882 : vector<2x1xf32>
    %884 = vector.broadcast %883 : vector<2x1xf32> to vector<2x4xf32>
    %885 = arith.addf %881, %884 : vector<2x4xf32>
    %886 = arith.addf %885, %4 : vector<2x4xf32>
    %887 = arith.addf %886, %869 : vector<2x4xf32>
    %cst_220 = arith.constant 2.700000e+02 : f32
    %888 = vector.broadcast %cst_220 : f32 to vector<2x4xf32>
    %889 = arith.mulf %888, %887 : vector<2x4xf32>
    %cst_221 = arith.constant 1.080000e+02 : f32
    %890 = vector.broadcast %cst_221 : f32 to vector<2x4xf32>
    %891 = arith.subf %889, %890 : vector<2x4xf32>
    %cst_222 = arith.constant 0.000000e+00 : f32
    %cst_223 = arith.constant 1.540000e-01 : f32
    %892 = arith.subf %cst_222, %cst_223 : f32
    %893 = vector.broadcast %892 : f32 to vector<2x4xf32>
    %894 = arith.mulf %893, %891 : vector<2x4xf32>
    %895 = math.exp %894 : vector<2x4xf32>
    %cst_224 = arith.constant 1.000000e+00 : f32
    %896 = vector.broadcast %cst_224 : f32 to vector<2x4xf32>
    %897 = arith.subf %896, %895 : vector<2x4xf32>
    %cst_225 = arith.constant 9.99999997E-7 : f32
    %898 = vector.broadcast %cst_225 : f32 to vector<2x4xf32>
    %899 = arith.addf %897, %898 : vector<2x4xf32>
    %900 = tpu.reciprocal %899 : vector<2x4xf32> -> vector<2x4xf32>
    %901 = arith.mulf %891, %900 : vector<2x4xf32>
    %cst_226 = arith.constant 0.000000e+00 : f32
    %902 = vector.broadcast %cst_226 : f32 to vector<2x4xf32>
    %903 = arith.maximumf %901, %902 : vector<2x4xf32>
    %904 = vector.broadcast %cst_10 : f32 to vector<2x4xf32>
    %905 = arith.mulf %861, %904 : vector<2x4xf32>
    %906 = arith.subf %861, %905 : vector<2x4xf32>
    %cst_227 = arith.constant 1.000000e+00 : f32
    %907 = vector.broadcast %cst_227 : f32 to vector<2x4xf32>
    %908 = arith.subf %907, %861 : vector<2x4xf32>
    %909 = arith.mulf %908, %903 : vector<2x4xf32>
    %910 = vector.broadcast %cst_11 : f32 to vector<2x4xf32>
    %911 = arith.mulf %909, %910 : vector<2x4xf32>
    %912 = arith.addf %906, %911 : vector<2x4xf32>
    %913 = vector.broadcast %cst_12 : f32 to vector<2x4xf32>
    %914 = arith.mulf %869, %913 : vector<2x4xf32>
    %915 = arith.index_cast %c17_i32 : i32 to index
    %c0_228 = arith.constant 0 : index
    %c0_229 = arith.constant 0 : index
    %916 = vector.load %arg2[%915, %c0_228, %c0_229] : memref<50x2x4xf32, #tpu.memory_space<vmem>>, vector<1x2x4xf32>
    %917 = vector.shape_cast %916 : vector<1x2x4xf32> to vector<2x4xf32>
    %918 = vector.broadcast %cst_13 : f32 to vector<2x4xf32>
    %919 = arith.mulf %918, %917 : vector<2x4xf32>
    %920 = arith.addf %914, %919 : vector<2x4xf32>
    %921 = vector.broadcast %cst_14 : f32 to vector<2x4xf32>
    %922 = arith.cmpf ogt, %912, %921 : vector<2x4xf32>
    %923 = arith.extui %922 : vector<2x4xi1> to vector<2x4xi32>
    %924 = arith.sitofp %923 : vector<2x4xi32> to vector<2x4xf32>
    %925 = arith.maximumf %874, %924 : vector<2x4xf32>
    %cst_230 = arith.constant 1.000000e+00 : f32
    %926 = vector.broadcast %cst_230 : f32 to vector<2x4xf32>
    %927 = arith.subf %926, %925 : vector<2x4xf32>
    %928 = arith.addf %877, %927 : vector<2x4xf32>
    %c18_i32 = arith.constant 18 : i32
    %cst_231 = arith.constant dense<0.000000e+00> : vector<2xf32>
    %929 = vector.multi_reduction <add>, %912, %cst_231 [1] : vector<2x4xf32> to vector<2xf32>
    %930 = vector.shape_cast %929 : vector<2xf32> to vector<2x1xf32>
    %931 = vector.broadcast %cst_8 : f32 to vector<2x4xf32>
    %932 = arith.mulf %912, %931 : vector<2x4xf32>
    %933 = vector.broadcast %cst_9 : f32 to vector<2x1xf32>
    %934 = arith.mulf %930, %933 : vector<2x1xf32>
    %935 = vector.broadcast %934 : vector<2x1xf32> to vector<2x4xf32>
    %936 = arith.addf %932, %935 : vector<2x4xf32>
    %937 = arith.addf %936, %4 : vector<2x4xf32>
    %938 = arith.addf %937, %920 : vector<2x4xf32>
    %cst_232 = arith.constant 2.700000e+02 : f32
    %939 = vector.broadcast %cst_232 : f32 to vector<2x4xf32>
    %940 = arith.mulf %939, %938 : vector<2x4xf32>
    %cst_233 = arith.constant 1.080000e+02 : f32
    %941 = vector.broadcast %cst_233 : f32 to vector<2x4xf32>
    %942 = arith.subf %940, %941 : vector<2x4xf32>
    %cst_234 = arith.constant 0.000000e+00 : f32
    %cst_235 = arith.constant 1.540000e-01 : f32
    %943 = arith.subf %cst_234, %cst_235 : f32
    %944 = vector.broadcast %943 : f32 to vector<2x4xf32>
    %945 = arith.mulf %944, %942 : vector<2x4xf32>
    %946 = math.exp %945 : vector<2x4xf32>
    %cst_236 = arith.constant 1.000000e+00 : f32
    %947 = vector.broadcast %cst_236 : f32 to vector<2x4xf32>
    %948 = arith.subf %947, %946 : vector<2x4xf32>
    %cst_237 = arith.constant 9.99999997E-7 : f32
    %949 = vector.broadcast %cst_237 : f32 to vector<2x4xf32>
    %950 = arith.addf %948, %949 : vector<2x4xf32>
    %951 = tpu.reciprocal %950 : vector<2x4xf32> -> vector<2x4xf32>
    %952 = arith.mulf %942, %951 : vector<2x4xf32>
    %cst_238 = arith.constant 0.000000e+00 : f32
    %953 = vector.broadcast %cst_238 : f32 to vector<2x4xf32>
    %954 = arith.maximumf %952, %953 : vector<2x4xf32>
    %955 = vector.broadcast %cst_10 : f32 to vector<2x4xf32>
    %956 = arith.mulf %912, %955 : vector<2x4xf32>
    %957 = arith.subf %912, %956 : vector<2x4xf32>
    %cst_239 = arith.constant 1.000000e+00 : f32
    %958 = vector.broadcast %cst_239 : f32 to vector<2x4xf32>
    %959 = arith.subf %958, %912 : vector<2x4xf32>
    %960 = arith.mulf %959, %954 : vector<2x4xf32>
    %961 = vector.broadcast %cst_11 : f32 to vector<2x4xf32>
    %962 = arith.mulf %960, %961 : vector<2x4xf32>
    %963 = arith.addf %957, %962 : vector<2x4xf32>
    %964 = vector.broadcast %cst_12 : f32 to vector<2x4xf32>
    %965 = arith.mulf %920, %964 : vector<2x4xf32>
    %966 = arith.index_cast %c18_i32 : i32 to index
    %c0_240 = arith.constant 0 : index
    %c0_241 = arith.constant 0 : index
    %967 = vector.load %arg2[%966, %c0_240, %c0_241] : memref<50x2x4xf32, #tpu.memory_space<vmem>>, vector<1x2x4xf32>
    %968 = vector.shape_cast %967 : vector<1x2x4xf32> to vector<2x4xf32>
    %969 = vector.broadcast %cst_13 : f32 to vector<2x4xf32>
    %970 = arith.mulf %969, %968 : vector<2x4xf32>
    %971 = arith.addf %965, %970 : vector<2x4xf32>
    %972 = vector.broadcast %cst_14 : f32 to vector<2x4xf32>
    %973 = arith.cmpf ogt, %963, %972 : vector<2x4xf32>
    %974 = arith.extui %973 : vector<2x4xi1> to vector<2x4xi32>
    %975 = arith.sitofp %974 : vector<2x4xi32> to vector<2x4xf32>
    %976 = arith.maximumf %925, %975 : vector<2x4xf32>
    %cst_242 = arith.constant 1.000000e+00 : f32
    %977 = vector.broadcast %cst_242 : f32 to vector<2x4xf32>
    %978 = arith.subf %977, %976 : vector<2x4xf32>
    %979 = arith.addf %928, %978 : vector<2x4xf32>
    %c19_i32 = arith.constant 19 : i32
    %cst_243 = arith.constant dense<0.000000e+00> : vector<2xf32>
    %980 = vector.multi_reduction <add>, %963, %cst_243 [1] : vector<2x4xf32> to vector<2xf32>
    %981 = vector.shape_cast %980 : vector<2xf32> to vector<2x1xf32>
    %982 = vector.broadcast %cst_8 : f32 to vector<2x4xf32>
    %983 = arith.mulf %963, %982 : vector<2x4xf32>
    %984 = vector.broadcast %cst_9 : f32 to vector<2x1xf32>
    %985 = arith.mulf %981, %984 : vector<2x1xf32>
    %986 = vector.broadcast %985 : vector<2x1xf32> to vector<2x4xf32>
    %987 = arith.addf %983, %986 : vector<2x4xf32>
    %988 = arith.addf %987, %4 : vector<2x4xf32>
    %989 = arith.addf %988, %971 : vector<2x4xf32>
    %cst_244 = arith.constant 2.700000e+02 : f32
    %990 = vector.broadcast %cst_244 : f32 to vector<2x4xf32>
    %991 = arith.mulf %990, %989 : vector<2x4xf32>
    %cst_245 = arith.constant 1.080000e+02 : f32
    %992 = vector.broadcast %cst_245 : f32 to vector<2x4xf32>
    %993 = arith.subf %991, %992 : vector<2x4xf32>
    %cst_246 = arith.constant 0.000000e+00 : f32
    %cst_247 = arith.constant 1.540000e-01 : f32
    %994 = arith.subf %cst_246, %cst_247 : f32
    %995 = vector.broadcast %994 : f32 to vector<2x4xf32>
    %996 = arith.mulf %995, %993 : vector<2x4xf32>
    %997 = math.exp %996 : vector<2x4xf32>
    %cst_248 = arith.constant 1.000000e+00 : f32
    %998 = vector.broadcast %cst_248 : f32 to vector<2x4xf32>
    %999 = arith.subf %998, %997 : vector<2x4xf32>
    %cst_249 = arith.constant 9.99999997E-7 : f32
    %1000 = vector.broadcast %cst_249 : f32 to vector<2x4xf32>
    %1001 = arith.addf %999, %1000 : vector<2x4xf32>
    %1002 = tpu.reciprocal %1001 : vector<2x4xf32> -> vector<2x4xf32>
    %1003 = arith.mulf %993, %1002 : vector<2x4xf32>
    %cst_250 = arith.constant 0.000000e+00 : f32
    %1004 = vector.broadcast %cst_250 : f32 to vector<2x4xf32>
    %1005 = arith.maximumf %1003, %1004 : vector<2x4xf32>
    %1006 = vector.broadcast %cst_10 : f32 to vector<2x4xf32>
    %1007 = arith.mulf %963, %1006 : vector<2x4xf32>
    %1008 = arith.subf %963, %1007 : vector<2x4xf32>
    %cst_251 = arith.constant 1.000000e+00 : f32
    %1009 = vector.broadcast %cst_251 : f32 to vector<2x4xf32>
    %1010 = arith.subf %1009, %963 : vector<2x4xf32>
    %1011 = arith.mulf %1010, %1005 : vector<2x4xf32>
    %1012 = vector.broadcast %cst_11 : f32 to vector<2x4xf32>
    %1013 = arith.mulf %1011, %1012 : vector<2x4xf32>
    %1014 = arith.addf %1008, %1013 : vector<2x4xf32>
    %1015 = vector.broadcast %cst_12 : f32 to vector<2x4xf32>
    %1016 = arith.mulf %971, %1015 : vector<2x4xf32>
    %1017 = arith.index_cast %c19_i32 : i32 to index
    %c0_252 = arith.constant 0 : index
    %c0_253 = arith.constant 0 : index
    %1018 = vector.load %arg2[%1017, %c0_252, %c0_253] : memref<50x2x4xf32, #tpu.memory_space<vmem>>, vector<1x2x4xf32>
    %1019 = vector.shape_cast %1018 : vector<1x2x4xf32> to vector<2x4xf32>
    %1020 = vector.broadcast %cst_13 : f32 to vector<2x4xf32>
    %1021 = arith.mulf %1020, %1019 : vector<2x4xf32>
    %1022 = arith.addf %1016, %1021 : vector<2x4xf32>
    %1023 = vector.broadcast %cst_14 : f32 to vector<2x4xf32>
    %1024 = arith.cmpf ogt, %1014, %1023 : vector<2x4xf32>
    %1025 = arith.extui %1024 : vector<2x4xi1> to vector<2x4xi32>
    %1026 = arith.sitofp %1025 : vector<2x4xi32> to vector<2x4xf32>
    %1027 = arith.maximumf %976, %1026 : vector<2x4xf32>
    %cst_254 = arith.constant 1.000000e+00 : f32
    %1028 = vector.broadcast %cst_254 : f32 to vector<2x4xf32>
    %1029 = arith.subf %1028, %1027 : vector<2x4xf32>
    %1030 = arith.addf %979, %1029 : vector<2x4xf32>
    %c20_i32 = arith.constant 20 : i32
    %cst_255 = arith.constant dense<0.000000e+00> : vector<2xf32>
    %1031 = vector.multi_reduction <add>, %1014, %cst_255 [1] : vector<2x4xf32> to vector<2xf32>
    %1032 = vector.shape_cast %1031 : vector<2xf32> to vector<2x1xf32>
    %1033 = vector.broadcast %cst_8 : f32 to vector<2x4xf32>
    %1034 = arith.mulf %1014, %1033 : vector<2x4xf32>
    %1035 = vector.broadcast %cst_9 : f32 to vector<2x1xf32>
    %1036 = arith.mulf %1032, %1035 : vector<2x1xf32>
    %1037 = vector.broadcast %1036 : vector<2x1xf32> to vector<2x4xf32>
    %1038 = arith.addf %1034, %1037 : vector<2x4xf32>
    %1039 = arith.addf %1038, %4 : vector<2x4xf32>
    %1040 = arith.addf %1039, %1022 : vector<2x4xf32>
    %cst_256 = arith.constant 2.700000e+02 : f32
    %1041 = vector.broadcast %cst_256 : f32 to vector<2x4xf32>
    %1042 = arith.mulf %1041, %1040 : vector<2x4xf32>
    %cst_257 = arith.constant 1.080000e+02 : f32
    %1043 = vector.broadcast %cst_257 : f32 to vector<2x4xf32>
    %1044 = arith.subf %1042, %1043 : vector<2x4xf32>
    %cst_258 = arith.constant 0.000000e+00 : f32
    %cst_259 = arith.constant 1.540000e-01 : f32
    %1045 = arith.subf %cst_258, %cst_259 : f32
    %1046 = vector.broadcast %1045 : f32 to vector<2x4xf32>
    %1047 = arith.mulf %1046, %1044 : vector<2x4xf32>
    %1048 = math.exp %1047 : vector<2x4xf32>
    %cst_260 = arith.constant 1.000000e+00 : f32
    %1049 = vector.broadcast %cst_260 : f32 to vector<2x4xf32>
    %1050 = arith.subf %1049, %1048 : vector<2x4xf32>
    %cst_261 = arith.constant 9.99999997E-7 : f32
    %1051 = vector.broadcast %cst_261 : f32 to vector<2x4xf32>
    %1052 = arith.addf %1050, %1051 : vector<2x4xf32>
    %1053 = tpu.reciprocal %1052 : vector<2x4xf32> -> vector<2x4xf32>
    %1054 = arith.mulf %1044, %1053 : vector<2x4xf32>
    %cst_262 = arith.constant 0.000000e+00 : f32
    %1055 = vector.broadcast %cst_262 : f32 to vector<2x4xf32>
    %1056 = arith.maximumf %1054, %1055 : vector<2x4xf32>
    %1057 = vector.broadcast %cst_10 : f32 to vector<2x4xf32>
    %1058 = arith.mulf %1014, %1057 : vector<2x4xf32>
    %1059 = arith.subf %1014, %1058 : vector<2x4xf32>
    %cst_263 = arith.constant 1.000000e+00 : f32
    %1060 = vector.broadcast %cst_263 : f32 to vector<2x4xf32>
    %1061 = arith.subf %1060, %1014 : vector<2x4xf32>
    %1062 = arith.mulf %1061, %1056 : vector<2x4xf32>
    %1063 = vector.broadcast %cst_11 : f32 to vector<2x4xf32>
    %1064 = arith.mulf %1062, %1063 : vector<2x4xf32>
    %1065 = arith.addf %1059, %1064 : vector<2x4xf32>
    %1066 = vector.broadcast %cst_12 : f32 to vector<2x4xf32>
    %1067 = arith.mulf %1022, %1066 : vector<2x4xf32>
    %1068 = arith.index_cast %c20_i32 : i32 to index
    %c0_264 = arith.constant 0 : index
    %c0_265 = arith.constant 0 : index
    %1069 = vector.load %arg2[%1068, %c0_264, %c0_265] : memref<50x2x4xf32, #tpu.memory_space<vmem>>, vector<1x2x4xf32>
    %1070 = vector.shape_cast %1069 : vector<1x2x4xf32> to vector<2x4xf32>
    %1071 = vector.broadcast %cst_13 : f32 to vector<2x4xf32>
    %1072 = arith.mulf %1071, %1070 : vector<2x4xf32>
    %1073 = arith.addf %1067, %1072 : vector<2x4xf32>
    %1074 = vector.broadcast %cst_14 : f32 to vector<2x4xf32>
    %1075 = arith.cmpf ogt, %1065, %1074 : vector<2x4xf32>
    %1076 = arith.extui %1075 : vector<2x4xi1> to vector<2x4xi32>
    %1077 = arith.sitofp %1076 : vector<2x4xi32> to vector<2x4xf32>
    %1078 = arith.maximumf %1027, %1077 : vector<2x4xf32>
    %cst_266 = arith.constant 1.000000e+00 : f32
    %1079 = vector.broadcast %cst_266 : f32 to vector<2x4xf32>
    %1080 = arith.subf %1079, %1078 : vector<2x4xf32>
    %1081 = arith.addf %1030, %1080 : vector<2x4xf32>
    %c21_i32 = arith.constant 21 : i32
    %cst_267 = arith.constant dense<0.000000e+00> : vector<2xf32>
    %1082 = vector.multi_reduction <add>, %1065, %cst_267 [1] : vector<2x4xf32> to vector<2xf32>
    %1083 = vector.shape_cast %1082 : vector<2xf32> to vector<2x1xf32>
    %1084 = vector.broadcast %cst_8 : f32 to vector<2x4xf32>
    %1085 = arith.mulf %1065, %1084 : vector<2x4xf32>
    %1086 = vector.broadcast %cst_9 : f32 to vector<2x1xf32>
    %1087 = arith.mulf %1083, %1086 : vector<2x1xf32>
    %1088 = vector.broadcast %1087 : vector<2x1xf32> to vector<2x4xf32>
    %1089 = arith.addf %1085, %1088 : vector<2x4xf32>
    %1090 = arith.addf %1089, %4 : vector<2x4xf32>
    %1091 = arith.addf %1090, %1073 : vector<2x4xf32>
    %cst_268 = arith.constant 2.700000e+02 : f32
    %1092 = vector.broadcast %cst_268 : f32 to vector<2x4xf32>
    %1093 = arith.mulf %1092, %1091 : vector<2x4xf32>
    %cst_269 = arith.constant 1.080000e+02 : f32
    %1094 = vector.broadcast %cst_269 : f32 to vector<2x4xf32>
    %1095 = arith.subf %1093, %1094 : vector<2x4xf32>
    %cst_270 = arith.constant 0.000000e+00 : f32
    %cst_271 = arith.constant 1.540000e-01 : f32
    %1096 = arith.subf %cst_270, %cst_271 : f32
    %1097 = vector.broadcast %1096 : f32 to vector<2x4xf32>
    %1098 = arith.mulf %1097, %1095 : vector<2x4xf32>
    %1099 = math.exp %1098 : vector<2x4xf32>
    %cst_272 = arith.constant 1.000000e+00 : f32
    %1100 = vector.broadcast %cst_272 : f32 to vector<2x4xf32>
    %1101 = arith.subf %1100, %1099 : vector<2x4xf32>
    %cst_273 = arith.constant 9.99999997E-7 : f32
    %1102 = vector.broadcast %cst_273 : f32 to vector<2x4xf32>
    %1103 = arith.addf %1101, %1102 : vector<2x4xf32>
    %1104 = tpu.reciprocal %1103 : vector<2x4xf32> -> vector<2x4xf32>
    %1105 = arith.mulf %1095, %1104 : vector<2x4xf32>
    %cst_274 = arith.constant 0.000000e+00 : f32
    %1106 = vector.broadcast %cst_274 : f32 to vector<2x4xf32>
    %1107 = arith.maximumf %1105, %1106 : vector<2x4xf32>
    %1108 = vector.broadcast %cst_10 : f32 to vector<2x4xf32>
    %1109 = arith.mulf %1065, %1108 : vector<2x4xf32>
    %1110 = arith.subf %1065, %1109 : vector<2x4xf32>
    %cst_275 = arith.constant 1.000000e+00 : f32
    %1111 = vector.broadcast %cst_275 : f32 to vector<2x4xf32>
    %1112 = arith.subf %1111, %1065 : vector<2x4xf32>
    %1113 = arith.mulf %1112, %1107 : vector<2x4xf32>
    %1114 = vector.broadcast %cst_11 : f32 to vector<2x4xf32>
    %1115 = arith.mulf %1113, %1114 : vector<2x4xf32>
    %1116 = arith.addf %1110, %1115 : vector<2x4xf32>
    %1117 = vector.broadcast %cst_12 : f32 to vector<2x4xf32>
    %1118 = arith.mulf %1073, %1117 : vector<2x4xf32>
    %1119 = arith.index_cast %c21_i32 : i32 to index
    %c0_276 = arith.constant 0 : index
    %c0_277 = arith.constant 0 : index
    %1120 = vector.load %arg2[%1119, %c0_276, %c0_277] : memref<50x2x4xf32, #tpu.memory_space<vmem>>, vector<1x2x4xf32>
    %1121 = vector.shape_cast %1120 : vector<1x2x4xf32> to vector<2x4xf32>
    %1122 = vector.broadcast %cst_13 : f32 to vector<2x4xf32>
    %1123 = arith.mulf %1122, %1121 : vector<2x4xf32>
    %1124 = arith.addf %1118, %1123 : vector<2x4xf32>
    %1125 = vector.broadcast %cst_14 : f32 to vector<2x4xf32>
    %1126 = arith.cmpf ogt, %1116, %1125 : vector<2x4xf32>
    %1127 = arith.extui %1126 : vector<2x4xi1> to vector<2x4xi32>
    %1128 = arith.sitofp %1127 : vector<2x4xi32> to vector<2x4xf32>
    %1129 = arith.maximumf %1078, %1128 : vector<2x4xf32>
    %cst_278 = arith.constant 1.000000e+00 : f32
    %1130 = vector.broadcast %cst_278 : f32 to vector<2x4xf32>
    %1131 = arith.subf %1130, %1129 : vector<2x4xf32>
    %1132 = arith.addf %1081, %1131 : vector<2x4xf32>
    %c22_i32 = arith.constant 22 : i32
    %cst_279 = arith.constant dense<0.000000e+00> : vector<2xf32>
    %1133 = vector.multi_reduction <add>, %1116, %cst_279 [1] : vector<2x4xf32> to vector<2xf32>
    %1134 = vector.shape_cast %1133 : vector<2xf32> to vector<2x1xf32>
    %1135 = vector.broadcast %cst_8 : f32 to vector<2x4xf32>
    %1136 = arith.mulf %1116, %1135 : vector<2x4xf32>
    %1137 = vector.broadcast %cst_9 : f32 to vector<2x1xf32>
    %1138 = arith.mulf %1134, %1137 : vector<2x1xf32>
    %1139 = vector.broadcast %1138 : vector<2x1xf32> to vector<2x4xf32>
    %1140 = arith.addf %1136, %1139 : vector<2x4xf32>
    %1141 = arith.addf %1140, %4 : vector<2x4xf32>
    %1142 = arith.addf %1141, %1124 : vector<2x4xf32>
    %cst_280 = arith.constant 2.700000e+02 : f32
    %1143 = vector.broadcast %cst_280 : f32 to vector<2x4xf32>
    %1144 = arith.mulf %1143, %1142 : vector<2x4xf32>
    %cst_281 = arith.constant 1.080000e+02 : f32
    %1145 = vector.broadcast %cst_281 : f32 to vector<2x4xf32>
    %1146 = arith.subf %1144, %1145 : vector<2x4xf32>
    %cst_282 = arith.constant 0.000000e+00 : f32
    %cst_283 = arith.constant 1.540000e-01 : f32
    %1147 = arith.subf %cst_282, %cst_283 : f32
    %1148 = vector.broadcast %1147 : f32 to vector<2x4xf32>
    %1149 = arith.mulf %1148, %1146 : vector<2x4xf32>
    %1150 = math.exp %1149 : vector<2x4xf32>
    %cst_284 = arith.constant 1.000000e+00 : f32
    %1151 = vector.broadcast %cst_284 : f32 to vector<2x4xf32>
    %1152 = arith.subf %1151, %1150 : vector<2x4xf32>
    %cst_285 = arith.constant 9.99999997E-7 : f32
    %1153 = vector.broadcast %cst_285 : f32 to vector<2x4xf32>
    %1154 = arith.addf %1152, %1153 : vector<2x4xf32>
    %1155 = tpu.reciprocal %1154 : vector<2x4xf32> -> vector<2x4xf32>
    %1156 = arith.mulf %1146, %1155 : vector<2x4xf32>
    %cst_286 = arith.constant 0.000000e+00 : f32
    %1157 = vector.broadcast %cst_286 : f32 to vector<2x4xf32>
    %1158 = arith.maximumf %1156, %1157 : vector<2x4xf32>
    %1159 = vector.broadcast %cst_10 : f32 to vector<2x4xf32>
    %1160 = arith.mulf %1116, %1159 : vector<2x4xf32>
    %1161 = arith.subf %1116, %1160 : vector<2x4xf32>
    %cst_287 = arith.constant 1.000000e+00 : f32
    %1162 = vector.broadcast %cst_287 : f32 to vector<2x4xf32>
    %1163 = arith.subf %1162, %1116 : vector<2x4xf32>
    %1164 = arith.mulf %1163, %1158 : vector<2x4xf32>
    %1165 = vector.broadcast %cst_11 : f32 to vector<2x4xf32>
    %1166 = arith.mulf %1164, %1165 : vector<2x4xf32>
    %1167 = arith.addf %1161, %1166 : vector<2x4xf32>
    %1168 = vector.broadcast %cst_12 : f32 to vector<2x4xf32>
    %1169 = arith.mulf %1124, %1168 : vector<2x4xf32>
    %1170 = arith.index_cast %c22_i32 : i32 to index
    %c0_288 = arith.constant 0 : index
    %c0_289 = arith.constant 0 : index
    %1171 = vector.load %arg2[%1170, %c0_288, %c0_289] : memref<50x2x4xf32, #tpu.memory_space<vmem>>, vector<1x2x4xf32>
    %1172 = vector.shape_cast %1171 : vector<1x2x4xf32> to vector<2x4xf32>
    %1173 = vector.broadcast %cst_13 : f32 to vector<2x4xf32>
    %1174 = arith.mulf %1173, %1172 : vector<2x4xf32>
    %1175 = arith.addf %1169, %1174 : vector<2x4xf32>
    %1176 = vector.broadcast %cst_14 : f32 to vector<2x4xf32>
    %1177 = arith.cmpf ogt, %1167, %1176 : vector<2x4xf32>
    %1178 = arith.extui %1177 : vector<2x4xi1> to vector<2x4xi32>
    %1179 = arith.sitofp %1178 : vector<2x4xi32> to vector<2x4xf32>
    %1180 = arith.maximumf %1129, %1179 : vector<2x4xf32>
    %cst_290 = arith.constant 1.000000e+00 : f32
    %1181 = vector.broadcast %cst_290 : f32 to vector<2x4xf32>
    %1182 = arith.subf %1181, %1180 : vector<2x4xf32>
    %1183 = arith.addf %1132, %1182 : vector<2x4xf32>
    %c23_i32 = arith.constant 23 : i32
    %cst_291 = arith.constant dense<0.000000e+00> : vector<2xf32>
    %1184 = vector.multi_reduction <add>, %1167, %cst_291 [1] : vector<2x4xf32> to vector<2xf32>
    %1185 = vector.shape_cast %1184 : vector<2xf32> to vector<2x1xf32>
    %1186 = vector.broadcast %cst_8 : f32 to vector<2x4xf32>
    %1187 = arith.mulf %1167, %1186 : vector<2x4xf32>
    %1188 = vector.broadcast %cst_9 : f32 to vector<2x1xf32>
    %1189 = arith.mulf %1185, %1188 : vector<2x1xf32>
    %1190 = vector.broadcast %1189 : vector<2x1xf32> to vector<2x4xf32>
    %1191 = arith.addf %1187, %1190 : vector<2x4xf32>
    %1192 = arith.addf %1191, %4 : vector<2x4xf32>
    %1193 = arith.addf %1192, %1175 : vector<2x4xf32>
    %cst_292 = arith.constant 2.700000e+02 : f32
    %1194 = vector.broadcast %cst_292 : f32 to vector<2x4xf32>
    %1195 = arith.mulf %1194, %1193 : vector<2x4xf32>
    %cst_293 = arith.constant 1.080000e+02 : f32
    %1196 = vector.broadcast %cst_293 : f32 to vector<2x4xf32>
    %1197 = arith.subf %1195, %1196 : vector<2x4xf32>
    %cst_294 = arith.constant 0.000000e+00 : f32
    %cst_295 = arith.constant 1.540000e-01 : f32
    %1198 = arith.subf %cst_294, %cst_295 : f32
    %1199 = vector.broadcast %1198 : f32 to vector<2x4xf32>
    %1200 = arith.mulf %1199, %1197 : vector<2x4xf32>
    %1201 = math.exp %1200 : vector<2x4xf32>
    %cst_296 = arith.constant 1.000000e+00 : f32
    %1202 = vector.broadcast %cst_296 : f32 to vector<2x4xf32>
    %1203 = arith.subf %1202, %1201 : vector<2x4xf32>
    %cst_297 = arith.constant 9.99999997E-7 : f32
    %1204 = vector.broadcast %cst_297 : f32 to vector<2x4xf32>
    %1205 = arith.addf %1203, %1204 : vector<2x4xf32>
    %1206 = tpu.reciprocal %1205 : vector<2x4xf32> -> vector<2x4xf32>
    %1207 = arith.mulf %1197, %1206 : vector<2x4xf32>
    %cst_298 = arith.constant 0.000000e+00 : f32
    %1208 = vector.broadcast %cst_298 : f32 to vector<2x4xf32>
    %1209 = arith.maximumf %1207, %1208 : vector<2x4xf32>
    %1210 = vector.broadcast %cst_10 : f32 to vector<2x4xf32>
    %1211 = arith.mulf %1167, %1210 : vector<2x4xf32>
    %1212 = arith.subf %1167, %1211 : vector<2x4xf32>
    %cst_299 = arith.constant 1.000000e+00 : f32
    %1213 = vector.broadcast %cst_299 : f32 to vector<2x4xf32>
    %1214 = arith.subf %1213, %1167 : vector<2x4xf32>
    %1215 = arith.mulf %1214, %1209 : vector<2x4xf32>
    %1216 = vector.broadcast %cst_11 : f32 to vector<2x4xf32>
    %1217 = arith.mulf %1215, %1216 : vector<2x4xf32>
    %1218 = arith.addf %1212, %1217 : vector<2x4xf32>
    %1219 = vector.broadcast %cst_12 : f32 to vector<2x4xf32>
    %1220 = arith.mulf %1175, %1219 : vector<2x4xf32>
    %1221 = arith.index_cast %c23_i32 : i32 to index
    %c0_300 = arith.constant 0 : index
    %c0_301 = arith.constant 0 : index
    %1222 = vector.load %arg2[%1221, %c0_300, %c0_301] : memref<50x2x4xf32, #tpu.memory_space<vmem>>, vector<1x2x4xf32>
    %1223 = vector.shape_cast %1222 : vector<1x2x4xf32> to vector<2x4xf32>
    %1224 = vector.broadcast %cst_13 : f32 to vector<2x4xf32>
    %1225 = arith.mulf %1224, %1223 : vector<2x4xf32>
    %1226 = arith.addf %1220, %1225 : vector<2x4xf32>
    %1227 = vector.broadcast %cst_14 : f32 to vector<2x4xf32>
    %1228 = arith.cmpf ogt, %1218, %1227 : vector<2x4xf32>
    %1229 = arith.extui %1228 : vector<2x4xi1> to vector<2x4xi32>
    %1230 = arith.sitofp %1229 : vector<2x4xi32> to vector<2x4xf32>
    %1231 = arith.maximumf %1180, %1230 : vector<2x4xf32>
    %cst_302 = arith.constant 1.000000e+00 : f32
    %1232 = vector.broadcast %cst_302 : f32 to vector<2x4xf32>
    %1233 = arith.subf %1232, %1231 : vector<2x4xf32>
    %1234 = arith.addf %1183, %1233 : vector<2x4xf32>
    %c24_i32 = arith.constant 24 : i32
    %cst_303 = arith.constant dense<0.000000e+00> : vector<2xf32>
    %1235 = vector.multi_reduction <add>, %1218, %cst_303 [1] : vector<2x4xf32> to vector<2xf32>
    %1236 = vector.shape_cast %1235 : vector<2xf32> to vector<2x1xf32>
    %1237 = vector.broadcast %cst_8 : f32 to vector<2x4xf32>
    %1238 = arith.mulf %1218, %1237 : vector<2x4xf32>
    %1239 = vector.broadcast %cst_9 : f32 to vector<2x1xf32>
    %1240 = arith.mulf %1236, %1239 : vector<2x1xf32>
    %1241 = vector.broadcast %1240 : vector<2x1xf32> to vector<2x4xf32>
    %1242 = arith.addf %1238, %1241 : vector<2x4xf32>
    %1243 = arith.addf %1242, %4 : vector<2x4xf32>
    %1244 = arith.addf %1243, %1226 : vector<2x4xf32>
    %cst_304 = arith.constant 2.700000e+02 : f32
    %1245 = vector.broadcast %cst_304 : f32 to vector<2x4xf32>
    %1246 = arith.mulf %1245, %1244 : vector<2x4xf32>
    %cst_305 = arith.constant 1.080000e+02 : f32
    %1247 = vector.broadcast %cst_305 : f32 to vector<2x4xf32>
    %1248 = arith.subf %1246, %1247 : vector<2x4xf32>
    %cst_306 = arith.constant 0.000000e+00 : f32
    %cst_307 = arith.constant 1.540000e-01 : f32
    %1249 = arith.subf %cst_306, %cst_307 : f32
    %1250 = vector.broadcast %1249 : f32 to vector<2x4xf32>
    %1251 = arith.mulf %1250, %1248 : vector<2x4xf32>
    %1252 = math.exp %1251 : vector<2x4xf32>
    %cst_308 = arith.constant 1.000000e+00 : f32
    %1253 = vector.broadcast %cst_308 : f32 to vector<2x4xf32>
    %1254 = arith.subf %1253, %1252 : vector<2x4xf32>
    %cst_309 = arith.constant 9.99999997E-7 : f32
    %1255 = vector.broadcast %cst_309 : f32 to vector<2x4xf32>
    %1256 = arith.addf %1254, %1255 : vector<2x4xf32>
    %1257 = tpu.reciprocal %1256 : vector<2x4xf32> -> vector<2x4xf32>
    %1258 = arith.mulf %1248, %1257 : vector<2x4xf32>
    %cst_310 = arith.constant 0.000000e+00 : f32
    %1259 = vector.broadcast %cst_310 : f32 to vector<2x4xf32>
    %1260 = arith.maximumf %1258, %1259 : vector<2x4xf32>
    %1261 = vector.broadcast %cst_10 : f32 to vector<2x4xf32>
    %1262 = arith.mulf %1218, %1261 : vector<2x4xf32>
    %1263 = arith.subf %1218, %1262 : vector<2x4xf32>
    %cst_311 = arith.constant 1.000000e+00 : f32
    %1264 = vector.broadcast %cst_311 : f32 to vector<2x4xf32>
    %1265 = arith.subf %1264, %1218 : vector<2x4xf32>
    %1266 = arith.mulf %1265, %1260 : vector<2x4xf32>
    %1267 = vector.broadcast %cst_11 : f32 to vector<2x4xf32>
    %1268 = arith.mulf %1266, %1267 : vector<2x4xf32>
    %1269 = arith.addf %1263, %1268 : vector<2x4xf32>
    %1270 = vector.broadcast %cst_12 : f32 to vector<2x4xf32>
    %1271 = arith.mulf %1226, %1270 : vector<2x4xf32>
    %1272 = arith.index_cast %c24_i32 : i32 to index
    %c0_312 = arith.constant 0 : index
    %c0_313 = arith.constant 0 : index
    %1273 = vector.load %arg2[%1272, %c0_312, %c0_313] : memref<50x2x4xf32, #tpu.memory_space<vmem>>, vector<1x2x4xf32>
    %1274 = vector.shape_cast %1273 : vector<1x2x4xf32> to vector<2x4xf32>
    %1275 = vector.broadcast %cst_13 : f32 to vector<2x4xf32>
    %1276 = arith.mulf %1275, %1274 : vector<2x4xf32>
    %1277 = arith.addf %1271, %1276 : vector<2x4xf32>
    %1278 = vector.broadcast %cst_14 : f32 to vector<2x4xf32>
    %1279 = arith.cmpf ogt, %1269, %1278 : vector<2x4xf32>
    %1280 = arith.extui %1279 : vector<2x4xi1> to vector<2x4xi32>
    %1281 = arith.sitofp %1280 : vector<2x4xi32> to vector<2x4xf32>
    %1282 = arith.maximumf %1231, %1281 : vector<2x4xf32>
    %cst_314 = arith.constant 1.000000e+00 : f32
    %1283 = vector.broadcast %cst_314 : f32 to vector<2x4xf32>
    %1284 = arith.subf %1283, %1282 : vector<2x4xf32>
    %1285 = arith.addf %1234, %1284 : vector<2x4xf32>
    %c25_i32 = arith.constant 25 : i32
    %cst_315 = arith.constant dense<0.000000e+00> : vector<2xf32>
    %1286 = vector.multi_reduction <add>, %1269, %cst_315 [1] : vector<2x4xf32> to vector<2xf32>
    %1287 = vector.shape_cast %1286 : vector<2xf32> to vector<2x1xf32>
    %1288 = vector.broadcast %cst_8 : f32 to vector<2x4xf32>
    %1289 = arith.mulf %1269, %1288 : vector<2x4xf32>
    %1290 = vector.broadcast %cst_9 : f32 to vector<2x1xf32>
    %1291 = arith.mulf %1287, %1290 : vector<2x1xf32>
    %1292 = vector.broadcast %1291 : vector<2x1xf32> to vector<2x4xf32>
    %1293 = arith.addf %1289, %1292 : vector<2x4xf32>
    %1294 = arith.addf %1293, %4 : vector<2x4xf32>
    %1295 = arith.addf %1294, %1277 : vector<2x4xf32>
    %cst_316 = arith.constant 2.700000e+02 : f32
    %1296 = vector.broadcast %cst_316 : f32 to vector<2x4xf32>
    %1297 = arith.mulf %1296, %1295 : vector<2x4xf32>
    %cst_317 = arith.constant 1.080000e+02 : f32
    %1298 = vector.broadcast %cst_317 : f32 to vector<2x4xf32>
    %1299 = arith.subf %1297, %1298 : vector<2x4xf32>
    %cst_318 = arith.constant 0.000000e+00 : f32
    %cst_319 = arith.constant 1.540000e-01 : f32
    %1300 = arith.subf %cst_318, %cst_319 : f32
    %1301 = vector.broadcast %1300 : f32 to vector<2x4xf32>
    %1302 = arith.mulf %1301, %1299 : vector<2x4xf32>
    %1303 = math.exp %1302 : vector<2x4xf32>
    %cst_320 = arith.constant 1.000000e+00 : f32
    %1304 = vector.broadcast %cst_320 : f32 to vector<2x4xf32>
    %1305 = arith.subf %1304, %1303 : vector<2x4xf32>
    %cst_321 = arith.constant 9.99999997E-7 : f32
    %1306 = vector.broadcast %cst_321 : f32 to vector<2x4xf32>
    %1307 = arith.addf %1305, %1306 : vector<2x4xf32>
    %1308 = tpu.reciprocal %1307 : vector<2x4xf32> -> vector<2x4xf32>
    %1309 = arith.mulf %1299, %1308 : vector<2x4xf32>
    %cst_322 = arith.constant 0.000000e+00 : f32
    %1310 = vector.broadcast %cst_322 : f32 to vector<2x4xf32>
    %1311 = arith.maximumf %1309, %1310 : vector<2x4xf32>
    %1312 = vector.broadcast %cst_10 : f32 to vector<2x4xf32>
    %1313 = arith.mulf %1269, %1312 : vector<2x4xf32>
    %1314 = arith.subf %1269, %1313 : vector<2x4xf32>
    %cst_323 = arith.constant 1.000000e+00 : f32
    %1315 = vector.broadcast %cst_323 : f32 to vector<2x4xf32>
    %1316 = arith.subf %1315, %1269 : vector<2x4xf32>
    %1317 = arith.mulf %1316, %1311 : vector<2x4xf32>
    %1318 = vector.broadcast %cst_11 : f32 to vector<2x4xf32>
    %1319 = arith.mulf %1317, %1318 : vector<2x4xf32>
    %1320 = arith.addf %1314, %1319 : vector<2x4xf32>
    %1321 = vector.broadcast %cst_12 : f32 to vector<2x4xf32>
    %1322 = arith.mulf %1277, %1321 : vector<2x4xf32>
    %1323 = arith.index_cast %c25_i32 : i32 to index
    %c0_324 = arith.constant 0 : index
    %c0_325 = arith.constant 0 : index
    %1324 = vector.load %arg2[%1323, %c0_324, %c0_325] : memref<50x2x4xf32, #tpu.memory_space<vmem>>, vector<1x2x4xf32>
    %1325 = vector.shape_cast %1324 : vector<1x2x4xf32> to vector<2x4xf32>
    %1326 = vector.broadcast %cst_13 : f32 to vector<2x4xf32>
    %1327 = arith.mulf %1326, %1325 : vector<2x4xf32>
    %1328 = arith.addf %1322, %1327 : vector<2x4xf32>
    %1329 = vector.broadcast %cst_14 : f32 to vector<2x4xf32>
    %1330 = arith.cmpf ogt, %1320, %1329 : vector<2x4xf32>
    %1331 = arith.extui %1330 : vector<2x4xi1> to vector<2x4xi32>
    %1332 = arith.sitofp %1331 : vector<2x4xi32> to vector<2x4xf32>
    %1333 = arith.maximumf %1282, %1332 : vector<2x4xf32>
    %cst_326 = arith.constant 1.000000e+00 : f32
    %1334 = vector.broadcast %cst_326 : f32 to vector<2x4xf32>
    %1335 = arith.subf %1334, %1333 : vector<2x4xf32>
    %1336 = arith.addf %1285, %1335 : vector<2x4xf32>
    %c26_i32 = arith.constant 26 : i32
    %cst_327 = arith.constant dense<0.000000e+00> : vector<2xf32>
    %1337 = vector.multi_reduction <add>, %1320, %cst_327 [1] : vector<2x4xf32> to vector<2xf32>
    %1338 = vector.shape_cast %1337 : vector<2xf32> to vector<2x1xf32>
    %1339 = vector.broadcast %cst_8 : f32 to vector<2x4xf32>
    %1340 = arith.mulf %1320, %1339 : vector<2x4xf32>
    %1341 = vector.broadcast %cst_9 : f32 to vector<2x1xf32>
    %1342 = arith.mulf %1338, %1341 : vector<2x1xf32>
    %1343 = vector.broadcast %1342 : vector<2x1xf32> to vector<2x4xf32>
    %1344 = arith.addf %1340, %1343 : vector<2x4xf32>
    %1345 = arith.addf %1344, %4 : vector<2x4xf32>
    %1346 = arith.addf %1345, %1328 : vector<2x4xf32>
    %cst_328 = arith.constant 2.700000e+02 : f32
    %1347 = vector.broadcast %cst_328 : f32 to vector<2x4xf32>
    %1348 = arith.mulf %1347, %1346 : vector<2x4xf32>
    %cst_329 = arith.constant 1.080000e+02 : f32
    %1349 = vector.broadcast %cst_329 : f32 to vector<2x4xf32>
    %1350 = arith.subf %1348, %1349 : vector<2x4xf32>
    %cst_330 = arith.constant 0.000000e+00 : f32
    %cst_331 = arith.constant 1.540000e-01 : f32
    %1351 = arith.subf %cst_330, %cst_331 : f32
    %1352 = vector.broadcast %1351 : f32 to vector<2x4xf32>
    %1353 = arith.mulf %1352, %1350 : vector<2x4xf32>
    %1354 = math.exp %1353 : vector<2x4xf32>
    %cst_332 = arith.constant 1.000000e+00 : f32
    %1355 = vector.broadcast %cst_332 : f32 to vector<2x4xf32>
    %1356 = arith.subf %1355, %1354 : vector<2x4xf32>
    %cst_333 = arith.constant 9.99999997E-7 : f32
    %1357 = vector.broadcast %cst_333 : f32 to vector<2x4xf32>
    %1358 = arith.addf %1356, %1357 : vector<2x4xf32>
    %1359 = tpu.reciprocal %1358 : vector<2x4xf32> -> vector<2x4xf32>
    %1360 = arith.mulf %1350, %1359 : vector<2x4xf32>
    %cst_334 = arith.constant 0.000000e+00 : f32
    %1361 = vector.broadcast %cst_334 : f32 to vector<2x4xf32>
    %1362 = arith.maximumf %1360, %1361 : vector<2x4xf32>
    %1363 = vector.broadcast %cst_10 : f32 to vector<2x4xf32>
    %1364 = arith.mulf %1320, %1363 : vector<2x4xf32>
    %1365 = arith.subf %1320, %1364 : vector<2x4xf32>
    %cst_335 = arith.constant 1.000000e+00 : f32
    %1366 = vector.broadcast %cst_335 : f32 to vector<2x4xf32>
    %1367 = arith.subf %1366, %1320 : vector<2x4xf32>
    %1368 = arith.mulf %1367, %1362 : vector<2x4xf32>
    %1369 = vector.broadcast %cst_11 : f32 to vector<2x4xf32>
    %1370 = arith.mulf %1368, %1369 : vector<2x4xf32>
    %1371 = arith.addf %1365, %1370 : vector<2x4xf32>
    %1372 = vector.broadcast %cst_12 : f32 to vector<2x4xf32>
    %1373 = arith.mulf %1328, %1372 : vector<2x4xf32>
    %1374 = arith.index_cast %c26_i32 : i32 to index
    %c0_336 = arith.constant 0 : index
    %c0_337 = arith.constant 0 : index
    %1375 = vector.load %arg2[%1374, %c0_336, %c0_337] : memref<50x2x4xf32, #tpu.memory_space<vmem>>, vector<1x2x4xf32>
    %1376 = vector.shape_cast %1375 : vector<1x2x4xf32> to vector<2x4xf32>
    %1377 = vector.broadcast %cst_13 : f32 to vector<2x4xf32>
    %1378 = arith.mulf %1377, %1376 : vector<2x4xf32>
    %1379 = arith.addf %1373, %1378 : vector<2x4xf32>
    %1380 = vector.broadcast %cst_14 : f32 to vector<2x4xf32>
    %1381 = arith.cmpf ogt, %1371, %1380 : vector<2x4xf32>
    %1382 = arith.extui %1381 : vector<2x4xi1> to vector<2x4xi32>
    %1383 = arith.sitofp %1382 : vector<2x4xi32> to vector<2x4xf32>
    %1384 = arith.maximumf %1333, %1383 : vector<2x4xf32>
    %cst_338 = arith.constant 1.000000e+00 : f32
    %1385 = vector.broadcast %cst_338 : f32 to vector<2x4xf32>
    %1386 = arith.subf %1385, %1384 : vector<2x4xf32>
    %1387 = arith.addf %1336, %1386 : vector<2x4xf32>
    %c27_i32 = arith.constant 27 : i32
    %cst_339 = arith.constant dense<0.000000e+00> : vector<2xf32>
    %1388 = vector.multi_reduction <add>, %1371, %cst_339 [1] : vector<2x4xf32> to vector<2xf32>
    %1389 = vector.shape_cast %1388 : vector<2xf32> to vector<2x1xf32>
    %1390 = vector.broadcast %cst_8 : f32 to vector<2x4xf32>
    %1391 = arith.mulf %1371, %1390 : vector<2x4xf32>
    %1392 = vector.broadcast %cst_9 : f32 to vector<2x1xf32>
    %1393 = arith.mulf %1389, %1392 : vector<2x1xf32>
    %1394 = vector.broadcast %1393 : vector<2x1xf32> to vector<2x4xf32>
    %1395 = arith.addf %1391, %1394 : vector<2x4xf32>
    %1396 = arith.addf %1395, %4 : vector<2x4xf32>
    %1397 = arith.addf %1396, %1379 : vector<2x4xf32>
    %cst_340 = arith.constant 2.700000e+02 : f32
    %1398 = vector.broadcast %cst_340 : f32 to vector<2x4xf32>
    %1399 = arith.mulf %1398, %1397 : vector<2x4xf32>
    %cst_341 = arith.constant 1.080000e+02 : f32
    %1400 = vector.broadcast %cst_341 : f32 to vector<2x4xf32>
    %1401 = arith.subf %1399, %1400 : vector<2x4xf32>
    %cst_342 = arith.constant 0.000000e+00 : f32
    %cst_343 = arith.constant 1.540000e-01 : f32
    %1402 = arith.subf %cst_342, %cst_343 : f32
    %1403 = vector.broadcast %1402 : f32 to vector<2x4xf32>
    %1404 = arith.mulf %1403, %1401 : vector<2x4xf32>
    %1405 = math.exp %1404 : vector<2x4xf32>
    %cst_344 = arith.constant 1.000000e+00 : f32
    %1406 = vector.broadcast %cst_344 : f32 to vector<2x4xf32>
    %1407 = arith.subf %1406, %1405 : vector<2x4xf32>
    %cst_345 = arith.constant 9.99999997E-7 : f32
    %1408 = vector.broadcast %cst_345 : f32 to vector<2x4xf32>
    %1409 = arith.addf %1407, %1408 : vector<2x4xf32>
    %1410 = tpu.reciprocal %1409 : vector<2x4xf32> -> vector<2x4xf32>
    %1411 = arith.mulf %1401, %1410 : vector<2x4xf32>
    %cst_346 = arith.constant 0.000000e+00 : f32
    %1412 = vector.broadcast %cst_346 : f32 to vector<2x4xf32>
    %1413 = arith.maximumf %1411, %1412 : vector<2x4xf32>
    %1414 = vector.broadcast %cst_10 : f32 to vector<2x4xf32>
    %1415 = arith.mulf %1371, %1414 : vector<2x4xf32>
    %1416 = arith.subf %1371, %1415 : vector<2x4xf32>
    %cst_347 = arith.constant 1.000000e+00 : f32
    %1417 = vector.broadcast %cst_347 : f32 to vector<2x4xf32>
    %1418 = arith.subf %1417, %1371 : vector<2x4xf32>
    %1419 = arith.mulf %1418, %1413 : vector<2x4xf32>
    %1420 = vector.broadcast %cst_11 : f32 to vector<2x4xf32>
    %1421 = arith.mulf %1419, %1420 : vector<2x4xf32>
    %1422 = arith.addf %1416, %1421 : vector<2x4xf32>
    %1423 = vector.broadcast %cst_12 : f32 to vector<2x4xf32>
    %1424 = arith.mulf %1379, %1423 : vector<2x4xf32>
    %1425 = arith.index_cast %c27_i32 : i32 to index
    %c0_348 = arith.constant 0 : index
    %c0_349 = arith.constant 0 : index
    %1426 = vector.load %arg2[%1425, %c0_348, %c0_349] : memref<50x2x4xf32, #tpu.memory_space<vmem>>, vector<1x2x4xf32>
    %1427 = vector.shape_cast %1426 : vector<1x2x4xf32> to vector<2x4xf32>
    %1428 = vector.broadcast %cst_13 : f32 to vector<2x4xf32>
    %1429 = arith.mulf %1428, %1427 : vector<2x4xf32>
    %1430 = arith.addf %1424, %1429 : vector<2x4xf32>
    %1431 = vector.broadcast %cst_14 : f32 to vector<2x4xf32>
    %1432 = arith.cmpf ogt, %1422, %1431 : vector<2x4xf32>
    %1433 = arith.extui %1432 : vector<2x4xi1> to vector<2x4xi32>
    %1434 = arith.sitofp %1433 : vector<2x4xi32> to vector<2x4xf32>
    %1435 = arith.maximumf %1384, %1434 : vector<2x4xf32>
    %cst_350 = arith.constant 1.000000e+00 : f32
    %1436 = vector.broadcast %cst_350 : f32 to vector<2x4xf32>
    %1437 = arith.subf %1436, %1435 : vector<2x4xf32>
    %1438 = arith.addf %1387, %1437 : vector<2x4xf32>
    %c28_i32 = arith.constant 28 : i32
    %cst_351 = arith.constant dense<0.000000e+00> : vector<2xf32>
    %1439 = vector.multi_reduction <add>, %1422, %cst_351 [1] : vector<2x4xf32> to vector<2xf32>
    %1440 = vector.shape_cast %1439 : vector<2xf32> to vector<2x1xf32>
    %1441 = vector.broadcast %cst_8 : f32 to vector<2x4xf32>
    %1442 = arith.mulf %1422, %1441 : vector<2x4xf32>
    %1443 = vector.broadcast %cst_9 : f32 to vector<2x1xf32>
    %1444 = arith.mulf %1440, %1443 : vector<2x1xf32>
    %1445 = vector.broadcast %1444 : vector<2x1xf32> to vector<2x4xf32>
    %1446 = arith.addf %1442, %1445 : vector<2x4xf32>
    %1447 = arith.addf %1446, %4 : vector<2x4xf32>
    %1448 = arith.addf %1447, %1430 : vector<2x4xf32>
    %cst_352 = arith.constant 2.700000e+02 : f32
    %1449 = vector.broadcast %cst_352 : f32 to vector<2x4xf32>
    %1450 = arith.mulf %1449, %1448 : vector<2x4xf32>
    %cst_353 = arith.constant 1.080000e+02 : f32
    %1451 = vector.broadcast %cst_353 : f32 to vector<2x4xf32>
    %1452 = arith.subf %1450, %1451 : vector<2x4xf32>
    %cst_354 = arith.constant 0.000000e+00 : f32
    %cst_355 = arith.constant 1.540000e-01 : f32
    %1453 = arith.subf %cst_354, %cst_355 : f32
    %1454 = vector.broadcast %1453 : f32 to vector<2x4xf32>
    %1455 = arith.mulf %1454, %1452 : vector<2x4xf32>
    %1456 = math.exp %1455 : vector<2x4xf32>
    %cst_356 = arith.constant 1.000000e+00 : f32
    %1457 = vector.broadcast %cst_356 : f32 to vector<2x4xf32>
    %1458 = arith.subf %1457, %1456 : vector<2x4xf32>
    %cst_357 = arith.constant 9.99999997E-7 : f32
    %1459 = vector.broadcast %cst_357 : f32 to vector<2x4xf32>
    %1460 = arith.addf %1458, %1459 : vector<2x4xf32>
    %1461 = tpu.reciprocal %1460 : vector<2x4xf32> -> vector<2x4xf32>
    %1462 = arith.mulf %1452, %1461 : vector<2x4xf32>
    %cst_358 = arith.constant 0.000000e+00 : f32
    %1463 = vector.broadcast %cst_358 : f32 to vector<2x4xf32>
    %1464 = arith.maximumf %1462, %1463 : vector<2x4xf32>
    %1465 = vector.broadcast %cst_10 : f32 to vector<2x4xf32>
    %1466 = arith.mulf %1422, %1465 : vector<2x4xf32>
    %1467 = arith.subf %1422, %1466 : vector<2x4xf32>
    %cst_359 = arith.constant 1.000000e+00 : f32
    %1468 = vector.broadcast %cst_359 : f32 to vector<2x4xf32>
    %1469 = arith.subf %1468, %1422 : vector<2x4xf32>
    %1470 = arith.mulf %1469, %1464 : vector<2x4xf32>
    %1471 = vector.broadcast %cst_11 : f32 to vector<2x4xf32>
    %1472 = arith.mulf %1470, %1471 : vector<2x4xf32>
    %1473 = arith.addf %1467, %1472 : vector<2x4xf32>
    %1474 = vector.broadcast %cst_12 : f32 to vector<2x4xf32>
    %1475 = arith.mulf %1430, %1474 : vector<2x4xf32>
    %1476 = arith.index_cast %c28_i32 : i32 to index
    %c0_360 = arith.constant 0 : index
    %c0_361 = arith.constant 0 : index
    %1477 = vector.load %arg2[%1476, %c0_360, %c0_361] : memref<50x2x4xf32, #tpu.memory_space<vmem>>, vector<1x2x4xf32>
    %1478 = vector.shape_cast %1477 : vector<1x2x4xf32> to vector<2x4xf32>
    %1479 = vector.broadcast %cst_13 : f32 to vector<2x4xf32>
    %1480 = arith.mulf %1479, %1478 : vector<2x4xf32>
    %1481 = arith.addf %1475, %1480 : vector<2x4xf32>
    %1482 = vector.broadcast %cst_14 : f32 to vector<2x4xf32>
    %1483 = arith.cmpf ogt, %1473, %1482 : vector<2x4xf32>
    %1484 = arith.extui %1483 : vector<2x4xi1> to vector<2x4xi32>
    %1485 = arith.sitofp %1484 : vector<2x4xi32> to vector<2x4xf32>
    %1486 = arith.maximumf %1435, %1485 : vector<2x4xf32>
    %cst_362 = arith.constant 1.000000e+00 : f32
    %1487 = vector.broadcast %cst_362 : f32 to vector<2x4xf32>
    %1488 = arith.subf %1487, %1486 : vector<2x4xf32>
    %1489 = arith.addf %1438, %1488 : vector<2x4xf32>
    %c29_i32 = arith.constant 29 : i32
    %cst_363 = arith.constant dense<0.000000e+00> : vector<2xf32>
    %1490 = vector.multi_reduction <add>, %1473, %cst_363 [1] : vector<2x4xf32> to vector<2xf32>
    %1491 = vector.shape_cast %1490 : vector<2xf32> to vector<2x1xf32>
    %1492 = vector.broadcast %cst_8 : f32 to vector<2x4xf32>
    %1493 = arith.mulf %1473, %1492 : vector<2x4xf32>
    %1494 = vector.broadcast %cst_9 : f32 to vector<2x1xf32>
    %1495 = arith.mulf %1491, %1494 : vector<2x1xf32>
    %1496 = vector.broadcast %1495 : vector<2x1xf32> to vector<2x4xf32>
    %1497 = arith.addf %1493, %1496 : vector<2x4xf32>
    %1498 = arith.addf %1497, %4 : vector<2x4xf32>
    %1499 = arith.addf %1498, %1481 : vector<2x4xf32>
    %cst_364 = arith.constant 2.700000e+02 : f32
    %1500 = vector.broadcast %cst_364 : f32 to vector<2x4xf32>
    %1501 = arith.mulf %1500, %1499 : vector<2x4xf32>
    %cst_365 = arith.constant 1.080000e+02 : f32
    %1502 = vector.broadcast %cst_365 : f32 to vector<2x4xf32>
    %1503 = arith.subf %1501, %1502 : vector<2x4xf32>
    %cst_366 = arith.constant 0.000000e+00 : f32
    %cst_367 = arith.constant 1.540000e-01 : f32
    %1504 = arith.subf %cst_366, %cst_367 : f32
    %1505 = vector.broadcast %1504 : f32 to vector<2x4xf32>
    %1506 = arith.mulf %1505, %1503 : vector<2x4xf32>
    %1507 = math.exp %1506 : vector<2x4xf32>
    %cst_368 = arith.constant 1.000000e+00 : f32
    %1508 = vector.broadcast %cst_368 : f32 to vector<2x4xf32>
    %1509 = arith.subf %1508, %1507 : vector<2x4xf32>
    %cst_369 = arith.constant 9.99999997E-7 : f32
    %1510 = vector.broadcast %cst_369 : f32 to vector<2x4xf32>
    %1511 = arith.addf %1509, %1510 : vector<2x4xf32>
    %1512 = tpu.reciprocal %1511 : vector<2x4xf32> -> vector<2x4xf32>
    %1513 = arith.mulf %1503, %1512 : vector<2x4xf32>
    %cst_370 = arith.constant 0.000000e+00 : f32
    %1514 = vector.broadcast %cst_370 : f32 to vector<2x4xf32>
    %1515 = arith.maximumf %1513, %1514 : vector<2x4xf32>
    %1516 = vector.broadcast %cst_10 : f32 to vector<2x4xf32>
    %1517 = arith.mulf %1473, %1516 : vector<2x4xf32>
    %1518 = arith.subf %1473, %1517 : vector<2x4xf32>
    %cst_371 = arith.constant 1.000000e+00 : f32
    %1519 = vector.broadcast %cst_371 : f32 to vector<2x4xf32>
    %1520 = arith.subf %1519, %1473 : vector<2x4xf32>
    %1521 = arith.mulf %1520, %1515 : vector<2x4xf32>
    %1522 = vector.broadcast %cst_11 : f32 to vector<2x4xf32>
    %1523 = arith.mulf %1521, %1522 : vector<2x4xf32>
    %1524 = arith.addf %1518, %1523 : vector<2x4xf32>
    %1525 = vector.broadcast %cst_12 : f32 to vector<2x4xf32>
    %1526 = arith.mulf %1481, %1525 : vector<2x4xf32>
    %1527 = arith.index_cast %c29_i32 : i32 to index
    %c0_372 = arith.constant 0 : index
    %c0_373 = arith.constant 0 : index
    %1528 = vector.load %arg2[%1527, %c0_372, %c0_373] : memref<50x2x4xf32, #tpu.memory_space<vmem>>, vector<1x2x4xf32>
    %1529 = vector.shape_cast %1528 : vector<1x2x4xf32> to vector<2x4xf32>
    %1530 = vector.broadcast %cst_13 : f32 to vector<2x4xf32>
    %1531 = arith.mulf %1530, %1529 : vector<2x4xf32>
    %1532 = arith.addf %1526, %1531 : vector<2x4xf32>
    %1533 = vector.broadcast %cst_14 : f32 to vector<2x4xf32>
    %1534 = arith.cmpf ogt, %1524, %1533 : vector<2x4xf32>
    %1535 = arith.extui %1534 : vector<2x4xi1> to vector<2x4xi32>
    %1536 = arith.sitofp %1535 : vector<2x4xi32> to vector<2x4xf32>
    %1537 = arith.maximumf %1486, %1536 : vector<2x4xf32>
    %cst_374 = arith.constant 1.000000e+00 : f32
    %1538 = vector.broadcast %cst_374 : f32 to vector<2x4xf32>
    %1539 = arith.subf %1538, %1537 : vector<2x4xf32>
    %1540 = arith.addf %1489, %1539 : vector<2x4xf32>
    %c30_i32 = arith.constant 30 : i32
    %cst_375 = arith.constant dense<0.000000e+00> : vector<2xf32>
    %1541 = vector.multi_reduction <add>, %1524, %cst_375 [1] : vector<2x4xf32> to vector<2xf32>
    %1542 = vector.shape_cast %1541 : vector<2xf32> to vector<2x1xf32>
    %1543 = vector.broadcast %cst_8 : f32 to vector<2x4xf32>
    %1544 = arith.mulf %1524, %1543 : vector<2x4xf32>
    %1545 = vector.broadcast %cst_9 : f32 to vector<2x1xf32>
    %1546 = arith.mulf %1542, %1545 : vector<2x1xf32>
    %1547 = vector.broadcast %1546 : vector<2x1xf32> to vector<2x4xf32>
    %1548 = arith.addf %1544, %1547 : vector<2x4xf32>
    %1549 = arith.addf %1548, %4 : vector<2x4xf32>
    %1550 = arith.addf %1549, %1532 : vector<2x4xf32>
    %cst_376 = arith.constant 2.700000e+02 : f32
    %1551 = vector.broadcast %cst_376 : f32 to vector<2x4xf32>
    %1552 = arith.mulf %1551, %1550 : vector<2x4xf32>
    %cst_377 = arith.constant 1.080000e+02 : f32
    %1553 = vector.broadcast %cst_377 : f32 to vector<2x4xf32>
    %1554 = arith.subf %1552, %1553 : vector<2x4xf32>
    %cst_378 = arith.constant 0.000000e+00 : f32
    %cst_379 = arith.constant 1.540000e-01 : f32
    %1555 = arith.subf %cst_378, %cst_379 : f32
    %1556 = vector.broadcast %1555 : f32 to vector<2x4xf32>
    %1557 = arith.mulf %1556, %1554 : vector<2x4xf32>
    %1558 = math.exp %1557 : vector<2x4xf32>
    %cst_380 = arith.constant 1.000000e+00 : f32
    %1559 = vector.broadcast %cst_380 : f32 to vector<2x4xf32>
    %1560 = arith.subf %1559, %1558 : vector<2x4xf32>
    %cst_381 = arith.constant 9.99999997E-7 : f32
    %1561 = vector.broadcast %cst_381 : f32 to vector<2x4xf32>
    %1562 = arith.addf %1560, %1561 : vector<2x4xf32>
    %1563 = tpu.reciprocal %1562 : vector<2x4xf32> -> vector<2x4xf32>
    %1564 = arith.mulf %1554, %1563 : vector<2x4xf32>
    %cst_382 = arith.constant 0.000000e+00 : f32
    %1565 = vector.broadcast %cst_382 : f32 to vector<2x4xf32>
    %1566 = arith.maximumf %1564, %1565 : vector<2x4xf32>
    %1567 = vector.broadcast %cst_10 : f32 to vector<2x4xf32>
    %1568 = arith.mulf %1524, %1567 : vector<2x4xf32>
    %1569 = arith.subf %1524, %1568 : vector<2x4xf32>
    %cst_383 = arith.constant 1.000000e+00 : f32
    %1570 = vector.broadcast %cst_383 : f32 to vector<2x4xf32>
    %1571 = arith.subf %1570, %1524 : vector<2x4xf32>
    %1572 = arith.mulf %1571, %1566 : vector<2x4xf32>
    %1573 = vector.broadcast %cst_11 : f32 to vector<2x4xf32>
    %1574 = arith.mulf %1572, %1573 : vector<2x4xf32>
    %1575 = arith.addf %1569, %1574 : vector<2x4xf32>
    %1576 = vector.broadcast %cst_12 : f32 to vector<2x4xf32>
    %1577 = arith.mulf %1532, %1576 : vector<2x4xf32>
    %1578 = arith.index_cast %c30_i32 : i32 to index
    %c0_384 = arith.constant 0 : index
    %c0_385 = arith.constant 0 : index
    %1579 = vector.load %arg2[%1578, %c0_384, %c0_385] : memref<50x2x4xf32, #tpu.memory_space<vmem>>, vector<1x2x4xf32>
    %1580 = vector.shape_cast %1579 : vector<1x2x4xf32> to vector<2x4xf32>
    %1581 = vector.broadcast %cst_13 : f32 to vector<2x4xf32>
    %1582 = arith.mulf %1581, %1580 : vector<2x4xf32>
    %1583 = arith.addf %1577, %1582 : vector<2x4xf32>
    %1584 = vector.broadcast %cst_14 : f32 to vector<2x4xf32>
    %1585 = arith.cmpf ogt, %1575, %1584 : vector<2x4xf32>
    %1586 = arith.extui %1585 : vector<2x4xi1> to vector<2x4xi32>
    %1587 = arith.sitofp %1586 : vector<2x4xi32> to vector<2x4xf32>
    %1588 = arith.maximumf %1537, %1587 : vector<2x4xf32>
    %cst_386 = arith.constant 1.000000e+00 : f32
    %1589 = vector.broadcast %cst_386 : f32 to vector<2x4xf32>
    %1590 = arith.subf %1589, %1588 : vector<2x4xf32>
    %1591 = arith.addf %1540, %1590 : vector<2x4xf32>
    %c31_i32 = arith.constant 31 : i32
    %cst_387 = arith.constant dense<0.000000e+00> : vector<2xf32>
    %1592 = vector.multi_reduction <add>, %1575, %cst_387 [1] : vector<2x4xf32> to vector<2xf32>
    %1593 = vector.shape_cast %1592 : vector<2xf32> to vector<2x1xf32>
    %1594 = vector.broadcast %cst_8 : f32 to vector<2x4xf32>
    %1595 = arith.mulf %1575, %1594 : vector<2x4xf32>
    %1596 = vector.broadcast %cst_9 : f32 to vector<2x1xf32>
    %1597 = arith.mulf %1593, %1596 : vector<2x1xf32>
    %1598 = vector.broadcast %1597 : vector<2x1xf32> to vector<2x4xf32>
    %1599 = arith.addf %1595, %1598 : vector<2x4xf32>
    %1600 = arith.addf %1599, %4 : vector<2x4xf32>
    %1601 = arith.addf %1600, %1583 : vector<2x4xf32>
    %cst_388 = arith.constant 2.700000e+02 : f32
    %1602 = vector.broadcast %cst_388 : f32 to vector<2x4xf32>
    %1603 = arith.mulf %1602, %1601 : vector<2x4xf32>
    %cst_389 = arith.constant 1.080000e+02 : f32
    %1604 = vector.broadcast %cst_389 : f32 to vector<2x4xf32>
    %1605 = arith.subf %1603, %1604 : vector<2x4xf32>
    %cst_390 = arith.constant 0.000000e+00 : f32
    %cst_391 = arith.constant 1.540000e-01 : f32
    %1606 = arith.subf %cst_390, %cst_391 : f32
    %1607 = vector.broadcast %1606 : f32 to vector<2x4xf32>
    %1608 = arith.mulf %1607, %1605 : vector<2x4xf32>
    %1609 = math.exp %1608 : vector<2x4xf32>
    %cst_392 = arith.constant 1.000000e+00 : f32
    %1610 = vector.broadcast %cst_392 : f32 to vector<2x4xf32>
    %1611 = arith.subf %1610, %1609 : vector<2x4xf32>
    %cst_393 = arith.constant 9.99999997E-7 : f32
    %1612 = vector.broadcast %cst_393 : f32 to vector<2x4xf32>
    %1613 = arith.addf %1611, %1612 : vector<2x4xf32>
    %1614 = tpu.reciprocal %1613 : vector<2x4xf32> -> vector<2x4xf32>
    %1615 = arith.mulf %1605, %1614 : vector<2x4xf32>
    %cst_394 = arith.constant 0.000000e+00 : f32
    %1616 = vector.broadcast %cst_394 : f32 to vector<2x4xf32>
    %1617 = arith.maximumf %1615, %1616 : vector<2x4xf32>
    %1618 = vector.broadcast %cst_10 : f32 to vector<2x4xf32>
    %1619 = arith.mulf %1575, %1618 : vector<2x4xf32>
    %1620 = arith.subf %1575, %1619 : vector<2x4xf32>
    %cst_395 = arith.constant 1.000000e+00 : f32
    %1621 = vector.broadcast %cst_395 : f32 to vector<2x4xf32>
    %1622 = arith.subf %1621, %1575 : vector<2x4xf32>
    %1623 = arith.mulf %1622, %1617 : vector<2x4xf32>
    %1624 = vector.broadcast %cst_11 : f32 to vector<2x4xf32>
    %1625 = arith.mulf %1623, %1624 : vector<2x4xf32>
    %1626 = arith.addf %1620, %1625 : vector<2x4xf32>
    %1627 = vector.broadcast %cst_12 : f32 to vector<2x4xf32>
    %1628 = arith.mulf %1583, %1627 : vector<2x4xf32>
    %1629 = arith.index_cast %c31_i32 : i32 to index
    %c0_396 = arith.constant 0 : index
    %c0_397 = arith.constant 0 : index
    %1630 = vector.load %arg2[%1629, %c0_396, %c0_397] : memref<50x2x4xf32, #tpu.memory_space<vmem>>, vector<1x2x4xf32>
    %1631 = vector.shape_cast %1630 : vector<1x2x4xf32> to vector<2x4xf32>
    %1632 = vector.broadcast %cst_13 : f32 to vector<2x4xf32>
    %1633 = arith.mulf %1632, %1631 : vector<2x4xf32>
    %1634 = arith.addf %1628, %1633 : vector<2x4xf32>
    %1635 = vector.broadcast %cst_14 : f32 to vector<2x4xf32>
    %1636 = arith.cmpf ogt, %1626, %1635 : vector<2x4xf32>
    %1637 = arith.extui %1636 : vector<2x4xi1> to vector<2x4xi32>
    %1638 = arith.sitofp %1637 : vector<2x4xi32> to vector<2x4xf32>
    %1639 = arith.maximumf %1588, %1638 : vector<2x4xf32>
    %cst_398 = arith.constant 1.000000e+00 : f32
    %1640 = vector.broadcast %cst_398 : f32 to vector<2x4xf32>
    %1641 = arith.subf %1640, %1639 : vector<2x4xf32>
    %1642 = arith.addf %1591, %1641 : vector<2x4xf32>
    %c32_i32 = arith.constant 32 : i32
    %cst_399 = arith.constant dense<0.000000e+00> : vector<2xf32>
    %1643 = vector.multi_reduction <add>, %1626, %cst_399 [1] : vector<2x4xf32> to vector<2xf32>
    %1644 = vector.shape_cast %1643 : vector<2xf32> to vector<2x1xf32>
    %1645 = vector.broadcast %cst_8 : f32 to vector<2x4xf32>
    %1646 = arith.mulf %1626, %1645 : vector<2x4xf32>
    %1647 = vector.broadcast %cst_9 : f32 to vector<2x1xf32>
    %1648 = arith.mulf %1644, %1647 : vector<2x1xf32>
    %1649 = vector.broadcast %1648 : vector<2x1xf32> to vector<2x4xf32>
    %1650 = arith.addf %1646, %1649 : vector<2x4xf32>
    %1651 = arith.addf %1650, %4 : vector<2x4xf32>
    %1652 = arith.addf %1651, %1634 : vector<2x4xf32>
    %cst_400 = arith.constant 2.700000e+02 : f32
    %1653 = vector.broadcast %cst_400 : f32 to vector<2x4xf32>
    %1654 = arith.mulf %1653, %1652 : vector<2x4xf32>
    %cst_401 = arith.constant 1.080000e+02 : f32
    %1655 = vector.broadcast %cst_401 : f32 to vector<2x4xf32>
    %1656 = arith.subf %1654, %1655 : vector<2x4xf32>
    %cst_402 = arith.constant 0.000000e+00 : f32
    %cst_403 = arith.constant 1.540000e-01 : f32
    %1657 = arith.subf %cst_402, %cst_403 : f32
    %1658 = vector.broadcast %1657 : f32 to vector<2x4xf32>
    %1659 = arith.mulf %1658, %1656 : vector<2x4xf32>
    %1660 = math.exp %1659 : vector<2x4xf32>
    %cst_404 = arith.constant 1.000000e+00 : f32
    %1661 = vector.broadcast %cst_404 : f32 to vector<2x4xf32>
    %1662 = arith.subf %1661, %1660 : vector<2x4xf32>
    %cst_405 = arith.constant 9.99999997E-7 : f32
    %1663 = vector.broadcast %cst_405 : f32 to vector<2x4xf32>
    %1664 = arith.addf %1662, %1663 : vector<2x4xf32>
    %1665 = tpu.reciprocal %1664 : vector<2x4xf32> -> vector<2x4xf32>
    %1666 = arith.mulf %1656, %1665 : vector<2x4xf32>
    %cst_406 = arith.constant 0.000000e+00 : f32
    %1667 = vector.broadcast %cst_406 : f32 to vector<2x4xf32>
    %1668 = arith.maximumf %1666, %1667 : vector<2x4xf32>
    %1669 = vector.broadcast %cst_10 : f32 to vector<2x4xf32>
    %1670 = arith.mulf %1626, %1669 : vector<2x4xf32>
    %1671 = arith.subf %1626, %1670 : vector<2x4xf32>
    %cst_407 = arith.constant 1.000000e+00 : f32
    %1672 = vector.broadcast %cst_407 : f32 to vector<2x4xf32>
    %1673 = arith.subf %1672, %1626 : vector<2x4xf32>
    %1674 = arith.mulf %1673, %1668 : vector<2x4xf32>
    %1675 = vector.broadcast %cst_11 : f32 to vector<2x4xf32>
    %1676 = arith.mulf %1674, %1675 : vector<2x4xf32>
    %1677 = arith.addf %1671, %1676 : vector<2x4xf32>
    %1678 = vector.broadcast %cst_12 : f32 to vector<2x4xf32>
    %1679 = arith.mulf %1634, %1678 : vector<2x4xf32>
    %1680 = arith.index_cast %c32_i32 : i32 to index
    %c0_408 = arith.constant 0 : index
    %c0_409 = arith.constant 0 : index
    %1681 = vector.load %arg2[%1680, %c0_408, %c0_409] : memref<50x2x4xf32, #tpu.memory_space<vmem>>, vector<1x2x4xf32>
    %1682 = vector.shape_cast %1681 : vector<1x2x4xf32> to vector<2x4xf32>
    %1683 = vector.broadcast %cst_13 : f32 to vector<2x4xf32>
    %1684 = arith.mulf %1683, %1682 : vector<2x4xf32>
    %1685 = arith.addf %1679, %1684 : vector<2x4xf32>
    %1686 = vector.broadcast %cst_14 : f32 to vector<2x4xf32>
    %1687 = arith.cmpf ogt, %1677, %1686 : vector<2x4xf32>
    %1688 = arith.extui %1687 : vector<2x4xi1> to vector<2x4xi32>
    %1689 = arith.sitofp %1688 : vector<2x4xi32> to vector<2x4xf32>
    %1690 = arith.maximumf %1639, %1689 : vector<2x4xf32>
    %cst_410 = arith.constant 1.000000e+00 : f32
    %1691 = vector.broadcast %cst_410 : f32 to vector<2x4xf32>
    %1692 = arith.subf %1691, %1690 : vector<2x4xf32>
    %1693 = arith.addf %1642, %1692 : vector<2x4xf32>
    %c33_i32 = arith.constant 33 : i32
    %cst_411 = arith.constant dense<0.000000e+00> : vector<2xf32>
    %1694 = vector.multi_reduction <add>, %1677, %cst_411 [1] : vector<2x4xf32> to vector<2xf32>
    %1695 = vector.shape_cast %1694 : vector<2xf32> to vector<2x1xf32>
    %1696 = vector.broadcast %cst_8 : f32 to vector<2x4xf32>
    %1697 = arith.mulf %1677, %1696 : vector<2x4xf32>
    %1698 = vector.broadcast %cst_9 : f32 to vector<2x1xf32>
    %1699 = arith.mulf %1695, %1698 : vector<2x1xf32>
    %1700 = vector.broadcast %1699 : vector<2x1xf32> to vector<2x4xf32>
    %1701 = arith.addf %1697, %1700 : vector<2x4xf32>
    %1702 = arith.addf %1701, %4 : vector<2x4xf32>
    %1703 = arith.addf %1702, %1685 : vector<2x4xf32>
    %cst_412 = arith.constant 2.700000e+02 : f32
    %1704 = vector.broadcast %cst_412 : f32 to vector<2x4xf32>
    %1705 = arith.mulf %1704, %1703 : vector<2x4xf32>
    %cst_413 = arith.constant 1.080000e+02 : f32
    %1706 = vector.broadcast %cst_413 : f32 to vector<2x4xf32>
    %1707 = arith.subf %1705, %1706 : vector<2x4xf32>
    %cst_414 = arith.constant 0.000000e+00 : f32
    %cst_415 = arith.constant 1.540000e-01 : f32
    %1708 = arith.subf %cst_414, %cst_415 : f32
    %1709 = vector.broadcast %1708 : f32 to vector<2x4xf32>
    %1710 = arith.mulf %1709, %1707 : vector<2x4xf32>
    %1711 = math.exp %1710 : vector<2x4xf32>
    %cst_416 = arith.constant 1.000000e+00 : f32
    %1712 = vector.broadcast %cst_416 : f32 to vector<2x4xf32>
    %1713 = arith.subf %1712, %1711 : vector<2x4xf32>
    %cst_417 = arith.constant 9.99999997E-7 : f32
    %1714 = vector.broadcast %cst_417 : f32 to vector<2x4xf32>
    %1715 = arith.addf %1713, %1714 : vector<2x4xf32>
    %1716 = tpu.reciprocal %1715 : vector<2x4xf32> -> vector<2x4xf32>
    %1717 = arith.mulf %1707, %1716 : vector<2x4xf32>
    %cst_418 = arith.constant 0.000000e+00 : f32
    %1718 = vector.broadcast %cst_418 : f32 to vector<2x4xf32>
    %1719 = arith.maximumf %1717, %1718 : vector<2x4xf32>
    %1720 = vector.broadcast %cst_10 : f32 to vector<2x4xf32>
    %1721 = arith.mulf %1677, %1720 : vector<2x4xf32>
    %1722 = arith.subf %1677, %1721 : vector<2x4xf32>
    %cst_419 = arith.constant 1.000000e+00 : f32
    %1723 = vector.broadcast %cst_419 : f32 to vector<2x4xf32>
    %1724 = arith.subf %1723, %1677 : vector<2x4xf32>
    %1725 = arith.mulf %1724, %1719 : vector<2x4xf32>
    %1726 = vector.broadcast %cst_11 : f32 to vector<2x4xf32>
    %1727 = arith.mulf %1725, %1726 : vector<2x4xf32>
    %1728 = arith.addf %1722, %1727 : vector<2x4xf32>
    %1729 = vector.broadcast %cst_12 : f32 to vector<2x4xf32>
    %1730 = arith.mulf %1685, %1729 : vector<2x4xf32>
    %1731 = arith.index_cast %c33_i32 : i32 to index
    %c0_420 = arith.constant 0 : index
    %c0_421 = arith.constant 0 : index
    %1732 = vector.load %arg2[%1731, %c0_420, %c0_421] : memref<50x2x4xf32, #tpu.memory_space<vmem>>, vector<1x2x4xf32>
    %1733 = vector.shape_cast %1732 : vector<1x2x4xf32> to vector<2x4xf32>
    %1734 = vector.broadcast %cst_13 : f32 to vector<2x4xf32>
    %1735 = arith.mulf %1734, %1733 : vector<2x4xf32>
    %1736 = arith.addf %1730, %1735 : vector<2x4xf32>
    %1737 = vector.broadcast %cst_14 : f32 to vector<2x4xf32>
    %1738 = arith.cmpf ogt, %1728, %1737 : vector<2x4xf32>
    %1739 = arith.extui %1738 : vector<2x4xi1> to vector<2x4xi32>
    %1740 = arith.sitofp %1739 : vector<2x4xi32> to vector<2x4xf32>
    %1741 = arith.maximumf %1690, %1740 : vector<2x4xf32>
    %cst_422 = arith.constant 1.000000e+00 : f32
    %1742 = vector.broadcast %cst_422 : f32 to vector<2x4xf32>
    %1743 = arith.subf %1742, %1741 : vector<2x4xf32>
    %1744 = arith.addf %1693, %1743 : vector<2x4xf32>
    %c34_i32 = arith.constant 34 : i32
    %cst_423 = arith.constant dense<0.000000e+00> : vector<2xf32>
    %1745 = vector.multi_reduction <add>, %1728, %cst_423 [1] : vector<2x4xf32> to vector<2xf32>
    %1746 = vector.shape_cast %1745 : vector<2xf32> to vector<2x1xf32>
    %1747 = vector.broadcast %cst_8 : f32 to vector<2x4xf32>
    %1748 = arith.mulf %1728, %1747 : vector<2x4xf32>
    %1749 = vector.broadcast %cst_9 : f32 to vector<2x1xf32>
    %1750 = arith.mulf %1746, %1749 : vector<2x1xf32>
    %1751 = vector.broadcast %1750 : vector<2x1xf32> to vector<2x4xf32>
    %1752 = arith.addf %1748, %1751 : vector<2x4xf32>
    %1753 = arith.addf %1752, %4 : vector<2x4xf32>
    %1754 = arith.addf %1753, %1736 : vector<2x4xf32>
    %cst_424 = arith.constant 2.700000e+02 : f32
    %1755 = vector.broadcast %cst_424 : f32 to vector<2x4xf32>
    %1756 = arith.mulf %1755, %1754 : vector<2x4xf32>
    %cst_425 = arith.constant 1.080000e+02 : f32
    %1757 = vector.broadcast %cst_425 : f32 to vector<2x4xf32>
    %1758 = arith.subf %1756, %1757 : vector<2x4xf32>
    %cst_426 = arith.constant 0.000000e+00 : f32
    %cst_427 = arith.constant 1.540000e-01 : f32
    %1759 = arith.subf %cst_426, %cst_427 : f32
    %1760 = vector.broadcast %1759 : f32 to vector<2x4xf32>
    %1761 = arith.mulf %1760, %1758 : vector<2x4xf32>
    %1762 = math.exp %1761 : vector<2x4xf32>
    %cst_428 = arith.constant 1.000000e+00 : f32
    %1763 = vector.broadcast %cst_428 : f32 to vector<2x4xf32>
    %1764 = arith.subf %1763, %1762 : vector<2x4xf32>
    %cst_429 = arith.constant 9.99999997E-7 : f32
    %1765 = vector.broadcast %cst_429 : f32 to vector<2x4xf32>
    %1766 = arith.addf %1764, %1765 : vector<2x4xf32>
    %1767 = tpu.reciprocal %1766 : vector<2x4xf32> -> vector<2x4xf32>
    %1768 = arith.mulf %1758, %1767 : vector<2x4xf32>
    %cst_430 = arith.constant 0.000000e+00 : f32
    %1769 = vector.broadcast %cst_430 : f32 to vector<2x4xf32>
    %1770 = arith.maximumf %1768, %1769 : vector<2x4xf32>
    %1771 = vector.broadcast %cst_10 : f32 to vector<2x4xf32>
    %1772 = arith.mulf %1728, %1771 : vector<2x4xf32>
    %1773 = arith.subf %1728, %1772 : vector<2x4xf32>
    %cst_431 = arith.constant 1.000000e+00 : f32
    %1774 = vector.broadcast %cst_431 : f32 to vector<2x4xf32>
    %1775 = arith.subf %1774, %1728 : vector<2x4xf32>
    %1776 = arith.mulf %1775, %1770 : vector<2x4xf32>
    %1777 = vector.broadcast %cst_11 : f32 to vector<2x4xf32>
    %1778 = arith.mulf %1776, %1777 : vector<2x4xf32>
    %1779 = arith.addf %1773, %1778 : vector<2x4xf32>
    %1780 = vector.broadcast %cst_12 : f32 to vector<2x4xf32>
    %1781 = arith.mulf %1736, %1780 : vector<2x4xf32>
    %1782 = arith.index_cast %c34_i32 : i32 to index
    %c0_432 = arith.constant 0 : index
    %c0_433 = arith.constant 0 : index
    %1783 = vector.load %arg2[%1782, %c0_432, %c0_433] : memref<50x2x4xf32, #tpu.memory_space<vmem>>, vector<1x2x4xf32>
    %1784 = vector.shape_cast %1783 : vector<1x2x4xf32> to vector<2x4xf32>
    %1785 = vector.broadcast %cst_13 : f32 to vector<2x4xf32>
    %1786 = arith.mulf %1785, %1784 : vector<2x4xf32>
    %1787 = arith.addf %1781, %1786 : vector<2x4xf32>
    %1788 = vector.broadcast %cst_14 : f32 to vector<2x4xf32>
    %1789 = arith.cmpf ogt, %1779, %1788 : vector<2x4xf32>
    %1790 = arith.extui %1789 : vector<2x4xi1> to vector<2x4xi32>
    %1791 = arith.sitofp %1790 : vector<2x4xi32> to vector<2x4xf32>
    %1792 = arith.maximumf %1741, %1791 : vector<2x4xf32>
    %cst_434 = arith.constant 1.000000e+00 : f32
    %1793 = vector.broadcast %cst_434 : f32 to vector<2x4xf32>
    %1794 = arith.subf %1793, %1792 : vector<2x4xf32>
    %1795 = arith.addf %1744, %1794 : vector<2x4xf32>
    %c35_i32 = arith.constant 35 : i32
    %cst_435 = arith.constant dense<0.000000e+00> : vector<2xf32>
    %1796 = vector.multi_reduction <add>, %1779, %cst_435 [1] : vector<2x4xf32> to vector<2xf32>
    %1797 = vector.shape_cast %1796 : vector<2xf32> to vector<2x1xf32>
    %1798 = vector.broadcast %cst_8 : f32 to vector<2x4xf32>
    %1799 = arith.mulf %1779, %1798 : vector<2x4xf32>
    %1800 = vector.broadcast %cst_9 : f32 to vector<2x1xf32>
    %1801 = arith.mulf %1797, %1800 : vector<2x1xf32>
    %1802 = vector.broadcast %1801 : vector<2x1xf32> to vector<2x4xf32>
    %1803 = arith.addf %1799, %1802 : vector<2x4xf32>
    %1804 = arith.addf %1803, %4 : vector<2x4xf32>
    %1805 = arith.addf %1804, %1787 : vector<2x4xf32>
    %cst_436 = arith.constant 2.700000e+02 : f32
    %1806 = vector.broadcast %cst_436 : f32 to vector<2x4xf32>
    %1807 = arith.mulf %1806, %1805 : vector<2x4xf32>
    %cst_437 = arith.constant 1.080000e+02 : f32
    %1808 = vector.broadcast %cst_437 : f32 to vector<2x4xf32>
    %1809 = arith.subf %1807, %1808 : vector<2x4xf32>
    %cst_438 = arith.constant 0.000000e+00 : f32
    %cst_439 = arith.constant 1.540000e-01 : f32
    %1810 = arith.subf %cst_438, %cst_439 : f32
    %1811 = vector.broadcast %1810 : f32 to vector<2x4xf32>
    %1812 = arith.mulf %1811, %1809 : vector<2x4xf32>
    %1813 = math.exp %1812 : vector<2x4xf32>
    %cst_440 = arith.constant 1.000000e+00 : f32
    %1814 = vector.broadcast %cst_440 : f32 to vector<2x4xf32>
    %1815 = arith.subf %1814, %1813 : vector<2x4xf32>
    %cst_441 = arith.constant 9.99999997E-7 : f32
    %1816 = vector.broadcast %cst_441 : f32 to vector<2x4xf32>
    %1817 = arith.addf %1815, %1816 : vector<2x4xf32>
    %1818 = tpu.reciprocal %1817 : vector<2x4xf32> -> vector<2x4xf32>
    %1819 = arith.mulf %1809, %1818 : vector<2x4xf32>
    %cst_442 = arith.constant 0.000000e+00 : f32
    %1820 = vector.broadcast %cst_442 : f32 to vector<2x4xf32>
    %1821 = arith.maximumf %1819, %1820 : vector<2x4xf32>
    %1822 = vector.broadcast %cst_10 : f32 to vector<2x4xf32>
    %1823 = arith.mulf %1779, %1822 : vector<2x4xf32>
    %1824 = arith.subf %1779, %1823 : vector<2x4xf32>
    %cst_443 = arith.constant 1.000000e+00 : f32
    %1825 = vector.broadcast %cst_443 : f32 to vector<2x4xf32>
    %1826 = arith.subf %1825, %1779 : vector<2x4xf32>
    %1827 = arith.mulf %1826, %1821 : vector<2x4xf32>
    %1828 = vector.broadcast %cst_11 : f32 to vector<2x4xf32>
    %1829 = arith.mulf %1827, %1828 : vector<2x4xf32>
    %1830 = arith.addf %1824, %1829 : vector<2x4xf32>
    %1831 = vector.broadcast %cst_12 : f32 to vector<2x4xf32>
    %1832 = arith.mulf %1787, %1831 : vector<2x4xf32>
    %1833 = arith.index_cast %c35_i32 : i32 to index
    %c0_444 = arith.constant 0 : index
    %c0_445 = arith.constant 0 : index
    %1834 = vector.load %arg2[%1833, %c0_444, %c0_445] : memref<50x2x4xf32, #tpu.memory_space<vmem>>, vector<1x2x4xf32>
    %1835 = vector.shape_cast %1834 : vector<1x2x4xf32> to vector<2x4xf32>
    %1836 = vector.broadcast %cst_13 : f32 to vector<2x4xf32>
    %1837 = arith.mulf %1836, %1835 : vector<2x4xf32>
    %1838 = arith.addf %1832, %1837 : vector<2x4xf32>
    %1839 = vector.broadcast %cst_14 : f32 to vector<2x4xf32>
    %1840 = arith.cmpf ogt, %1830, %1839 : vector<2x4xf32>
    %1841 = arith.extui %1840 : vector<2x4xi1> to vector<2x4xi32>
    %1842 = arith.sitofp %1841 : vector<2x4xi32> to vector<2x4xf32>
    %1843 = arith.maximumf %1792, %1842 : vector<2x4xf32>
    %cst_446 = arith.constant 1.000000e+00 : f32
    %1844 = vector.broadcast %cst_446 : f32 to vector<2x4xf32>
    %1845 = arith.subf %1844, %1843 : vector<2x4xf32>
    %1846 = arith.addf %1795, %1845 : vector<2x4xf32>
    %c36_i32 = arith.constant 36 : i32
    %cst_447 = arith.constant dense<0.000000e+00> : vector<2xf32>
    %1847 = vector.multi_reduction <add>, %1830, %cst_447 [1] : vector<2x4xf32> to vector<2xf32>
    %1848 = vector.shape_cast %1847 : vector<2xf32> to vector<2x1xf32>
    %1849 = vector.broadcast %cst_8 : f32 to vector<2x4xf32>
    %1850 = arith.mulf %1830, %1849 : vector<2x4xf32>
    %1851 = vector.broadcast %cst_9 : f32 to vector<2x1xf32>
    %1852 = arith.mulf %1848, %1851 : vector<2x1xf32>
    %1853 = vector.broadcast %1852 : vector<2x1xf32> to vector<2x4xf32>
    %1854 = arith.addf %1850, %1853 : vector<2x4xf32>
    %1855 = arith.addf %1854, %4 : vector<2x4xf32>
    %1856 = arith.addf %1855, %1838 : vector<2x4xf32>
    %cst_448 = arith.constant 2.700000e+02 : f32
    %1857 = vector.broadcast %cst_448 : f32 to vector<2x4xf32>
    %1858 = arith.mulf %1857, %1856 : vector<2x4xf32>
    %cst_449 = arith.constant 1.080000e+02 : f32
    %1859 = vector.broadcast %cst_449 : f32 to vector<2x4xf32>
    %1860 = arith.subf %1858, %1859 : vector<2x4xf32>
    %cst_450 = arith.constant 0.000000e+00 : f32
    %cst_451 = arith.constant 1.540000e-01 : f32
    %1861 = arith.subf %cst_450, %cst_451 : f32
    %1862 = vector.broadcast %1861 : f32 to vector<2x4xf32>
    %1863 = arith.mulf %1862, %1860 : vector<2x4xf32>
    %1864 = math.exp %1863 : vector<2x4xf32>
    %cst_452 = arith.constant 1.000000e+00 : f32
    %1865 = vector.broadcast %cst_452 : f32 to vector<2x4xf32>
    %1866 = arith.subf %1865, %1864 : vector<2x4xf32>
    %cst_453 = arith.constant 9.99999997E-7 : f32
    %1867 = vector.broadcast %cst_453 : f32 to vector<2x4xf32>
    %1868 = arith.addf %1866, %1867 : vector<2x4xf32>
    %1869 = tpu.reciprocal %1868 : vector<2x4xf32> -> vector<2x4xf32>
    %1870 = arith.mulf %1860, %1869 : vector<2x4xf32>
    %cst_454 = arith.constant 0.000000e+00 : f32
    %1871 = vector.broadcast %cst_454 : f32 to vector<2x4xf32>
    %1872 = arith.maximumf %1870, %1871 : vector<2x4xf32>
    %1873 = vector.broadcast %cst_10 : f32 to vector<2x4xf32>
    %1874 = arith.mulf %1830, %1873 : vector<2x4xf32>
    %1875 = arith.subf %1830, %1874 : vector<2x4xf32>
    %cst_455 = arith.constant 1.000000e+00 : f32
    %1876 = vector.broadcast %cst_455 : f32 to vector<2x4xf32>
    %1877 = arith.subf %1876, %1830 : vector<2x4xf32>
    %1878 = arith.mulf %1877, %1872 : vector<2x4xf32>
    %1879 = vector.broadcast %cst_11 : f32 to vector<2x4xf32>
    %1880 = arith.mulf %1878, %1879 : vector<2x4xf32>
    %1881 = arith.addf %1875, %1880 : vector<2x4xf32>
    %1882 = vector.broadcast %cst_12 : f32 to vector<2x4xf32>
    %1883 = arith.mulf %1838, %1882 : vector<2x4xf32>
    %1884 = arith.index_cast %c36_i32 : i32 to index
    %c0_456 = arith.constant 0 : index
    %c0_457 = arith.constant 0 : index
    %1885 = vector.load %arg2[%1884, %c0_456, %c0_457] : memref<50x2x4xf32, #tpu.memory_space<vmem>>, vector<1x2x4xf32>
    %1886 = vector.shape_cast %1885 : vector<1x2x4xf32> to vector<2x4xf32>
    %1887 = vector.broadcast %cst_13 : f32 to vector<2x4xf32>
    %1888 = arith.mulf %1887, %1886 : vector<2x4xf32>
    %1889 = arith.addf %1883, %1888 : vector<2x4xf32>
    %1890 = vector.broadcast %cst_14 : f32 to vector<2x4xf32>
    %1891 = arith.cmpf ogt, %1881, %1890 : vector<2x4xf32>
    %1892 = arith.extui %1891 : vector<2x4xi1> to vector<2x4xi32>
    %1893 = arith.sitofp %1892 : vector<2x4xi32> to vector<2x4xf32>
    %1894 = arith.maximumf %1843, %1893 : vector<2x4xf32>
    %cst_458 = arith.constant 1.000000e+00 : f32
    %1895 = vector.broadcast %cst_458 : f32 to vector<2x4xf32>
    %1896 = arith.subf %1895, %1894 : vector<2x4xf32>
    %1897 = arith.addf %1846, %1896 : vector<2x4xf32>
    %c37_i32 = arith.constant 37 : i32
    %cst_459 = arith.constant dense<0.000000e+00> : vector<2xf32>
    %1898 = vector.multi_reduction <add>, %1881, %cst_459 [1] : vector<2x4xf32> to vector<2xf32>
    %1899 = vector.shape_cast %1898 : vector<2xf32> to vector<2x1xf32>
    %1900 = vector.broadcast %cst_8 : f32 to vector<2x4xf32>
    %1901 = arith.mulf %1881, %1900 : vector<2x4xf32>
    %1902 = vector.broadcast %cst_9 : f32 to vector<2x1xf32>
    %1903 = arith.mulf %1899, %1902 : vector<2x1xf32>
    %1904 = vector.broadcast %1903 : vector<2x1xf32> to vector<2x4xf32>
    %1905 = arith.addf %1901, %1904 : vector<2x4xf32>
    %1906 = arith.addf %1905, %4 : vector<2x4xf32>
    %1907 = arith.addf %1906, %1889 : vector<2x4xf32>
    %cst_460 = arith.constant 2.700000e+02 : f32
    %1908 = vector.broadcast %cst_460 : f32 to vector<2x4xf32>
    %1909 = arith.mulf %1908, %1907 : vector<2x4xf32>
    %cst_461 = arith.constant 1.080000e+02 : f32
    %1910 = vector.broadcast %cst_461 : f32 to vector<2x4xf32>
    %1911 = arith.subf %1909, %1910 : vector<2x4xf32>
    %cst_462 = arith.constant 0.000000e+00 : f32
    %cst_463 = arith.constant 1.540000e-01 : f32
    %1912 = arith.subf %cst_462, %cst_463 : f32
    %1913 = vector.broadcast %1912 : f32 to vector<2x4xf32>
    %1914 = arith.mulf %1913, %1911 : vector<2x4xf32>
    %1915 = math.exp %1914 : vector<2x4xf32>
    %cst_464 = arith.constant 1.000000e+00 : f32
    %1916 = vector.broadcast %cst_464 : f32 to vector<2x4xf32>
    %1917 = arith.subf %1916, %1915 : vector<2x4xf32>
    %cst_465 = arith.constant 9.99999997E-7 : f32
    %1918 = vector.broadcast %cst_465 : f32 to vector<2x4xf32>
    %1919 = arith.addf %1917, %1918 : vector<2x4xf32>
    %1920 = tpu.reciprocal %1919 : vector<2x4xf32> -> vector<2x4xf32>
    %1921 = arith.mulf %1911, %1920 : vector<2x4xf32>
    %cst_466 = arith.constant 0.000000e+00 : f32
    %1922 = vector.broadcast %cst_466 : f32 to vector<2x4xf32>
    %1923 = arith.maximumf %1921, %1922 : vector<2x4xf32>
    %1924 = vector.broadcast %cst_10 : f32 to vector<2x4xf32>
    %1925 = arith.mulf %1881, %1924 : vector<2x4xf32>
    %1926 = arith.subf %1881, %1925 : vector<2x4xf32>
    %cst_467 = arith.constant 1.000000e+00 : f32
    %1927 = vector.broadcast %cst_467 : f32 to vector<2x4xf32>
    %1928 = arith.subf %1927, %1881 : vector<2x4xf32>
    %1929 = arith.mulf %1928, %1923 : vector<2x4xf32>
    %1930 = vector.broadcast %cst_11 : f32 to vector<2x4xf32>
    %1931 = arith.mulf %1929, %1930 : vector<2x4xf32>
    %1932 = arith.addf %1926, %1931 : vector<2x4xf32>
    %1933 = vector.broadcast %cst_12 : f32 to vector<2x4xf32>
    %1934 = arith.mulf %1889, %1933 : vector<2x4xf32>
    %1935 = arith.index_cast %c37_i32 : i32 to index
    %c0_468 = arith.constant 0 : index
    %c0_469 = arith.constant 0 : index
    %1936 = vector.load %arg2[%1935, %c0_468, %c0_469] : memref<50x2x4xf32, #tpu.memory_space<vmem>>, vector<1x2x4xf32>
    %1937 = vector.shape_cast %1936 : vector<1x2x4xf32> to vector<2x4xf32>
    %1938 = vector.broadcast %cst_13 : f32 to vector<2x4xf32>
    %1939 = arith.mulf %1938, %1937 : vector<2x4xf32>
    %1940 = arith.addf %1934, %1939 : vector<2x4xf32>
    %1941 = vector.broadcast %cst_14 : f32 to vector<2x4xf32>
    %1942 = arith.cmpf ogt, %1932, %1941 : vector<2x4xf32>
    %1943 = arith.extui %1942 : vector<2x4xi1> to vector<2x4xi32>
    %1944 = arith.sitofp %1943 : vector<2x4xi32> to vector<2x4xf32>
    %1945 = arith.maximumf %1894, %1944 : vector<2x4xf32>
    %cst_470 = arith.constant 1.000000e+00 : f32
    %1946 = vector.broadcast %cst_470 : f32 to vector<2x4xf32>
    %1947 = arith.subf %1946, %1945 : vector<2x4xf32>
    %1948 = arith.addf %1897, %1947 : vector<2x4xf32>
    %c38_i32 = arith.constant 38 : i32
    %cst_471 = arith.constant dense<0.000000e+00> : vector<2xf32>
    %1949 = vector.multi_reduction <add>, %1932, %cst_471 [1] : vector<2x4xf32> to vector<2xf32>
    %1950 = vector.shape_cast %1949 : vector<2xf32> to vector<2x1xf32>
    %1951 = vector.broadcast %cst_8 : f32 to vector<2x4xf32>
    %1952 = arith.mulf %1932, %1951 : vector<2x4xf32>
    %1953 = vector.broadcast %cst_9 : f32 to vector<2x1xf32>
    %1954 = arith.mulf %1950, %1953 : vector<2x1xf32>
    %1955 = vector.broadcast %1954 : vector<2x1xf32> to vector<2x4xf32>
    %1956 = arith.addf %1952, %1955 : vector<2x4xf32>
    %1957 = arith.addf %1956, %4 : vector<2x4xf32>
    %1958 = arith.addf %1957, %1940 : vector<2x4xf32>
    %cst_472 = arith.constant 2.700000e+02 : f32
    %1959 = vector.broadcast %cst_472 : f32 to vector<2x4xf32>
    %1960 = arith.mulf %1959, %1958 : vector<2x4xf32>
    %cst_473 = arith.constant 1.080000e+02 : f32
    %1961 = vector.broadcast %cst_473 : f32 to vector<2x4xf32>
    %1962 = arith.subf %1960, %1961 : vector<2x4xf32>
    %cst_474 = arith.constant 0.000000e+00 : f32
    %cst_475 = arith.constant 1.540000e-01 : f32
    %1963 = arith.subf %cst_474, %cst_475 : f32
    %1964 = vector.broadcast %1963 : f32 to vector<2x4xf32>
    %1965 = arith.mulf %1964, %1962 : vector<2x4xf32>
    %1966 = math.exp %1965 : vector<2x4xf32>
    %cst_476 = arith.constant 1.000000e+00 : f32
    %1967 = vector.broadcast %cst_476 : f32 to vector<2x4xf32>
    %1968 = arith.subf %1967, %1966 : vector<2x4xf32>
    %cst_477 = arith.constant 9.99999997E-7 : f32
    %1969 = vector.broadcast %cst_477 : f32 to vector<2x4xf32>
    %1970 = arith.addf %1968, %1969 : vector<2x4xf32>
    %1971 = tpu.reciprocal %1970 : vector<2x4xf32> -> vector<2x4xf32>
    %1972 = arith.mulf %1962, %1971 : vector<2x4xf32>
    %cst_478 = arith.constant 0.000000e+00 : f32
    %1973 = vector.broadcast %cst_478 : f32 to vector<2x4xf32>
    %1974 = arith.maximumf %1972, %1973 : vector<2x4xf32>
    %1975 = vector.broadcast %cst_10 : f32 to vector<2x4xf32>
    %1976 = arith.mulf %1932, %1975 : vector<2x4xf32>
    %1977 = arith.subf %1932, %1976 : vector<2x4xf32>
    %cst_479 = arith.constant 1.000000e+00 : f32
    %1978 = vector.broadcast %cst_479 : f32 to vector<2x4xf32>
    %1979 = arith.subf %1978, %1932 : vector<2x4xf32>
    %1980 = arith.mulf %1979, %1974 : vector<2x4xf32>
    %1981 = vector.broadcast %cst_11 : f32 to vector<2x4xf32>
    %1982 = arith.mulf %1980, %1981 : vector<2x4xf32>
    %1983 = arith.addf %1977, %1982 : vector<2x4xf32>
    %1984 = vector.broadcast %cst_12 : f32 to vector<2x4xf32>
    %1985 = arith.mulf %1940, %1984 : vector<2x4xf32>
    %1986 = arith.index_cast %c38_i32 : i32 to index
    %c0_480 = arith.constant 0 : index
    %c0_481 = arith.constant 0 : index
    %1987 = vector.load %arg2[%1986, %c0_480, %c0_481] : memref<50x2x4xf32, #tpu.memory_space<vmem>>, vector<1x2x4xf32>
    %1988 = vector.shape_cast %1987 : vector<1x2x4xf32> to vector<2x4xf32>
    %1989 = vector.broadcast %cst_13 : f32 to vector<2x4xf32>
    %1990 = arith.mulf %1989, %1988 : vector<2x4xf32>
    %1991 = arith.addf %1985, %1990 : vector<2x4xf32>
    %1992 = vector.broadcast %cst_14 : f32 to vector<2x4xf32>
    %1993 = arith.cmpf ogt, %1983, %1992 : vector<2x4xf32>
    %1994 = arith.extui %1993 : vector<2x4xi1> to vector<2x4xi32>
    %1995 = arith.sitofp %1994 : vector<2x4xi32> to vector<2x4xf32>
    %1996 = arith.maximumf %1945, %1995 : vector<2x4xf32>
    %cst_482 = arith.constant 1.000000e+00 : f32
    %1997 = vector.broadcast %cst_482 : f32 to vector<2x4xf32>
    %1998 = arith.subf %1997, %1996 : vector<2x4xf32>
    %1999 = arith.addf %1948, %1998 : vector<2x4xf32>
    %c39_i32 = arith.constant 39 : i32
    %cst_483 = arith.constant dense<0.000000e+00> : vector<2xf32>
    %2000 = vector.multi_reduction <add>, %1983, %cst_483 [1] : vector<2x4xf32> to vector<2xf32>
    %2001 = vector.shape_cast %2000 : vector<2xf32> to vector<2x1xf32>
    %2002 = vector.broadcast %cst_8 : f32 to vector<2x4xf32>
    %2003 = arith.mulf %1983, %2002 : vector<2x4xf32>
    %2004 = vector.broadcast %cst_9 : f32 to vector<2x1xf32>
    %2005 = arith.mulf %2001, %2004 : vector<2x1xf32>
    %2006 = vector.broadcast %2005 : vector<2x1xf32> to vector<2x4xf32>
    %2007 = arith.addf %2003, %2006 : vector<2x4xf32>
    %2008 = arith.addf %2007, %4 : vector<2x4xf32>
    %2009 = arith.addf %2008, %1991 : vector<2x4xf32>
    %cst_484 = arith.constant 2.700000e+02 : f32
    %2010 = vector.broadcast %cst_484 : f32 to vector<2x4xf32>
    %2011 = arith.mulf %2010, %2009 : vector<2x4xf32>
    %cst_485 = arith.constant 1.080000e+02 : f32
    %2012 = vector.broadcast %cst_485 : f32 to vector<2x4xf32>
    %2013 = arith.subf %2011, %2012 : vector<2x4xf32>
    %cst_486 = arith.constant 0.000000e+00 : f32
    %cst_487 = arith.constant 1.540000e-01 : f32
    %2014 = arith.subf %cst_486, %cst_487 : f32
    %2015 = vector.broadcast %2014 : f32 to vector<2x4xf32>
    %2016 = arith.mulf %2015, %2013 : vector<2x4xf32>
    %2017 = math.exp %2016 : vector<2x4xf32>
    %cst_488 = arith.constant 1.000000e+00 : f32
    %2018 = vector.broadcast %cst_488 : f32 to vector<2x4xf32>
    %2019 = arith.subf %2018, %2017 : vector<2x4xf32>
    %cst_489 = arith.constant 9.99999997E-7 : f32
    %2020 = vector.broadcast %cst_489 : f32 to vector<2x4xf32>
    %2021 = arith.addf %2019, %2020 : vector<2x4xf32>
    %2022 = tpu.reciprocal %2021 : vector<2x4xf32> -> vector<2x4xf32>
    %2023 = arith.mulf %2013, %2022 : vector<2x4xf32>
    %cst_490 = arith.constant 0.000000e+00 : f32
    %2024 = vector.broadcast %cst_490 : f32 to vector<2x4xf32>
    %2025 = arith.maximumf %2023, %2024 : vector<2x4xf32>
    %2026 = vector.broadcast %cst_10 : f32 to vector<2x4xf32>
    %2027 = arith.mulf %1983, %2026 : vector<2x4xf32>
    %2028 = arith.subf %1983, %2027 : vector<2x4xf32>
    %cst_491 = arith.constant 1.000000e+00 : f32
    %2029 = vector.broadcast %cst_491 : f32 to vector<2x4xf32>
    %2030 = arith.subf %2029, %1983 : vector<2x4xf32>
    %2031 = arith.mulf %2030, %2025 : vector<2x4xf32>
    %2032 = vector.broadcast %cst_11 : f32 to vector<2x4xf32>
    %2033 = arith.mulf %2031, %2032 : vector<2x4xf32>
    %2034 = arith.addf %2028, %2033 : vector<2x4xf32>
    %2035 = vector.broadcast %cst_12 : f32 to vector<2x4xf32>
    %2036 = arith.mulf %1991, %2035 : vector<2x4xf32>
    %2037 = arith.index_cast %c39_i32 : i32 to index
    %c0_492 = arith.constant 0 : index
    %c0_493 = arith.constant 0 : index
    %2038 = vector.load %arg2[%2037, %c0_492, %c0_493] : memref<50x2x4xf32, #tpu.memory_space<vmem>>, vector<1x2x4xf32>
    %2039 = vector.shape_cast %2038 : vector<1x2x4xf32> to vector<2x4xf32>
    %2040 = vector.broadcast %cst_13 : f32 to vector<2x4xf32>
    %2041 = arith.mulf %2040, %2039 : vector<2x4xf32>
    %2042 = arith.addf %2036, %2041 : vector<2x4xf32>
    %2043 = vector.broadcast %cst_14 : f32 to vector<2x4xf32>
    %2044 = arith.cmpf ogt, %2034, %2043 : vector<2x4xf32>
    %2045 = arith.extui %2044 : vector<2x4xi1> to vector<2x4xi32>
    %2046 = arith.sitofp %2045 : vector<2x4xi32> to vector<2x4xf32>
    %2047 = arith.maximumf %1996, %2046 : vector<2x4xf32>
    %cst_494 = arith.constant 1.000000e+00 : f32
    %2048 = vector.broadcast %cst_494 : f32 to vector<2x4xf32>
    %2049 = arith.subf %2048, %2047 : vector<2x4xf32>
    %2050 = arith.addf %1999, %2049 : vector<2x4xf32>
    %c40_i32 = arith.constant 40 : i32
    %cst_495 = arith.constant dense<0.000000e+00> : vector<2xf32>
    %2051 = vector.multi_reduction <add>, %2034, %cst_495 [1] : vector<2x4xf32> to vector<2xf32>
    %2052 = vector.shape_cast %2051 : vector<2xf32> to vector<2x1xf32>
    %2053 = vector.broadcast %cst_8 : f32 to vector<2x4xf32>
    %2054 = arith.mulf %2034, %2053 : vector<2x4xf32>
    %2055 = vector.broadcast %cst_9 : f32 to vector<2x1xf32>
    %2056 = arith.mulf %2052, %2055 : vector<2x1xf32>
    %2057 = vector.broadcast %2056 : vector<2x1xf32> to vector<2x4xf32>
    %2058 = arith.addf %2054, %2057 : vector<2x4xf32>
    %2059 = arith.addf %2058, %4 : vector<2x4xf32>
    %2060 = arith.addf %2059, %2042 : vector<2x4xf32>
    %cst_496 = arith.constant 2.700000e+02 : f32
    %2061 = vector.broadcast %cst_496 : f32 to vector<2x4xf32>
    %2062 = arith.mulf %2061, %2060 : vector<2x4xf32>
    %cst_497 = arith.constant 1.080000e+02 : f32
    %2063 = vector.broadcast %cst_497 : f32 to vector<2x4xf32>
    %2064 = arith.subf %2062, %2063 : vector<2x4xf32>
    %cst_498 = arith.constant 0.000000e+00 : f32
    %cst_499 = arith.constant 1.540000e-01 : f32
    %2065 = arith.subf %cst_498, %cst_499 : f32
    %2066 = vector.broadcast %2065 : f32 to vector<2x4xf32>
    %2067 = arith.mulf %2066, %2064 : vector<2x4xf32>
    %2068 = math.exp %2067 : vector<2x4xf32>
    %cst_500 = arith.constant 1.000000e+00 : f32
    %2069 = vector.broadcast %cst_500 : f32 to vector<2x4xf32>
    %2070 = arith.subf %2069, %2068 : vector<2x4xf32>
    %cst_501 = arith.constant 9.99999997E-7 : f32
    %2071 = vector.broadcast %cst_501 : f32 to vector<2x4xf32>
    %2072 = arith.addf %2070, %2071 : vector<2x4xf32>
    %2073 = tpu.reciprocal %2072 : vector<2x4xf32> -> vector<2x4xf32>
    %2074 = arith.mulf %2064, %2073 : vector<2x4xf32>
    %cst_502 = arith.constant 0.000000e+00 : f32
    %2075 = vector.broadcast %cst_502 : f32 to vector<2x4xf32>
    %2076 = arith.maximumf %2074, %2075 : vector<2x4xf32>
    %2077 = vector.broadcast %cst_10 : f32 to vector<2x4xf32>
    %2078 = arith.mulf %2034, %2077 : vector<2x4xf32>
    %2079 = arith.subf %2034, %2078 : vector<2x4xf32>
    %cst_503 = arith.constant 1.000000e+00 : f32
    %2080 = vector.broadcast %cst_503 : f32 to vector<2x4xf32>
    %2081 = arith.subf %2080, %2034 : vector<2x4xf32>
    %2082 = arith.mulf %2081, %2076 : vector<2x4xf32>
    %2083 = vector.broadcast %cst_11 : f32 to vector<2x4xf32>
    %2084 = arith.mulf %2082, %2083 : vector<2x4xf32>
    %2085 = arith.addf %2079, %2084 : vector<2x4xf32>
    %2086 = vector.broadcast %cst_12 : f32 to vector<2x4xf32>
    %2087 = arith.mulf %2042, %2086 : vector<2x4xf32>
    %2088 = arith.index_cast %c40_i32 : i32 to index
    %c0_504 = arith.constant 0 : index
    %c0_505 = arith.constant 0 : index
    %2089 = vector.load %arg2[%2088, %c0_504, %c0_505] : memref<50x2x4xf32, #tpu.memory_space<vmem>>, vector<1x2x4xf32>
    %2090 = vector.shape_cast %2089 : vector<1x2x4xf32> to vector<2x4xf32>
    %2091 = vector.broadcast %cst_13 : f32 to vector<2x4xf32>
    %2092 = arith.mulf %2091, %2090 : vector<2x4xf32>
    %2093 = arith.addf %2087, %2092 : vector<2x4xf32>
    %2094 = vector.broadcast %cst_14 : f32 to vector<2x4xf32>
    %2095 = arith.cmpf ogt, %2085, %2094 : vector<2x4xf32>
    %2096 = arith.extui %2095 : vector<2x4xi1> to vector<2x4xi32>
    %2097 = arith.sitofp %2096 : vector<2x4xi32> to vector<2x4xf32>
    %2098 = arith.maximumf %2047, %2097 : vector<2x4xf32>
    %cst_506 = arith.constant 1.000000e+00 : f32
    %2099 = vector.broadcast %cst_506 : f32 to vector<2x4xf32>
    %2100 = arith.subf %2099, %2098 : vector<2x4xf32>
    %2101 = arith.addf %2050, %2100 : vector<2x4xf32>
    %c41_i32 = arith.constant 41 : i32
    %cst_507 = arith.constant dense<0.000000e+00> : vector<2xf32>
    %2102 = vector.multi_reduction <add>, %2085, %cst_507 [1] : vector<2x4xf32> to vector<2xf32>
    %2103 = vector.shape_cast %2102 : vector<2xf32> to vector<2x1xf32>
    %2104 = vector.broadcast %cst_8 : f32 to vector<2x4xf32>
    %2105 = arith.mulf %2085, %2104 : vector<2x4xf32>
    %2106 = vector.broadcast %cst_9 : f32 to vector<2x1xf32>
    %2107 = arith.mulf %2103, %2106 : vector<2x1xf32>
    %2108 = vector.broadcast %2107 : vector<2x1xf32> to vector<2x4xf32>
    %2109 = arith.addf %2105, %2108 : vector<2x4xf32>
    %2110 = arith.addf %2109, %4 : vector<2x4xf32>
    %2111 = arith.addf %2110, %2093 : vector<2x4xf32>
    %cst_508 = arith.constant 2.700000e+02 : f32
    %2112 = vector.broadcast %cst_508 : f32 to vector<2x4xf32>
    %2113 = arith.mulf %2112, %2111 : vector<2x4xf32>
    %cst_509 = arith.constant 1.080000e+02 : f32
    %2114 = vector.broadcast %cst_509 : f32 to vector<2x4xf32>
    %2115 = arith.subf %2113, %2114 : vector<2x4xf32>
    %cst_510 = arith.constant 0.000000e+00 : f32
    %cst_511 = arith.constant 1.540000e-01 : f32
    %2116 = arith.subf %cst_510, %cst_511 : f32
    %2117 = vector.broadcast %2116 : f32 to vector<2x4xf32>
    %2118 = arith.mulf %2117, %2115 : vector<2x4xf32>
    %2119 = math.exp %2118 : vector<2x4xf32>
    %cst_512 = arith.constant 1.000000e+00 : f32
    %2120 = vector.broadcast %cst_512 : f32 to vector<2x4xf32>
    %2121 = arith.subf %2120, %2119 : vector<2x4xf32>
    %cst_513 = arith.constant 9.99999997E-7 : f32
    %2122 = vector.broadcast %cst_513 : f32 to vector<2x4xf32>
    %2123 = arith.addf %2121, %2122 : vector<2x4xf32>
    %2124 = tpu.reciprocal %2123 : vector<2x4xf32> -> vector<2x4xf32>
    %2125 = arith.mulf %2115, %2124 : vector<2x4xf32>
    %cst_514 = arith.constant 0.000000e+00 : f32
    %2126 = vector.broadcast %cst_514 : f32 to vector<2x4xf32>
    %2127 = arith.maximumf %2125, %2126 : vector<2x4xf32>
    %2128 = vector.broadcast %cst_10 : f32 to vector<2x4xf32>
    %2129 = arith.mulf %2085, %2128 : vector<2x4xf32>
    %2130 = arith.subf %2085, %2129 : vector<2x4xf32>
    %cst_515 = arith.constant 1.000000e+00 : f32
    %2131 = vector.broadcast %cst_515 : f32 to vector<2x4xf32>
    %2132 = arith.subf %2131, %2085 : vector<2x4xf32>
    %2133 = arith.mulf %2132, %2127 : vector<2x4xf32>
    %2134 = vector.broadcast %cst_11 : f32 to vector<2x4xf32>
    %2135 = arith.mulf %2133, %2134 : vector<2x4xf32>
    %2136 = arith.addf %2130, %2135 : vector<2x4xf32>
    %2137 = vector.broadcast %cst_12 : f32 to vector<2x4xf32>
    %2138 = arith.mulf %2093, %2137 : vector<2x4xf32>
    %2139 = arith.index_cast %c41_i32 : i32 to index
    %c0_516 = arith.constant 0 : index
    %c0_517 = arith.constant 0 : index
    %2140 = vector.load %arg2[%2139, %c0_516, %c0_517] : memref<50x2x4xf32, #tpu.memory_space<vmem>>, vector<1x2x4xf32>
    %2141 = vector.shape_cast %2140 : vector<1x2x4xf32> to vector<2x4xf32>
    %2142 = vector.broadcast %cst_13 : f32 to vector<2x4xf32>
    %2143 = arith.mulf %2142, %2141 : vector<2x4xf32>
    %2144 = arith.addf %2138, %2143 : vector<2x4xf32>
    %2145 = vector.broadcast %cst_14 : f32 to vector<2x4xf32>
    %2146 = arith.cmpf ogt, %2136, %2145 : vector<2x4xf32>
    %2147 = arith.extui %2146 : vector<2x4xi1> to vector<2x4xi32>
    %2148 = arith.sitofp %2147 : vector<2x4xi32> to vector<2x4xf32>
    %2149 = arith.maximumf %2098, %2148 : vector<2x4xf32>
    %cst_518 = arith.constant 1.000000e+00 : f32
    %2150 = vector.broadcast %cst_518 : f32 to vector<2x4xf32>
    %2151 = arith.subf %2150, %2149 : vector<2x4xf32>
    %2152 = arith.addf %2101, %2151 : vector<2x4xf32>
    %c42_i32 = arith.constant 42 : i32
    %cst_519 = arith.constant dense<0.000000e+00> : vector<2xf32>
    %2153 = vector.multi_reduction <add>, %2136, %cst_519 [1] : vector<2x4xf32> to vector<2xf32>
    %2154 = vector.shape_cast %2153 : vector<2xf32> to vector<2x1xf32>
    %2155 = vector.broadcast %cst_8 : f32 to vector<2x4xf32>
    %2156 = arith.mulf %2136, %2155 : vector<2x4xf32>
    %2157 = vector.broadcast %cst_9 : f32 to vector<2x1xf32>
    %2158 = arith.mulf %2154, %2157 : vector<2x1xf32>
    %2159 = vector.broadcast %2158 : vector<2x1xf32> to vector<2x4xf32>
    %2160 = arith.addf %2156, %2159 : vector<2x4xf32>
    %2161 = arith.addf %2160, %4 : vector<2x4xf32>
    %2162 = arith.addf %2161, %2144 : vector<2x4xf32>
    %cst_520 = arith.constant 2.700000e+02 : f32
    %2163 = vector.broadcast %cst_520 : f32 to vector<2x4xf32>
    %2164 = arith.mulf %2163, %2162 : vector<2x4xf32>
    %cst_521 = arith.constant 1.080000e+02 : f32
    %2165 = vector.broadcast %cst_521 : f32 to vector<2x4xf32>
    %2166 = arith.subf %2164, %2165 : vector<2x4xf32>
    %cst_522 = arith.constant 0.000000e+00 : f32
    %cst_523 = arith.constant 1.540000e-01 : f32
    %2167 = arith.subf %cst_522, %cst_523 : f32
    %2168 = vector.broadcast %2167 : f32 to vector<2x4xf32>
    %2169 = arith.mulf %2168, %2166 : vector<2x4xf32>
    %2170 = math.exp %2169 : vector<2x4xf32>
    %cst_524 = arith.constant 1.000000e+00 : f32
    %2171 = vector.broadcast %cst_524 : f32 to vector<2x4xf32>
    %2172 = arith.subf %2171, %2170 : vector<2x4xf32>
    %cst_525 = arith.constant 9.99999997E-7 : f32
    %2173 = vector.broadcast %cst_525 : f32 to vector<2x4xf32>
    %2174 = arith.addf %2172, %2173 : vector<2x4xf32>
    %2175 = tpu.reciprocal %2174 : vector<2x4xf32> -> vector<2x4xf32>
    %2176 = arith.mulf %2166, %2175 : vector<2x4xf32>
    %cst_526 = arith.constant 0.000000e+00 : f32
    %2177 = vector.broadcast %cst_526 : f32 to vector<2x4xf32>
    %2178 = arith.maximumf %2176, %2177 : vector<2x4xf32>
    %2179 = vector.broadcast %cst_10 : f32 to vector<2x4xf32>
    %2180 = arith.mulf %2136, %2179 : vector<2x4xf32>
    %2181 = arith.subf %2136, %2180 : vector<2x4xf32>
    %cst_527 = arith.constant 1.000000e+00 : f32
    %2182 = vector.broadcast %cst_527 : f32 to vector<2x4xf32>
    %2183 = arith.subf %2182, %2136 : vector<2x4xf32>
    %2184 = arith.mulf %2183, %2178 : vector<2x4xf32>
    %2185 = vector.broadcast %cst_11 : f32 to vector<2x4xf32>
    %2186 = arith.mulf %2184, %2185 : vector<2x4xf32>
    %2187 = arith.addf %2181, %2186 : vector<2x4xf32>
    %2188 = vector.broadcast %cst_12 : f32 to vector<2x4xf32>
    %2189 = arith.mulf %2144, %2188 : vector<2x4xf32>
    %2190 = arith.index_cast %c42_i32 : i32 to index
    %c0_528 = arith.constant 0 : index
    %c0_529 = arith.constant 0 : index
    %2191 = vector.load %arg2[%2190, %c0_528, %c0_529] : memref<50x2x4xf32, #tpu.memory_space<vmem>>, vector<1x2x4xf32>
    %2192 = vector.shape_cast %2191 : vector<1x2x4xf32> to vector<2x4xf32>
    %2193 = vector.broadcast %cst_13 : f32 to vector<2x4xf32>
    %2194 = arith.mulf %2193, %2192 : vector<2x4xf32>
    %2195 = arith.addf %2189, %2194 : vector<2x4xf32>
    %2196 = vector.broadcast %cst_14 : f32 to vector<2x4xf32>
    %2197 = arith.cmpf ogt, %2187, %2196 : vector<2x4xf32>
    %2198 = arith.extui %2197 : vector<2x4xi1> to vector<2x4xi32>
    %2199 = arith.sitofp %2198 : vector<2x4xi32> to vector<2x4xf32>
    %2200 = arith.maximumf %2149, %2199 : vector<2x4xf32>
    %cst_530 = arith.constant 1.000000e+00 : f32
    %2201 = vector.broadcast %cst_530 : f32 to vector<2x4xf32>
    %2202 = arith.subf %2201, %2200 : vector<2x4xf32>
    %2203 = arith.addf %2152, %2202 : vector<2x4xf32>
    %c43_i32 = arith.constant 43 : i32
    %cst_531 = arith.constant dense<0.000000e+00> : vector<2xf32>
    %2204 = vector.multi_reduction <add>, %2187, %cst_531 [1] : vector<2x4xf32> to vector<2xf32>
    %2205 = vector.shape_cast %2204 : vector<2xf32> to vector<2x1xf32>
    %2206 = vector.broadcast %cst_8 : f32 to vector<2x4xf32>
    %2207 = arith.mulf %2187, %2206 : vector<2x4xf32>
    %2208 = vector.broadcast %cst_9 : f32 to vector<2x1xf32>
    %2209 = arith.mulf %2205, %2208 : vector<2x1xf32>
    %2210 = vector.broadcast %2209 : vector<2x1xf32> to vector<2x4xf32>
    %2211 = arith.addf %2207, %2210 : vector<2x4xf32>
    %2212 = arith.addf %2211, %4 : vector<2x4xf32>
    %2213 = arith.addf %2212, %2195 : vector<2x4xf32>
    %cst_532 = arith.constant 2.700000e+02 : f32
    %2214 = vector.broadcast %cst_532 : f32 to vector<2x4xf32>
    %2215 = arith.mulf %2214, %2213 : vector<2x4xf32>
    %cst_533 = arith.constant 1.080000e+02 : f32
    %2216 = vector.broadcast %cst_533 : f32 to vector<2x4xf32>
    %2217 = arith.subf %2215, %2216 : vector<2x4xf32>
    %cst_534 = arith.constant 0.000000e+00 : f32
    %cst_535 = arith.constant 1.540000e-01 : f32
    %2218 = arith.subf %cst_534, %cst_535 : f32
    %2219 = vector.broadcast %2218 : f32 to vector<2x4xf32>
    %2220 = arith.mulf %2219, %2217 : vector<2x4xf32>
    %2221 = math.exp %2220 : vector<2x4xf32>
    %cst_536 = arith.constant 1.000000e+00 : f32
    %2222 = vector.broadcast %cst_536 : f32 to vector<2x4xf32>
    %2223 = arith.subf %2222, %2221 : vector<2x4xf32>
    %cst_537 = arith.constant 9.99999997E-7 : f32
    %2224 = vector.broadcast %cst_537 : f32 to vector<2x4xf32>
    %2225 = arith.addf %2223, %2224 : vector<2x4xf32>
    %2226 = tpu.reciprocal %2225 : vector<2x4xf32> -> vector<2x4xf32>
    %2227 = arith.mulf %2217, %2226 : vector<2x4xf32>
    %cst_538 = arith.constant 0.000000e+00 : f32
    %2228 = vector.broadcast %cst_538 : f32 to vector<2x4xf32>
    %2229 = arith.maximumf %2227, %2228 : vector<2x4xf32>
    %2230 = vector.broadcast %cst_10 : f32 to vector<2x4xf32>
    %2231 = arith.mulf %2187, %2230 : vector<2x4xf32>
    %2232 = arith.subf %2187, %2231 : vector<2x4xf32>
    %cst_539 = arith.constant 1.000000e+00 : f32
    %2233 = vector.broadcast %cst_539 : f32 to vector<2x4xf32>
    %2234 = arith.subf %2233, %2187 : vector<2x4xf32>
    %2235 = arith.mulf %2234, %2229 : vector<2x4xf32>
    %2236 = vector.broadcast %cst_11 : f32 to vector<2x4xf32>
    %2237 = arith.mulf %2235, %2236 : vector<2x4xf32>
    %2238 = arith.addf %2232, %2237 : vector<2x4xf32>
    %2239 = vector.broadcast %cst_12 : f32 to vector<2x4xf32>
    %2240 = arith.mulf %2195, %2239 : vector<2x4xf32>
    %2241 = arith.index_cast %c43_i32 : i32 to index
    %c0_540 = arith.constant 0 : index
    %c0_541 = arith.constant 0 : index
    %2242 = vector.load %arg2[%2241, %c0_540, %c0_541] : memref<50x2x4xf32, #tpu.memory_space<vmem>>, vector<1x2x4xf32>
    %2243 = vector.shape_cast %2242 : vector<1x2x4xf32> to vector<2x4xf32>
    %2244 = vector.broadcast %cst_13 : f32 to vector<2x4xf32>
    %2245 = arith.mulf %2244, %2243 : vector<2x4xf32>
    %2246 = arith.addf %2240, %2245 : vector<2x4xf32>
    %2247 = vector.broadcast %cst_14 : f32 to vector<2x4xf32>
    %2248 = arith.cmpf ogt, %2238, %2247 : vector<2x4xf32>
    %2249 = arith.extui %2248 : vector<2x4xi1> to vector<2x4xi32>
    %2250 = arith.sitofp %2249 : vector<2x4xi32> to vector<2x4xf32>
    %2251 = arith.maximumf %2200, %2250 : vector<2x4xf32>
    %cst_542 = arith.constant 1.000000e+00 : f32
    %2252 = vector.broadcast %cst_542 : f32 to vector<2x4xf32>
    %2253 = arith.subf %2252, %2251 : vector<2x4xf32>
    %2254 = arith.addf %2203, %2253 : vector<2x4xf32>
    %c44_i32 = arith.constant 44 : i32
    %cst_543 = arith.constant dense<0.000000e+00> : vector<2xf32>
    %2255 = vector.multi_reduction <add>, %2238, %cst_543 [1] : vector<2x4xf32> to vector<2xf32>
    %2256 = vector.shape_cast %2255 : vector<2xf32> to vector<2x1xf32>
    %2257 = vector.broadcast %cst_8 : f32 to vector<2x4xf32>
    %2258 = arith.mulf %2238, %2257 : vector<2x4xf32>
    %2259 = vector.broadcast %cst_9 : f32 to vector<2x1xf32>
    %2260 = arith.mulf %2256, %2259 : vector<2x1xf32>
    %2261 = vector.broadcast %2260 : vector<2x1xf32> to vector<2x4xf32>
    %2262 = arith.addf %2258, %2261 : vector<2x4xf32>
    %2263 = arith.addf %2262, %4 : vector<2x4xf32>
    %2264 = arith.addf %2263, %2246 : vector<2x4xf32>
    %cst_544 = arith.constant 2.700000e+02 : f32
    %2265 = vector.broadcast %cst_544 : f32 to vector<2x4xf32>
    %2266 = arith.mulf %2265, %2264 : vector<2x4xf32>
    %cst_545 = arith.constant 1.080000e+02 : f32
    %2267 = vector.broadcast %cst_545 : f32 to vector<2x4xf32>
    %2268 = arith.subf %2266, %2267 : vector<2x4xf32>
    %cst_546 = arith.constant 0.000000e+00 : f32
    %cst_547 = arith.constant 1.540000e-01 : f32
    %2269 = arith.subf %cst_546, %cst_547 : f32
    %2270 = vector.broadcast %2269 : f32 to vector<2x4xf32>
    %2271 = arith.mulf %2270, %2268 : vector<2x4xf32>
    %2272 = math.exp %2271 : vector<2x4xf32>
    %cst_548 = arith.constant 1.000000e+00 : f32
    %2273 = vector.broadcast %cst_548 : f32 to vector<2x4xf32>
    %2274 = arith.subf %2273, %2272 : vector<2x4xf32>
    %cst_549 = arith.constant 9.99999997E-7 : f32
    %2275 = vector.broadcast %cst_549 : f32 to vector<2x4xf32>
    %2276 = arith.addf %2274, %2275 : vector<2x4xf32>
    %2277 = tpu.reciprocal %2276 : vector<2x4xf32> -> vector<2x4xf32>
    %2278 = arith.mulf %2268, %2277 : vector<2x4xf32>
    %cst_550 = arith.constant 0.000000e+00 : f32
    %2279 = vector.broadcast %cst_550 : f32 to vector<2x4xf32>
    %2280 = arith.maximumf %2278, %2279 : vector<2x4xf32>
    %2281 = vector.broadcast %cst_10 : f32 to vector<2x4xf32>
    %2282 = arith.mulf %2238, %2281 : vector<2x4xf32>
    %2283 = arith.subf %2238, %2282 : vector<2x4xf32>
    %cst_551 = arith.constant 1.000000e+00 : f32
    %2284 = vector.broadcast %cst_551 : f32 to vector<2x4xf32>
    %2285 = arith.subf %2284, %2238 : vector<2x4xf32>
    %2286 = arith.mulf %2285, %2280 : vector<2x4xf32>
    %2287 = vector.broadcast %cst_11 : f32 to vector<2x4xf32>
    %2288 = arith.mulf %2286, %2287 : vector<2x4xf32>
    %2289 = arith.addf %2283, %2288 : vector<2x4xf32>
    %2290 = vector.broadcast %cst_12 : f32 to vector<2x4xf32>
    %2291 = arith.mulf %2246, %2290 : vector<2x4xf32>
    %2292 = arith.index_cast %c44_i32 : i32 to index
    %c0_552 = arith.constant 0 : index
    %c0_553 = arith.constant 0 : index
    %2293 = vector.load %arg2[%2292, %c0_552, %c0_553] : memref<50x2x4xf32, #tpu.memory_space<vmem>>, vector<1x2x4xf32>
    %2294 = vector.shape_cast %2293 : vector<1x2x4xf32> to vector<2x4xf32>
    %2295 = vector.broadcast %cst_13 : f32 to vector<2x4xf32>
    %2296 = arith.mulf %2295, %2294 : vector<2x4xf32>
    %2297 = arith.addf %2291, %2296 : vector<2x4xf32>
    %2298 = vector.broadcast %cst_14 : f32 to vector<2x4xf32>
    %2299 = arith.cmpf ogt, %2289, %2298 : vector<2x4xf32>
    %2300 = arith.extui %2299 : vector<2x4xi1> to vector<2x4xi32>
    %2301 = arith.sitofp %2300 : vector<2x4xi32> to vector<2x4xf32>
    %2302 = arith.maximumf %2251, %2301 : vector<2x4xf32>
    %cst_554 = arith.constant 1.000000e+00 : f32
    %2303 = vector.broadcast %cst_554 : f32 to vector<2x4xf32>
    %2304 = arith.subf %2303, %2302 : vector<2x4xf32>
    %2305 = arith.addf %2254, %2304 : vector<2x4xf32>
    %c45_i32 = arith.constant 45 : i32
    %cst_555 = arith.constant dense<0.000000e+00> : vector<2xf32>
    %2306 = vector.multi_reduction <add>, %2289, %cst_555 [1] : vector<2x4xf32> to vector<2xf32>
    %2307 = vector.shape_cast %2306 : vector<2xf32> to vector<2x1xf32>
    %2308 = vector.broadcast %cst_8 : f32 to vector<2x4xf32>
    %2309 = arith.mulf %2289, %2308 : vector<2x4xf32>
    %2310 = vector.broadcast %cst_9 : f32 to vector<2x1xf32>
    %2311 = arith.mulf %2307, %2310 : vector<2x1xf32>
    %2312 = vector.broadcast %2311 : vector<2x1xf32> to vector<2x4xf32>
    %2313 = arith.addf %2309, %2312 : vector<2x4xf32>
    %2314 = arith.addf %2313, %4 : vector<2x4xf32>
    %2315 = arith.addf %2314, %2297 : vector<2x4xf32>
    %cst_556 = arith.constant 2.700000e+02 : f32
    %2316 = vector.broadcast %cst_556 : f32 to vector<2x4xf32>
    %2317 = arith.mulf %2316, %2315 : vector<2x4xf32>
    %cst_557 = arith.constant 1.080000e+02 : f32
    %2318 = vector.broadcast %cst_557 : f32 to vector<2x4xf32>
    %2319 = arith.subf %2317, %2318 : vector<2x4xf32>
    %cst_558 = arith.constant 0.000000e+00 : f32
    %cst_559 = arith.constant 1.540000e-01 : f32
    %2320 = arith.subf %cst_558, %cst_559 : f32
    %2321 = vector.broadcast %2320 : f32 to vector<2x4xf32>
    %2322 = arith.mulf %2321, %2319 : vector<2x4xf32>
    %2323 = math.exp %2322 : vector<2x4xf32>
    %cst_560 = arith.constant 1.000000e+00 : f32
    %2324 = vector.broadcast %cst_560 : f32 to vector<2x4xf32>
    %2325 = arith.subf %2324, %2323 : vector<2x4xf32>
    %cst_561 = arith.constant 9.99999997E-7 : f32
    %2326 = vector.broadcast %cst_561 : f32 to vector<2x4xf32>
    %2327 = arith.addf %2325, %2326 : vector<2x4xf32>
    %2328 = tpu.reciprocal %2327 : vector<2x4xf32> -> vector<2x4xf32>
    %2329 = arith.mulf %2319, %2328 : vector<2x4xf32>
    %cst_562 = arith.constant 0.000000e+00 : f32
    %2330 = vector.broadcast %cst_562 : f32 to vector<2x4xf32>
    %2331 = arith.maximumf %2329, %2330 : vector<2x4xf32>
    %2332 = vector.broadcast %cst_10 : f32 to vector<2x4xf32>
    %2333 = arith.mulf %2289, %2332 : vector<2x4xf32>
    %2334 = arith.subf %2289, %2333 : vector<2x4xf32>
    %cst_563 = arith.constant 1.000000e+00 : f32
    %2335 = vector.broadcast %cst_563 : f32 to vector<2x4xf32>
    %2336 = arith.subf %2335, %2289 : vector<2x4xf32>
    %2337 = arith.mulf %2336, %2331 : vector<2x4xf32>
    %2338 = vector.broadcast %cst_11 : f32 to vector<2x4xf32>
    %2339 = arith.mulf %2337, %2338 : vector<2x4xf32>
    %2340 = arith.addf %2334, %2339 : vector<2x4xf32>
    %2341 = vector.broadcast %cst_12 : f32 to vector<2x4xf32>
    %2342 = arith.mulf %2297, %2341 : vector<2x4xf32>
    %2343 = arith.index_cast %c45_i32 : i32 to index
    %c0_564 = arith.constant 0 : index
    %c0_565 = arith.constant 0 : index
    %2344 = vector.load %arg2[%2343, %c0_564, %c0_565] : memref<50x2x4xf32, #tpu.memory_space<vmem>>, vector<1x2x4xf32>
    %2345 = vector.shape_cast %2344 : vector<1x2x4xf32> to vector<2x4xf32>
    %2346 = vector.broadcast %cst_13 : f32 to vector<2x4xf32>
    %2347 = arith.mulf %2346, %2345 : vector<2x4xf32>
    %2348 = arith.addf %2342, %2347 : vector<2x4xf32>
    %2349 = vector.broadcast %cst_14 : f32 to vector<2x4xf32>
    %2350 = arith.cmpf ogt, %2340, %2349 : vector<2x4xf32>
    %2351 = arith.extui %2350 : vector<2x4xi1> to vector<2x4xi32>
    %2352 = arith.sitofp %2351 : vector<2x4xi32> to vector<2x4xf32>
    %2353 = arith.maximumf %2302, %2352 : vector<2x4xf32>
    %cst_566 = arith.constant 1.000000e+00 : f32
    %2354 = vector.broadcast %cst_566 : f32 to vector<2x4xf32>
    %2355 = arith.subf %2354, %2353 : vector<2x4xf32>
    %2356 = arith.addf %2305, %2355 : vector<2x4xf32>
    %c46_i32 = arith.constant 46 : i32
    %cst_567 = arith.constant dense<0.000000e+00> : vector<2xf32>
    %2357 = vector.multi_reduction <add>, %2340, %cst_567 [1] : vector<2x4xf32> to vector<2xf32>
    %2358 = vector.shape_cast %2357 : vector<2xf32> to vector<2x1xf32>
    %2359 = vector.broadcast %cst_8 : f32 to vector<2x4xf32>
    %2360 = arith.mulf %2340, %2359 : vector<2x4xf32>
    %2361 = vector.broadcast %cst_9 : f32 to vector<2x1xf32>
    %2362 = arith.mulf %2358, %2361 : vector<2x1xf32>
    %2363 = vector.broadcast %2362 : vector<2x1xf32> to vector<2x4xf32>
    %2364 = arith.addf %2360, %2363 : vector<2x4xf32>
    %2365 = arith.addf %2364, %4 : vector<2x4xf32>
    %2366 = arith.addf %2365, %2348 : vector<2x4xf32>
    %cst_568 = arith.constant 2.700000e+02 : f32
    %2367 = vector.broadcast %cst_568 : f32 to vector<2x4xf32>
    %2368 = arith.mulf %2367, %2366 : vector<2x4xf32>
    %cst_569 = arith.constant 1.080000e+02 : f32
    %2369 = vector.broadcast %cst_569 : f32 to vector<2x4xf32>
    %2370 = arith.subf %2368, %2369 : vector<2x4xf32>
    %cst_570 = arith.constant 0.000000e+00 : f32
    %cst_571 = arith.constant 1.540000e-01 : f32
    %2371 = arith.subf %cst_570, %cst_571 : f32
    %2372 = vector.broadcast %2371 : f32 to vector<2x4xf32>
    %2373 = arith.mulf %2372, %2370 : vector<2x4xf32>
    %2374 = math.exp %2373 : vector<2x4xf32>
    %cst_572 = arith.constant 1.000000e+00 : f32
    %2375 = vector.broadcast %cst_572 : f32 to vector<2x4xf32>
    %2376 = arith.subf %2375, %2374 : vector<2x4xf32>
    %cst_573 = arith.constant 9.99999997E-7 : f32
    %2377 = vector.broadcast %cst_573 : f32 to vector<2x4xf32>
    %2378 = arith.addf %2376, %2377 : vector<2x4xf32>
    %2379 = tpu.reciprocal %2378 : vector<2x4xf32> -> vector<2x4xf32>
    %2380 = arith.mulf %2370, %2379 : vector<2x4xf32>
    %cst_574 = arith.constant 0.000000e+00 : f32
    %2381 = vector.broadcast %cst_574 : f32 to vector<2x4xf32>
    %2382 = arith.maximumf %2380, %2381 : vector<2x4xf32>
    %2383 = vector.broadcast %cst_10 : f32 to vector<2x4xf32>
    %2384 = arith.mulf %2340, %2383 : vector<2x4xf32>
    %2385 = arith.subf %2340, %2384 : vector<2x4xf32>
    %cst_575 = arith.constant 1.000000e+00 : f32
    %2386 = vector.broadcast %cst_575 : f32 to vector<2x4xf32>
    %2387 = arith.subf %2386, %2340 : vector<2x4xf32>
    %2388 = arith.mulf %2387, %2382 : vector<2x4xf32>
    %2389 = vector.broadcast %cst_11 : f32 to vector<2x4xf32>
    %2390 = arith.mulf %2388, %2389 : vector<2x4xf32>
    %2391 = arith.addf %2385, %2390 : vector<2x4xf32>
    %2392 = vector.broadcast %cst_12 : f32 to vector<2x4xf32>
    %2393 = arith.mulf %2348, %2392 : vector<2x4xf32>
    %2394 = arith.index_cast %c46_i32 : i32 to index
    %c0_576 = arith.constant 0 : index
    %c0_577 = arith.constant 0 : index
    %2395 = vector.load %arg2[%2394, %c0_576, %c0_577] : memref<50x2x4xf32, #tpu.memory_space<vmem>>, vector<1x2x4xf32>
    %2396 = vector.shape_cast %2395 : vector<1x2x4xf32> to vector<2x4xf32>
    %2397 = vector.broadcast %cst_13 : f32 to vector<2x4xf32>
    %2398 = arith.mulf %2397, %2396 : vector<2x4xf32>
    %2399 = arith.addf %2393, %2398 : vector<2x4xf32>
    %2400 = vector.broadcast %cst_14 : f32 to vector<2x4xf32>
    %2401 = arith.cmpf ogt, %2391, %2400 : vector<2x4xf32>
    %2402 = arith.extui %2401 : vector<2x4xi1> to vector<2x4xi32>
    %2403 = arith.sitofp %2402 : vector<2x4xi32> to vector<2x4xf32>
    %2404 = arith.maximumf %2353, %2403 : vector<2x4xf32>
    %cst_578 = arith.constant 1.000000e+00 : f32
    %2405 = vector.broadcast %cst_578 : f32 to vector<2x4xf32>
    %2406 = arith.subf %2405, %2404 : vector<2x4xf32>
    %2407 = arith.addf %2356, %2406 : vector<2x4xf32>
    %c47_i32 = arith.constant 47 : i32
    %cst_579 = arith.constant dense<0.000000e+00> : vector<2xf32>
    %2408 = vector.multi_reduction <add>, %2391, %cst_579 [1] : vector<2x4xf32> to vector<2xf32>
    %2409 = vector.shape_cast %2408 : vector<2xf32> to vector<2x1xf32>
    %2410 = vector.broadcast %cst_8 : f32 to vector<2x4xf32>
    %2411 = arith.mulf %2391, %2410 : vector<2x4xf32>
    %2412 = vector.broadcast %cst_9 : f32 to vector<2x1xf32>
    %2413 = arith.mulf %2409, %2412 : vector<2x1xf32>
    %2414 = vector.broadcast %2413 : vector<2x1xf32> to vector<2x4xf32>
    %2415 = arith.addf %2411, %2414 : vector<2x4xf32>
    %2416 = arith.addf %2415, %4 : vector<2x4xf32>
    %2417 = arith.addf %2416, %2399 : vector<2x4xf32>
    %cst_580 = arith.constant 2.700000e+02 : f32
    %2418 = vector.broadcast %cst_580 : f32 to vector<2x4xf32>
    %2419 = arith.mulf %2418, %2417 : vector<2x4xf32>
    %cst_581 = arith.constant 1.080000e+02 : f32
    %2420 = vector.broadcast %cst_581 : f32 to vector<2x4xf32>
    %2421 = arith.subf %2419, %2420 : vector<2x4xf32>
    %cst_582 = arith.constant 0.000000e+00 : f32
    %cst_583 = arith.constant 1.540000e-01 : f32
    %2422 = arith.subf %cst_582, %cst_583 : f32
    %2423 = vector.broadcast %2422 : f32 to vector<2x4xf32>
    %2424 = arith.mulf %2423, %2421 : vector<2x4xf32>
    %2425 = math.exp %2424 : vector<2x4xf32>
    %cst_584 = arith.constant 1.000000e+00 : f32
    %2426 = vector.broadcast %cst_584 : f32 to vector<2x4xf32>
    %2427 = arith.subf %2426, %2425 : vector<2x4xf32>
    %cst_585 = arith.constant 9.99999997E-7 : f32
    %2428 = vector.broadcast %cst_585 : f32 to vector<2x4xf32>
    %2429 = arith.addf %2427, %2428 : vector<2x4xf32>
    %2430 = tpu.reciprocal %2429 : vector<2x4xf32> -> vector<2x4xf32>
    %2431 = arith.mulf %2421, %2430 : vector<2x4xf32>
    %cst_586 = arith.constant 0.000000e+00 : f32
    %2432 = vector.broadcast %cst_586 : f32 to vector<2x4xf32>
    %2433 = arith.maximumf %2431, %2432 : vector<2x4xf32>
    %2434 = vector.broadcast %cst_10 : f32 to vector<2x4xf32>
    %2435 = arith.mulf %2391, %2434 : vector<2x4xf32>
    %2436 = arith.subf %2391, %2435 : vector<2x4xf32>
    %cst_587 = arith.constant 1.000000e+00 : f32
    %2437 = vector.broadcast %cst_587 : f32 to vector<2x4xf32>
    %2438 = arith.subf %2437, %2391 : vector<2x4xf32>
    %2439 = arith.mulf %2438, %2433 : vector<2x4xf32>
    %2440 = vector.broadcast %cst_11 : f32 to vector<2x4xf32>
    %2441 = arith.mulf %2439, %2440 : vector<2x4xf32>
    %2442 = arith.addf %2436, %2441 : vector<2x4xf32>
    %2443 = vector.broadcast %cst_12 : f32 to vector<2x4xf32>
    %2444 = arith.mulf %2399, %2443 : vector<2x4xf32>
    %2445 = arith.index_cast %c47_i32 : i32 to index
    %c0_588 = arith.constant 0 : index
    %c0_589 = arith.constant 0 : index
    %2446 = vector.load %arg2[%2445, %c0_588, %c0_589] : memref<50x2x4xf32, #tpu.memory_space<vmem>>, vector<1x2x4xf32>
    %2447 = vector.shape_cast %2446 : vector<1x2x4xf32> to vector<2x4xf32>
    %2448 = vector.broadcast %cst_13 : f32 to vector<2x4xf32>
    %2449 = arith.mulf %2448, %2447 : vector<2x4xf32>
    %2450 = arith.addf %2444, %2449 : vector<2x4xf32>
    %2451 = vector.broadcast %cst_14 : f32 to vector<2x4xf32>
    %2452 = arith.cmpf ogt, %2442, %2451 : vector<2x4xf32>
    %2453 = arith.extui %2452 : vector<2x4xi1> to vector<2x4xi32>
    %2454 = arith.sitofp %2453 : vector<2x4xi32> to vector<2x4xf32>
    %2455 = arith.maximumf %2404, %2454 : vector<2x4xf32>
    %cst_590 = arith.constant 1.000000e+00 : f32
    %2456 = vector.broadcast %cst_590 : f32 to vector<2x4xf32>
    %2457 = arith.subf %2456, %2455 : vector<2x4xf32>
    %2458 = arith.addf %2407, %2457 : vector<2x4xf32>
    %c48_i32 = arith.constant 48 : i32
    %cst_591 = arith.constant dense<0.000000e+00> : vector<2xf32>
    %2459 = vector.multi_reduction <add>, %2442, %cst_591 [1] : vector<2x4xf32> to vector<2xf32>
    %2460 = vector.shape_cast %2459 : vector<2xf32> to vector<2x1xf32>
    %2461 = vector.broadcast %cst_8 : f32 to vector<2x4xf32>
    %2462 = arith.mulf %2442, %2461 : vector<2x4xf32>
    %2463 = vector.broadcast %cst_9 : f32 to vector<2x1xf32>
    %2464 = arith.mulf %2460, %2463 : vector<2x1xf32>
    %2465 = vector.broadcast %2464 : vector<2x1xf32> to vector<2x4xf32>
    %2466 = arith.addf %2462, %2465 : vector<2x4xf32>
    %2467 = arith.addf %2466, %4 : vector<2x4xf32>
    %2468 = arith.addf %2467, %2450 : vector<2x4xf32>
    %cst_592 = arith.constant 2.700000e+02 : f32
    %2469 = vector.broadcast %cst_592 : f32 to vector<2x4xf32>
    %2470 = arith.mulf %2469, %2468 : vector<2x4xf32>
    %cst_593 = arith.constant 1.080000e+02 : f32
    %2471 = vector.broadcast %cst_593 : f32 to vector<2x4xf32>
    %2472 = arith.subf %2470, %2471 : vector<2x4xf32>
    %cst_594 = arith.constant 0.000000e+00 : f32
    %cst_595 = arith.constant 1.540000e-01 : f32
    %2473 = arith.subf %cst_594, %cst_595 : f32
    %2474 = vector.broadcast %2473 : f32 to vector<2x4xf32>
    %2475 = arith.mulf %2474, %2472 : vector<2x4xf32>
    %2476 = math.exp %2475 : vector<2x4xf32>
    %cst_596 = arith.constant 1.000000e+00 : f32
    %2477 = vector.broadcast %cst_596 : f32 to vector<2x4xf32>
    %2478 = arith.subf %2477, %2476 : vector<2x4xf32>
    %cst_597 = arith.constant 9.99999997E-7 : f32
    %2479 = vector.broadcast %cst_597 : f32 to vector<2x4xf32>
    %2480 = arith.addf %2478, %2479 : vector<2x4xf32>
    %2481 = tpu.reciprocal %2480 : vector<2x4xf32> -> vector<2x4xf32>
    %2482 = arith.mulf %2472, %2481 : vector<2x4xf32>
    %cst_598 = arith.constant 0.000000e+00 : f32
    %2483 = vector.broadcast %cst_598 : f32 to vector<2x4xf32>
    %2484 = arith.maximumf %2482, %2483 : vector<2x4xf32>
    %2485 = vector.broadcast %cst_10 : f32 to vector<2x4xf32>
    %2486 = arith.mulf %2442, %2485 : vector<2x4xf32>
    %2487 = arith.subf %2442, %2486 : vector<2x4xf32>
    %cst_599 = arith.constant 1.000000e+00 : f32
    %2488 = vector.broadcast %cst_599 : f32 to vector<2x4xf32>
    %2489 = arith.subf %2488, %2442 : vector<2x4xf32>
    %2490 = arith.mulf %2489, %2484 : vector<2x4xf32>
    %2491 = vector.broadcast %cst_11 : f32 to vector<2x4xf32>
    %2492 = arith.mulf %2490, %2491 : vector<2x4xf32>
    %2493 = arith.addf %2487, %2492 : vector<2x4xf32>
    %2494 = vector.broadcast %cst_12 : f32 to vector<2x4xf32>
    %2495 = arith.mulf %2450, %2494 : vector<2x4xf32>
    %2496 = arith.index_cast %c48_i32 : i32 to index
    %c0_600 = arith.constant 0 : index
    %c0_601 = arith.constant 0 : index
    %2497 = vector.load %arg2[%2496, %c0_600, %c0_601] : memref<50x2x4xf32, #tpu.memory_space<vmem>>, vector<1x2x4xf32>
    %2498 = vector.shape_cast %2497 : vector<1x2x4xf32> to vector<2x4xf32>
    %2499 = vector.broadcast %cst_13 : f32 to vector<2x4xf32>
    %2500 = arith.mulf %2499, %2498 : vector<2x4xf32>
    %2501 = arith.addf %2495, %2500 : vector<2x4xf32>
    %2502 = vector.broadcast %cst_14 : f32 to vector<2x4xf32>
    %2503 = arith.cmpf ogt, %2493, %2502 : vector<2x4xf32>
    %2504 = arith.extui %2503 : vector<2x4xi1> to vector<2x4xi32>
    %2505 = arith.sitofp %2504 : vector<2x4xi32> to vector<2x4xf32>
    %2506 = arith.maximumf %2455, %2505 : vector<2x4xf32>
    %cst_602 = arith.constant 1.000000e+00 : f32
    %2507 = vector.broadcast %cst_602 : f32 to vector<2x4xf32>
    %2508 = arith.subf %2507, %2506 : vector<2x4xf32>
    %2509 = arith.addf %2458, %2508 : vector<2x4xf32>
    %c49_i32 = arith.constant 49 : i32
    %cst_603 = arith.constant dense<0.000000e+00> : vector<2xf32>
    %2510 = vector.multi_reduction <add>, %2493, %cst_603 [1] : vector<2x4xf32> to vector<2xf32>
    %2511 = vector.shape_cast %2510 : vector<2xf32> to vector<2x1xf32>
    %2512 = vector.broadcast %cst_8 : f32 to vector<2x4xf32>
    %2513 = arith.mulf %2493, %2512 : vector<2x4xf32>
    %2514 = vector.broadcast %cst_9 : f32 to vector<2x1xf32>
    %2515 = arith.mulf %2511, %2514 : vector<2x1xf32>
    %2516 = vector.broadcast %2515 : vector<2x1xf32> to vector<2x4xf32>
    %2517 = arith.addf %2513, %2516 : vector<2x4xf32>
    %2518 = arith.addf %2517, %4 : vector<2x4xf32>
    %2519 = arith.addf %2518, %2501 : vector<2x4xf32>
    %cst_604 = arith.constant 2.700000e+02 : f32
    %2520 = vector.broadcast %cst_604 : f32 to vector<2x4xf32>
    %2521 = arith.mulf %2520, %2519 : vector<2x4xf32>
    %cst_605 = arith.constant 1.080000e+02 : f32
    %2522 = vector.broadcast %cst_605 : f32 to vector<2x4xf32>
    %2523 = arith.subf %2521, %2522 : vector<2x4xf32>
    %cst_606 = arith.constant 0.000000e+00 : f32
    %cst_607 = arith.constant 1.540000e-01 : f32
    %2524 = arith.subf %cst_606, %cst_607 : f32
    %2525 = vector.broadcast %2524 : f32 to vector<2x4xf32>
    %2526 = arith.mulf %2525, %2523 : vector<2x4xf32>
    %2527 = math.exp %2526 : vector<2x4xf32>
    %cst_608 = arith.constant 1.000000e+00 : f32
    %2528 = vector.broadcast %cst_608 : f32 to vector<2x4xf32>
    %2529 = arith.subf %2528, %2527 : vector<2x4xf32>
    %cst_609 = arith.constant 9.99999997E-7 : f32
    %2530 = vector.broadcast %cst_609 : f32 to vector<2x4xf32>
    %2531 = arith.addf %2529, %2530 : vector<2x4xf32>
    %2532 = tpu.reciprocal %2531 : vector<2x4xf32> -> vector<2x4xf32>
    %2533 = arith.mulf %2523, %2532 : vector<2x4xf32>
    %cst_610 = arith.constant 0.000000e+00 : f32
    %2534 = vector.broadcast %cst_610 : f32 to vector<2x4xf32>
    %2535 = arith.maximumf %2533, %2534 : vector<2x4xf32>
    %2536 = vector.broadcast %cst_10 : f32 to vector<2x4xf32>
    %2537 = arith.mulf %2493, %2536 : vector<2x4xf32>
    %2538 = arith.subf %2493, %2537 : vector<2x4xf32>
    %cst_611 = arith.constant 1.000000e+00 : f32
    %2539 = vector.broadcast %cst_611 : f32 to vector<2x4xf32>
    %2540 = arith.subf %2539, %2493 : vector<2x4xf32>
    %2541 = arith.mulf %2540, %2535 : vector<2x4xf32>
    %2542 = vector.broadcast %cst_11 : f32 to vector<2x4xf32>
    %2543 = arith.mulf %2541, %2542 : vector<2x4xf32>
    %2544 = arith.addf %2538, %2543 : vector<2x4xf32>
    %2545 = vector.broadcast %cst_12 : f32 to vector<2x4xf32>
    %2546 = arith.mulf %2501, %2545 : vector<2x4xf32>
    %2547 = arith.index_cast %c49_i32 : i32 to index
    %c0_612 = arith.constant 0 : index
    %c0_613 = arith.constant 0 : index
    %2548 = vector.load %arg2[%2547, %c0_612, %c0_613] : memref<50x2x4xf32, #tpu.memory_space<vmem>>, vector<1x2x4xf32>
    %2549 = vector.shape_cast %2548 : vector<1x2x4xf32> to vector<2x4xf32>
    %2550 = vector.broadcast %cst_13 : f32 to vector<2x4xf32>
    %2551 = arith.mulf %2550, %2549 : vector<2x4xf32>
    %2552 = arith.addf %2546, %2551 : vector<2x4xf32>
    %2553 = vector.broadcast %cst_14 : f32 to vector<2x4xf32>
    %2554 = arith.cmpf ogt, %2544, %2553 : vector<2x4xf32>
    %2555 = arith.extui %2554 : vector<2x4xi1> to vector<2x4xi32>
    %2556 = arith.sitofp %2555 : vector<2x4xi32> to vector<2x4xf32>
    %2557 = arith.maximumf %2506, %2556 : vector<2x4xf32>
    %cst_614 = arith.constant 1.000000e+00 : f32
    %2558 = vector.broadcast %cst_614 : f32 to vector<2x4xf32>
    %2559 = arith.subf %2558, %2557 : vector<2x4xf32>
    %2560 = arith.addf %2509, %2559 : vector<2x4xf32>
    %c50_i32 = arith.constant 50 : i32
    %cst_615 = arith.constant 0.000000e+00 : f32
    %2561 = vector.broadcast %cst_615 : f32 to vector<2x4xf32>
    %2562 = arith.cmpf ogt, %2557, %2561 : vector<2x4xf32>
    %cst_616 = arith.constant 4.900000e+01 : f32
    %2563 = vector.broadcast %cst_616 : f32 to vector<2x4xf32>
    %2564 = arith.select %2562, %2560, %2563 : vector<2x4xi1>, vector<2x4xf32>
    %cst_617 = arith.constant 0.00999999977 : f32
    %2565 = vector.broadcast %cst_617 : f32 to vector<2x4xf32>
    %2566 = arith.mulf %2564, %2565 : vector<2x4xf32>
    %c0_618 = arith.constant 0 : index
    %c0_619 = arith.constant 0 : index
    %2567 = vector.load %arg3[%c0_618, %c0_619] : memref<2x4xf32, #tpu.memory_space<vmem>>, vector<2x4xf32>
    tpu.vector_store %arg3[%c0_618, %c0_619], %2566 {strides = array<i32>} : memref<2x4xf32, #tpu.memory_space<vmem>>, vector<2x4xf32>,
    return
  }
}

</mosaic_0001>

<llo_original>
// kernel: tpu_custom_call.1
$region0: #{tpu_custom_call.1}
  #allocation0 [shape = 'u32[]', space=smem, size = 0x4, offset = 0x4, fixed_abs, tag = 'smem constant byte address 0x4 - core index']
  #allocation1 [shape = 'u32[144,128]{1,0:T(1,128)}', space=vmem, size = 0x12000, scoped, tag = 'internal scratch']
  %s0 = inlined_call_operand.vmem [shape: f32[2,4], index: 0, kind: input, shape index: {}]
  %s1 = inlined_call_operand.vmem [shape: f32[2,4], index: 1, kind: input, shape index: {}]
  %s2 = inlined_call_operand.vmem [shape: f32[50,2,4], index: 2, kind: input, shape index: {}]
  %s3 = inlined_call_operand.hbm [shape: f32[2,4], index: 3, kind: output, shape index: {}]
  %s4 = sld [smem:[#allocation0]]
  $region22: #{tpu_custom_call.1} parent=0
    _
  %s6 = ssub.s32 1, %s4
  %s7 = scalar_select 0, %s6, %s4
  $region1: #{tpu_custom_call.1} parent=0
    #allocation2 [shape = 'u8[1024]{0}', space=vmem, size = 0x400, scoped, tag = 'output window, operand 0, single buffered']
    #allocation3 [shape = 's32[1]{0}', space=sflag, size = 0x4, scoped, tag = 'scoped memory for tpu_custom_call.1']
    %8 = vsyncpa [#allocation3], 0
    // Predicated region
    $region2: #{tpu_custom_call.1} parent=1 // pred_check
      _
    $region3: #{tpu_custom_call.1} parent=1 // pred_check_branch
      %10 = sbr.rel (0) target = $region5
    $region4: #{tpu_custom_call.1} parent=1 // pred_region
      _
    $region5: #{tpu_custom_call.1} parent=1 // pred_fallthru
      _
    // Predicated region
    $region6: #{tpu_custom_call.1} parent=1 // pred_check
      _
    $region7: #{tpu_custom_call.1} parent=1 // pred_check_branch
      %12 = sbr.rel (0) target = $region9
    $region8: #{tpu_custom_call.1} parent=1 // pred_region
      _
    $region9: #{tpu_custom_call.1} parent=1 // pred_fallthru
      _
    // Predicated region
    $region10: #{tpu_custom_call.1} parent=1 // pred_check
      _
    $region11: #{tpu_custom_call.1} parent=1 // pred_check_branch
      %14 = sbr.rel (0) target = $region13
    $region12: #{tpu_custom_call.1} parent=1 // pred_region
      _
    $region13: #{tpu_custom_call.1} parent=1 // pred_fallthru
      _
    %v15 = vld [vmem:[%s0] sm:$0x3]
    %v16 = vmul.f32 %v15, 0.0156
    %v17 = vadd.f32 %v16, 0.3255
    %v18 = vld [vmem:[%s1] sm:$0x3]
    %v19 = vmul.f32 %v18, 0.02
    %vm20 = vcmask 31744
    %v21 = vsel %vm20, 0.1, 0.0
    %22 = vadd.xlane.f32.xlu0 %v21
    %v23 = vpop.xlane.xlu0 %22
    %v24 = vmul.f32 %v23, -0.0497
    %v25 = vadd.f32 %v24, 0.03106
    %v26 = vadd.f32 %v25, %v17
    %v27 = vadd.f32 %v26, %v19
    %v28 = vmul.f32 %v27, 270.0
    %v29 = vsub.f32 %v28, 108.0
    %v30 = vmul.f32 %v29, -0.154
    %v31 = vmul.f32 %v30, 1.442695
    %v32 = vpow.pop %v31
    %v33 = vsub.f32 1.0, %v32
    %v34 = vadd.f32 %v33, 1e-06
    %v35 = vrcp.pop %v34
    %v36 = vmul.f32 %v29, %v35
    %v37 = vmax.f32 %v36, 0.0
    %v38 = vmul.f32 %v37, 0.9
    %v39 = vmul.f32 %v38, 0.00641
    %v40 = vadd.f32 %v39, 0.09
    %v41 = vmul.f32 %v19, 0.006737947
    %v42 = vld [vmem:[%s2] sm:$0x3]
    %v43 = vmul.f32 %v42, 0.014141815
    %v44 = vadd.f32 %v41, %v43
    %vm45 = vcmp.gt.f32.partialorder %v40, 0.5
    %v46 = vsel %vm45, 1, 0
    %v47 = vcvt.s32.f32 %v46
    %v48 = vmax.f32 %v47, 0.0
    %v49 = vsub.f32 1.0, %v48
    %v50 = vadd.f32 %v49, 0.0
    %vm51 = vcmask 25600
    %v52 = vsel %vm51, %v40, 0.0
    %53 = vadd.xlane.f32.xlu0 %v52
    %v54 = vpop.xlane.xlu0 %53
    %v55 = vmul.f32 %v40, 0.3106
    %v56 = vmul.f32 %v54, -0.0497
    %v57 = vadd.f32 %v55, %v56
    %v58 = vadd.f32 %v57, %v17
    %v59 = vadd.f32 %v58, %v44
    %v60 = vmul.f32 %v59, 270.0
    %v61 = vsub.f32 %v60, 108.0
    %v62 = vmul.f32 %v61, -0.154
    %v63 = vmul.f32 %v62, 1.442695
    %v64 = vpow.pop %v63
    %v65 = vsub.f32 1.0, %v64
    %v66 = vadd.f32 %v65, 1e-06
    %v67 = vrcp.pop %v66
    %v68 = vmul.f32 %v61, %v67
    %v69 = vmax.f32 %v68, 0.0
    %v70 = vmul.f32 %v40, 0.1
    %v71 = vsub.f32 %v40, %v70
    %v72 = vsub.f32 1.0, %v40
    %v73 = vmul.f32 %v72, %v69
    %v74 = vmul.f32 %v73, 0.00641
    %v75 = vadd.f32 %v71, %v74
    %v76 = vmul.f32 %v44, 0.006737947
    %s77 = scalar_lea.vmem %s2, 2
    %v78 = vld [vmem:[%s77] sm:$0x3]
    %v79 = vmul.f32 %v78, 0.014141815
    %v80 = vadd.f32 %v76, %v79
    %vm81 = vcmp.gt.f32.partialorder %v75, 0.5
    %v82 = vsel %vm81, 1, 0
    %v83 = vcvt.s32.f32 %v82
    %v84 = vmax.f32 %v48, %v83
    %v85 = vsub.f32 1.0, %v84
    %v86 = vadd.f32 %v50, %v85
    %v87 = vsel %vm51, %v75, 0.0
    %88 = vadd.xlane.f32.xlu0 %v87
    %v89 = vpop.xlane.xlu0 %88
    %v90 = vmul.f32 %v75, 0.3106
    %v91 = vmul.f32 %v89, -0.0497
    %v92 = vadd.f32 %v90, %v91
    %v93 = vadd.f32 %v92, %v17
    %v94 = vadd.f32 %v93, %v80
    %v95 = vmul.f32 %v94, 270.0
    %v96 = vsub.f32 %v95, 108.0
    %v97 = vmul.f32 %v96, -0.154
    %v98 = vmul.f32 %v97, 1.442695
    %v99 = vpow.pop %v98
    %v100 = vsub.f32 1.0, %v99
    %v101 = vadd.f32 %v100, 1e-06
    %v102 = vrcp.pop %v101
    %v103 = vmul.f32 %v96, %v102
    %v104 = vmax.f32 %v103, 0.0
    %v105 = vmul.f32 %v75, 0.1
    %v106 = vsub.f32 %v75, %v105
    %v107 = vsub.f32 1.0, %v75
    %v108 = vmul.f32 %v107, %v104
    %v109 = vmul.f32 %v108, 0.00641
    %v110 = vadd.f32 %v106, %v109
    %v111 = vmul.f32 %v80, 0.006737947
    %s112 = scalar_lea.vmem %s2, 4
    %v113 = vld [vmem:[%s112] sm:$0x3]
    %v114 = vmul.f32 %v113, 0.014141815
    %v115 = vadd.f32 %v111, %v114
    %vm116 = vcmp.gt.f32.partialorder %v110, 0.5
    %v117 = vsel %vm116, 1, 0
    %v118 = vcvt.s32.f32 %v117
    %v119 = vmax.f32 %v84, %v118
    %v120 = vsub.f32 1.0, %v119
    %v121 = vadd.f32 %v86, %v120
    %v122 = vsel %vm51, %v110, 0.0
    %123 = vadd.xlane.f32.xlu0 %v122
    %v124 = vpop.xlane.xlu0 %123
    %v125 = vmul.f32 %v110, 0.3106
    %v126 = vmul.f32 %v124, -0.0497
    %v127 = vadd.f32 %v125, %v126
    %v128 = vadd.f32 %v127, %v17
    %v129 = vadd.f32 %v128, %v115
    %v130 = vmul.f32 %v129, 270.0
    %v131 = vsub.f32 %v130, 108.0
    %v132 = vmul.f32 %v131, -0.154
    %v133 = vmul.f32 %v132, 1.442695
    %v134 = vpow.pop %v133
    %v135 = vsub.f32 1.0, %v134
    %v136 = vadd.f32 %v135, 1e-06
    %v137 = vrcp.pop %v136
    %v138 = vmul.f32 %v131, %v137
    %v139 = vmax.f32 %v138, 0.0
    %v140 = vmul.f32 %v110, 0.1
    %v141 = vsub.f32 %v110, %v140
    %v142 = vsub.f32 1.0, %v110
    %v143 = vmul.f32 %v142, %v139
    %v144 = vmul.f32 %v143, 0.00641
    %v145 = vadd.f32 %v141, %v144
    %v146 = vmul.f32 %v115, 0.006737947
    %s147 = scalar_lea.vmem %s2, 6
    %v148 = vld [vmem:[%s147] sm:$0x3]
    %v149 = vmul.f32 %v148, 0.014141815
    %v150 = vadd.f32 %v146, %v149
    %vm151 = vcmp.gt.f32.partialorder %v145, 0.5
    %v152 = vsel %vm151, 1, 0
    %v153 = vcvt.s32.f32 %v152
    %v154 = vmax.f32 %v119, %v153
    %v155 = vsub.f32 1.0, %v154
    %v156 = vadd.f32 %v121, %v155
    %v157 = vsel %vm51, %v145, 0.0
    %158 = vadd.xlane.f32.xlu0 %v157
    %v159 = vpop.xlane.xlu0 %158
    %v160 = vmul.f32 %v145, 0.3106
    %v161 = vmul.f32 %v159, -0.0497
    %v162 = vadd.f32 %v160, %v161
    %v163 = vadd.f32 %v162, %v17
    %v164 = vadd.f32 %v163, %v150
    %v165 = vmul.f32 %v164, 270.0
    %v166 = vsub.f32 %v165, 108.0
    %v167 = vmul.f32 %v166, -0.154
    %v168 = vmul.f32 %v167, 1.442695
    %v169 = vpow.pop %v168
    %v170 = vsub.f32 1.0, %v169
    %v171 = vadd.f32 %v170, 1e-06
    %v172 = vrcp.pop %v171
    %v173 = vmul.f32 %v166, %v172
    %v174 = vmax.f32 %v173, 0.0
    %v175 = vmul.f32 %v145, 0.1
    %v176 = vsub.f32 %v145, %v175
    %v177 = vsub.f32 1.0, %v145
    %v178 = vmul.f32 %v177, %v174
    %v179 = vmul.f32 %v178, 0.00641
    %v180 = vadd.f32 %v176, %v179
    %v181 = vmul.f32 %v150, 0.006737947
    %s182 = scalar_lea.vmem %s2, 8
    %v183 = vld [vmem:[%s182] sm:$0x3]
    %v184 = vmul.f32 %v183, 0.014141815
    %v185 = vadd.f32 %v181, %v184
    %vm186 = vcmp.gt.f32.partialorder %v180, 0.5
    %v187 = vsel %vm186, 1, 0
    %v188 = vcvt.s32.f32 %v187
    %v189 = vmax.f32 %v154, %v188
    %v190 = vsub.f32 1.0, %v189
    %v191 = vadd.f32 %v156, %v190
    %v192 = vsel %vm51, %v180, 0.0
    %193 = vadd.xlane.f32.xlu0 %v192
    %v194 = vpop.xlane.xlu0 %193
    %v195 = vmul.f32 %v180, 0.3106
    %v196 = vmul.f32 %v194, -0.0497
    %v197 = vadd.f32 %v195, %v196
    %v198 = vadd.f32 %v197, %v17
    %v199 = vadd.f32 %v198, %v185
    %v200 = vmul.f32 %v199, 270.0
    %v201 = vsub.f32 %v200, 108.0
    %v202 = vmul.f32 %v201, -0.154
    %v203 = vmul.f32 %v202, 1.442695
    %v204 = vpow.pop %v203
    %v205 = vsub.f32 1.0, %v204
    %v206 = vadd.f32 %v205, 1e-06
    %v207 = vrcp.pop %v206
    %v208 = vmul.f32 %v201, %v207
    %v209 = vmax.f32 %v208, 0.0
    %v210 = vmul.f32 %v180, 0.1
    %v211 = vsub.f32 %v180, %v210
    %v212 = vsub.f32 1.0, %v180
    %v213 = vmul.f32 %v212, %v209
    %v214 = vmul.f32 %v213, 0.00641
    %v215 = vadd.f32 %v211, %v214
    %v216 = vmul.f32 %v185, 0.006737947
    %s217 = scalar_lea.vmem %s2, 10
    %v218 = vld [vmem:[%s217] sm:$0x3]
    %v219 = vmul.f32 %v218, 0.014141815
    %v220 = vadd.f32 %v216, %v219
    %vm221 = vcmp.gt.f32.partialorder %v215, 0.5
    %v222 = vsel %vm221, 1, 0
    %v223 = vcvt.s32.f32 %v222
    %v224 = vmax.f32 %v189, %v223
    %v225 = vsub.f32 1.0, %v224
    %v226 = vadd.f32 %v191, %v225
    %v227 = vsel %vm51, %v215, 0.0
    %228 = vadd.xlane.f32.xlu0 %v227
    %v229 = vpop.xlane.xlu0 %228
    %v230 = vmul.f32 %v215, 0.3106
    %v231 = vmul.f32 %v229, -0.0497
    %v232 = vadd.f32 %v230, %v231
    %v233 = vadd.f32 %v232, %v17
    %v234 = vadd.f32 %v233, %v220
    %v235 = vmul.f32 %v234, 270.0
    %v236 = vsub.f32 %v235, 108.0
    %v237 = vmul.f32 %v236, -0.154
    %v238 = vmul.f32 %v237, 1.442695
    %v239 = vpow.pop %v238
    %v240 = vsub.f32 1.0, %v239
    %v241 = vadd.f32 %v240, 1e-06
    %v242 = vrcp.pop %v241
    %v243 = vmul.f32 %v236, %v242
    %v244 = vmax.f32 %v243, 0.0
    %v245 = vmul.f32 %v215, 0.1
    %v246 = vsub.f32 %v215, %v245
    %v247 = vsub.f32 1.0, %v215
    %v248 = vmul.f32 %v247, %v244
    %v249 = vmul.f32 %v248, 0.00641
    %v250 = vadd.f32 %v246, %v249
    %v251 = vmul.f32 %v220, 0.006737947
    %s252 = scalar_lea.vmem %s2, 12
    %v253 = vld [vmem:[%s252] sm:$0x3]
    %v254 = vmul.f32 %v253, 0.014141815
    %v255 = vadd.f32 %v251, %v254
    %vm256 = vcmp.gt.f32.partialorder %v250, 0.5
    %v257 = vsel %vm256, 1, 0
    %v258 = vcvt.s32.f32 %v257
    %v259 = vmax.f32 %v224, %v258
    %v260 = vsub.f32 1.0, %v259
    %v261 = vadd.f32 %v226, %v260
    %v262 = vsel %vm51, %v250, 0.0
    %263 = vadd.xlane.f32.xlu0 %v262
    %v264 = vpop.xlane.xlu0 %263
    %v265 = vmul.f32 %v250, 0.3106
    %v266 = vmul.f32 %v264, -0.0497
    %v267 = vadd.f32 %v265, %v266
    %v268 = vadd.f32 %v267, %v17
    %v269 = vadd.f32 %v268, %v255
    %v270 = vmul.f32 %v269, 270.0
    %v271 = vsub.f32 %v270, 108.0
    %v272 = vmul.f32 %v271, -0.154
    %v273 = vmul.f32 %v272, 1.442695
    %v274 = vpow.pop %v273
    %v275 = vsub.f32 1.0, %v274
    %v276 = vadd.f32 %v275, 1e-06
    %v277 = vrcp.pop %v276
    %v278 = vmul.f32 %v271, %v277
    %v279 = vmax.f32 %v278, 0.0
    %v280 = vmul.f32 %v250, 0.1
    %v281 = vsub.f32 %v250, %v280
    %v282 = vsub.f32 1.0, %v250
    %v283 = vmul.f32 %v282, %v279
    %v284 = vmul.f32 %v283, 0.00641
    %v285 = vadd.f32 %v281, %v284
    %v286 = vmul.f32 %v255, 0.006737947
    %s287 = scalar_lea.vmem %s2, 14
    %v288 = vld [vmem:[%s287] sm:$0x3]
    %v289 = vmul.f32 %v288, 0.014141815
    %v290 = vadd.f32 %v286, %v289
    %vm291 = vcmp.gt.f32.partialorder %v285, 0.5
    %v292 = vsel %vm291, 1, 0
    %v293 = vcvt.s32.f32 %v292
    %v294 = vmax.f32 %v259, %v293
    %v295 = vsub.f32 1.0, %v294
    %v296 = vadd.f32 %v261, %v295
    %v297 = vsel %vm51, %v285, 0.0
    %298 = vadd.xlane.f32.xlu0 %v297
    %v299 = vpop.xlane.xlu0 %298
    %v300 = vmul.f32 %v285, 0.3106
    %v301 = vmul.f32 %v299, -0.0497
    %v302 = vadd.f32 %v300, %v301
    %v303 = vadd.f32 %v302, %v17
    %v304 = vadd.f32 %v303, %v290
    %v305 = vmul.f32 %v304, 270.0
    %v306 = vsub.f32 %v305, 108.0
    %v307 = vmul.f32 %v306, -0.154
    %v308 = vmul.f32 %v307, 1.442695
    %v309 = vpow.pop %v308
    %v310 = vsub.f32 1.0, %v309
    %v311 = vadd.f32 %v310, 1e-06
    %v312 = vrcp.pop %v311
    %v313 = vmul.f32 %v306, %v312
    %v314 = vmax.f32 %v313, 0.0
    %v315 = vmul.f32 %v285, 0.1
    %v316 = vsub.f32 %v285, %v315
    %v317 = vsub.f32 1.0, %v285
    %v318 = vmul.f32 %v317, %v314
    %v319 = vmul.f32 %v318, 0.00641
    %v320 = vadd.f32 %v316, %v319
    %v321 = vmul.f32 %v290, 0.006737947
    %s322 = scalar_lea.vmem %s2, 16
    %v323 = vld [vmem:[%s322] sm:$0x3]
    %v324 = vmul.f32 %v323, 0.014141815
    %v325 = vadd.f32 %v321, %v324
    %vm326 = vcmp.gt.f32.partialorder %v320, 0.5
    %v327 = vsel %vm326, 1, 0
    %v328 = vcvt.s32.f32 %v327
    %v329 = vmax.f32 %v294, %v328
    %v330 = vsub.f32 1.0, %v329
    %v331 = vadd.f32 %v296, %v330
    %v332 = vsel %vm51, %v320, 0.0
    %333 = vadd.xlane.f32.xlu0 %v332
    %v334 = vpop.xlane.xlu0 %333
    %v335 = vmul.f32 %v320, 0.3106
    %v336 = vmul.f32 %v334, -0.0497
    %v337 = vadd.f32 %v335, %v336
    %v338 = vadd.f32 %v337, %v17
    %v339 = vadd.f32 %v338, %v325
    %v340 = vmul.f32 %v339, 270.0
    %v341 = vsub.f32 %v340, 108.0
    %v342 = vmul.f32 %v341, -0.154
    %v343 = vmul.f32 %v342, 1.442695
    %v344 = vpow.pop %v343
    %v345 = vsub.f32 1.0, %v344
    %v346 = vadd.f32 %v345, 1e-06
    %v347 = vrcp.pop %v346
    %v348 = vmul.f32 %v341, %v347
    %v349 = vmax.f32 %v348, 0.0
    %v350 = vmul.f32 %v320, 0.1
    %v351 = vsub.f32 %v320, %v350
    %v352 = vsub.f32 1.0, %v320
    %v353 = vmul.f32 %v352, %v349
    %v354 = vmul.f32 %v353, 0.00641
    %v355 = vadd.f32 %v351, %v354
    %v356 = vmul.f32 %v325, 0.006737947
    %s357 = scalar_lea.vmem %s2, 18
    %v358 = vld [vmem:[%s357] sm:$0x3]
    %v359 = vmul.f32 %v358, 0.014141815
    %v360 = vadd.f32 %v356, %v359
    %vm361 = vcmp.gt.f32.partialorder %v355, 0.5
    %v362 = vsel %vm361, 1, 0
    %v363 = vcvt.s32.f32 %v362
    %v364 = vmax.f32 %v329, %v363
    %v365 = vsub.f32 1.0, %v364
    %v366 = vadd.f32 %v331, %v365
    %v367 = vsel %vm51, %v355, 0.0
    %368 = vadd.xlane.f32.xlu0 %v367
    %v369 = vpop.xlane.xlu0 %368
    %v370 = vmul.f32 %v355, 0.3106
    %v371 = vmul.f32 %v369, -0.0497
    %v372 = vadd.f32 %v370, %v371
    %v373 = vadd.f32 %v372, %v17
    %v374 = vadd.f32 %v373, %v360
    %v375 = vmul.f32 %v374, 270.0
    %v376 = vsub.f32 %v375, 108.0
    %v377 = vmul.f32 %v376, -0.154
    %v378 = vmul.f32 %v377, 1.442695
    %v379 = vpow.pop %v378
    %v380 = vsub.f32 1.0, %v379
    %v381 = vadd.f32 %v380, 1e-06
    %v382 = vrcp.pop %v381
    %v383 = vmul.f32 %v376, %v382
    %v384 = vmax.f32 %v383, 0.0
    %v385 = vmul.f32 %v355, 0.1
    %v386 = vsub.f32 %v355, %v385
    %v387 = vsub.f32 1.0, %v355
    %v388 = vmul.f32 %v387, %v384
    %v389 = vmul.f32 %v388, 0.00641
    %v390 = vadd.f32 %v386, %v389
    %v391 = vmul.f32 %v360, 0.006737947
    %s392 = scalar_lea.vmem %s2, 20
    %v393 = vld [vmem:[%s392] sm:$0x3]
    %v394 = vmul.f32 %v393, 0.014141815
    %v395 = vadd.f32 %v391, %v394
    %vm396 = vcmp.gt.f32.partialorder %v390, 0.5
    %v397 = vsel %vm396, 1, 0
    %v398 = vcvt.s32.f32 %v397
    %v399 = vmax.f32 %v364, %v398
    %v400 = vsub.f32 1.0, %v399
    %v401 = vadd.f32 %v366, %v400
    %v402 = vsel %vm51, %v390, 0.0
    %403 = vadd.xlane.f32.xlu0 %v402
    %v404 = vpop.xlane.xlu0 %403
    %v405 = vmul.f32 %v390, 0.3106
    %v406 = vmul.f32 %v404, -0.0497
    %v407 = vadd.f32 %v405, %v406
    %v408 = vadd.f32 %v407, %v17
    %v409 = vadd.f32 %v408, %v395
    %v410 = vmul.f32 %v409, 270.0
    %v411 = vsub.f32 %v410, 108.0
    %v412 = vmul.f32 %v411, -0.154
    %v413 = vmul.f32 %v412, 1.442695
    %v414 = vpow.pop %v413
    %v415 = vsub.f32 1.0, %v414
    %v416 = vadd.f32 %v415, 1e-06
    %v417 = vrcp.pop %v416
    %v418 = vmul.f32 %v411, %v417
    %v419 = vmax.f32 %v418, 0.0
    %v420 = vmul.f32 %v390, 0.1
    %v421 = vsub.f32 %v390, %v420
    %v422 = vsub.f32 1.0, %v390
    %v423 = vmul.f32 %v422, %v419
    %v424 = vmul.f32 %v423, 0.00641
    %v425 = vadd.f32 %v421, %v424
    %v426 = vmul.f32 %v395, 0.006737947
    %s427 = scalar_lea.vmem %s2, 22
    %v428 = vld [vmem:[%s427] sm:$0x3]
    %v429 = vmul.f32 %v428, 0.014141815
    %v430 = vadd.f32 %v426, %v429
    %vm431 = vcmp.gt.f32.partialorder %v425, 0.5
    %v432 = vsel %vm431, 1, 0
    %v433 = vcvt.s32.f32 %v432
    %v434 = vmax.f32 %v399, %v433
    %v435 = vsub.f32 1.0, %v434
    %v436 = vadd.f32 %v401, %v435
    %v437 = vsel %vm51, %v425, 0.0
    %438 = vadd.xlane.f32.xlu0 %v437
    %v439 = vpop.xlane.xlu0 %438
    %v440 = vmul.f32 %v425, 0.3106
    %v441 = vmul.f32 %v439, -0.0497
    %v442 = vadd.f32 %v440, %v441
    %v443 = vadd.f32 %v442, %v17
    %v444 = vadd.f32 %v443, %v430
    %v445 = vmul.f32 %v444, 270.0
    %v446 = vsub.f32 %v445, 108.0
    %v447 = vmul.f32 %v446, -0.154
    %v448 = vmul.f32 %v447, 1.442695
    %v449 = vpow.pop %v448
    %v450 = vsub.f32 1.0, %v449
    %v451 = vadd.f32 %v450, 1e-06
    %v452 = vrcp.pop %v451
    %v453 = vmul.f32 %v446, %v452
    %v454 = vmax.f32 %v453, 0.0
    %v455 = vmul.f32 %v425, 0.1
    %v456 = vsub.f32 %v425, %v455
    %v457 = vsub.f32 1.0, %v425
    %v458 = vmul.f32 %v457, %v454
    %v459 = vmul.f32 %v458, 0.00641
    %v460 = vadd.f32 %v456, %v459
    %v461 = vmul.f32 %v430, 0.006737947
    %s462 = scalar_lea.vmem %s2, 24
    %v463 = vld [vmem:[%s462] sm:$0x3]
    %v464 = vmul.f32 %v463, 0.014141815
    %v465 = vadd.f32 %v461, %v464
    %vm466 = vcmp.gt.f32.partialorder %v460, 0.5
    %v467 = vsel %vm466, 1, 0
    %v468 = vcvt.s32.f32 %v467
    %v469 = vmax.f32 %v434, %v468
    %v470 = vsub.f32 1.0, %v469
    %v471 = vadd.f32 %v436, %v470
    %v472 = vsel %vm51, %v460, 0.0
    %473 = vadd.xlane.f32.xlu0 %v472
    %v474 = vpop.xlane.xlu0 %473
    %v475 = vmul.f32 %v460, 0.3106
    %v476 = vmul.f32 %v474, -0.0497
    %v477 = vadd.f32 %v475, %v476
    %v478 = vadd.f32 %v477, %v17
    %v479 = vadd.f32 %v478, %v465
    %v480 = vmul.f32 %v479, 270.0
    %v481 = vsub.f32 %v480, 108.0
    %v482 = vmul.f32 %v481, -0.154
    %v483 = vmul.f32 %v482, 1.442695
    %v484 = vpow.pop %v483
    %v485 = vsub.f32 1.0, %v484
    %v486 = vadd.f32 %v485, 1e-06
    %v487 = vrcp.pop %v486
    %v488 = vmul.f32 %v481, %v487
    %v489 = vmax.f32 %v488, 0.0
    %v490 = vmul.f32 %v460, 0.1
    %v491 = vsub.f32 %v460, %v490
    %v492 = vsub.f32 1.0, %v460
    %v493 = vmul.f32 %v492, %v489
    %v494 = vmul.f32 %v493, 0.00641
    %v495 = vadd.f32 %v491, %v494
    %v496 = vmul.f32 %v465, 0.006737947
    %s497 = scalar_lea.vmem %s2, 26
    %v498 = vld [vmem:[%s497] sm:$0x3]
    %v499 = vmul.f32 %v498, 0.014141815
    %v500 = vadd.f32 %v496, %v499
    %vm501 = vcmp.gt.f32.partialorder %v495, 0.5
    %v502 = vsel %vm501, 1, 0
    %v503 = vcvt.s32.f32 %v502
    %v504 = vmax.f32 %v469, %v503
    %v505 = vsub.f32 1.0, %v504
    %v506 = vadd.f32 %v471, %v505
    %v507 = vsel %vm51, %v495, 0.0
    %508 = vadd.xlane.f32.xlu0 %v507
    %v509 = vpop.xlane.xlu0 %508
    %v510 = vmul.f32 %v495, 0.3106
    %v511 = vmul.f32 %v509, -0.0497
    %v512 = vadd.f32 %v510, %v511
    %v513 = vadd.f32 %v512, %v17
    %v514 = vadd.f32 %v513, %v500
    %v515 = vmul.f32 %v514, 270.0
    %v516 = vsub.f32 %v515, 108.0
    %v517 = vmul.f32 %v516, -0.154
    %v518 = vmul.f32 %v517, 1.442695
    %v519 = vpow.pop %v518
    %v520 = vsub.f32 1.0, %v519
    %v521 = vadd.f32 %v520, 1e-06
    %v522 = vrcp.pop %v521
    %v523 = vmul.f32 %v516, %v522
    %v524 = vmax.f32 %v523, 0.0
    %v525 = vmul.f32 %v495, 0.1
    %v526 = vsub.f32 %v495, %v525
    %v527 = vsub.f32 1.0, %v495
    %v528 = vmul.f32 %v527, %v524
    %v529 = vmul.f32 %v528, 0.00641
    %v530 = vadd.f32 %v526, %v529
    %v531 = vmul.f32 %v500, 0.006737947
    %s532 = scalar_lea.vmem %s2, 28
    %v533 = vld [vmem:[%s532] sm:$0x3]
    %v534 = vmul.f32 %v533, 0.014141815
    %v535 = vadd.f32 %v531, %v534
    %vm536 = vcmp.gt.f32.partialorder %v530, 0.5
    %v537 = vsel %vm536, 1, 0
    %v538 = vcvt.s32.f32 %v537
    %v539 = vmax.f32 %v504, %v538
    %v540 = vsub.f32 1.0, %v539
    %v541 = vadd.f32 %v506, %v540
    %v542 = vsel %vm51, %v530, 0.0
    %543 = vadd.xlane.f32.xlu0 %v542
    %v544 = vpop.xlane.xlu0 %543
    %v545 = vmul.f32 %v530, 0.3106
    %v546 = vmul.f32 %v544, -0.0497
    %v547 = vadd.f32 %v545, %v546
    %v548 = vadd.f32 %v547, %v17
    %v549 = vadd.f32 %v548, %v535
    %v550 = vmul.f32 %v549, 270.0
    %v551 = vsub.f32 %v550, 108.0
    %v552 = vmul.f32 %v551, -0.154
    %v553 = vmul.f32 %v552, 1.442695
    %v554 = vpow.pop %v553
    %v555 = vsub.f32 1.0, %v554
    %v556 = vadd.f32 %v555, 1e-06
    %v557 = vrcp.pop %v556
    %v558 = vmul.f32 %v551, %v557
    %v559 = vmax.f32 %v558, 0.0
    %v560 = vmul.f32 %v530, 0.1
    %v561 = vsub.f32 %v530, %v560
    %v562 = vsub.f32 1.0, %v530
    %v563 = vmul.f32 %v562, %v559
    %v564 = vmul.f32 %v563, 0.00641
    %v565 = vadd.f32 %v561, %v564
    %v566 = vmul.f32 %v535, 0.006737947
    %s567 = scalar_lea.vmem %s2, 30
    %v568 = vld [vmem:[%s567] sm:$0x3]
    %v569 = vmul.f32 %v568, 0.014141815
    %v570 = vadd.f32 %v566, %v569
    %vm571 = vcmp.gt.f32.partialorder %v565, 0.5
    %v572 = vsel %vm571, 1, 0
    %v573 = vcvt.s32.f32 %v572
    %v574 = vmax.f32 %v539, %v573
    %v575 = vsub.f32 1.0, %v574
    %v576 = vadd.f32 %v541, %v575
    %v577 = vsel %vm51, %v565, 0.0
    %578 = vadd.xlane.f32.xlu0 %v577
    %v579 = vpop.xlane.xlu0 %578
    %v580 = vmul.f32 %v565, 0.3106
    %v581 = vmul.f32 %v579, -0.0497
    %v582 = vadd.f32 %v580, %v581
    %v583 = vadd.f32 %v582, %v17
    %v584 = vadd.f32 %v583, %v570
    %v585 = vmul.f32 %v584, 270.0
    %v586 = vsub.f32 %v585, 108.0
    %v587 = vmul.f32 %v586, -0.154
    %v588 = vmul.f32 %v587, 1.442695
    %v589 = vpow.pop %v588
    %v590 = vsub.f32 1.0, %v589
    %v591 = vadd.f32 %v590, 1e-06
    %v592 = vrcp.pop %v591
    %v593 = vmul.f32 %v586, %v592
    %v594 = vmax.f32 %v593, 0.0
    %v595 = vmul.f32 %v565, 0.1
    %v596 = vsub.f32 %v565, %v595
    %v597 = vsub.f32 1.0, %v565
    %v598 = vmul.f32 %v597, %v594
    %v599 = vmul.f32 %v598, 0.00641
    %v600 = vadd.f32 %v596, %v599
    %v601 = vmul.f32 %v570, 0.006737947
    %s602 = scalar_lea.vmem %s2, 32
    %v603 = vld [vmem:[%s602] sm:$0x3]
    %v604 = vmul.f32 %v603, 0.014141815
    %v605 = vadd.f32 %v601, %v604
    %vm606 = vcmp.gt.f32.partialorder %v600, 0.5
    %v607 = vsel %vm606, 1, 0
    %v608 = vcvt.s32.f32 %v607
    %v609 = vmax.f32 %v574, %v608
    %v610 = vsub.f32 1.0, %v609
    %v611 = vadd.f32 %v576, %v610
    %v612 = vsel %vm51, %v600, 0.0
    %613 = vadd.xlane.f32.xlu0 %v612
    %v614 = vpop.xlane.xlu0 %613
    %v615 = vmul.f32 %v600, 0.3106
    %v616 = vmul.f32 %v614, -0.0497
    %v617 = vadd.f32 %v615, %v616
    %v618 = vadd.f32 %v617, %v17
    %v619 = vadd.f32 %v618, %v605
    %v620 = vmul.f32 %v619, 270.0
    %v621 = vsub.f32 %v620, 108.0
    %v622 = vmul.f32 %v621, -0.154
    %v623 = vmul.f32 %v622, 1.442695
    %v624 = vpow.pop %v623
    %v625 = vsub.f32 1.0, %v624
    %v626 = vadd.f32 %v625, 1e-06
    %v627 = vrcp.pop %v626
    %v628 = vmul.f32 %v621, %v627
    %v629 = vmax.f32 %v628, 0.0
    %v630 = vmul.f32 %v600, 0.1
    %v631 = vsub.f32 %v600, %v630
    %v632 = vsub.f32 1.0, %v600
    %v633 = vmul.f32 %v632, %v629
    %v634 = vmul.f32 %v633, 0.00641
    %v635 = vadd.f32 %v631, %v634
    %v636 = vmul.f32 %v605, 0.006737947
    %s637 = scalar_lea.vmem %s2, 34
    %v638 = vld [vmem:[%s637] sm:$0x3]
    %v639 = vmul.f32 %v638, 0.014141815
    %v640 = vadd.f32 %v636, %v639
    %vm641 = vcmp.gt.f32.partialorder %v635, 0.5
    %v642 = vsel %vm641, 1, 0
    %v643 = vcvt.s32.f32 %v642
    %v644 = vmax.f32 %v609, %v643
    %v645 = vsub.f32 1.0, %v644
    %v646 = vadd.f32 %v611, %v645
    %v647 = vsel %vm51, %v635, 0.0
    %648 = vadd.xlane.f32.xlu0 %v647
    %v649 = vpop.xlane.xlu0 %648
    %v650 = vmul.f32 %v635, 0.3106
    %v651 = vmul.f32 %v649, -0.0497
    %v652 = vadd.f32 %v650, %v651
    %v653 = vadd.f32 %v652, %v17
    %v654 = vadd.f32 %v653, %v640
    %v655 = vmul.f32 %v654, 270.0
    %v656 = vsub.f32 %v655, 108.0
    %v657 = vmul.f32 %v656, -0.154
    %v658 = vmul.f32 %v657, 1.442695
    %v659 = vpow.pop %v658
    %v660 = vsub.f32 1.0, %v659
    %v661 = vadd.f32 %v660, 1e-06
    %v662 = vrcp.pop %v661
    %v663 = vmul.f32 %v656, %v662
    %v664 = vmax.f32 %v663, 0.0
    %v665 = vmul.f32 %v635, 0.1
    %v666 = vsub.f32 %v635, %v665
    %v667 = vsub.f32 1.0, %v635
    %v668 = vmul.f32 %v667, %v664
    %v669 = vmul.f32 %v668, 0.00641
    %v670 = vadd.f32 %v666, %v669
    %v671 = vmul.f32 %v640, 0.006737947
    %s672 = scalar_lea.vmem %s2, 36
    %v673 = vld [vmem:[%s672] sm:$0x3]
    %v674 = vmul.f32 %v673, 0.014141815
    %v675 = vadd.f32 %v671, %v674
    %vm676 = vcmp.gt.f32.partialorder %v670, 0.5
    %v677 = vsel %vm676, 1, 0
    %v678 = vcvt.s32.f32 %v677
    %v679 = vmax.f32 %v644, %v678
    %v680 = vsub.f32 1.0, %v679
    %v681 = vadd.f32 %v646, %v680
    %v682 = vsel %vm51, %v670, 0.0
    %683 = vadd.xlane.f32.xlu0 %v682
    %v684 = vpop.xlane.xlu0 %683
    %v685 = vmul.f32 %v670, 0.3106
    %v686 = vmul.f32 %v684, -0.0497
    %v687 = vadd.f32 %v685, %v686
    %v688 = vadd.f32 %v687, %v17
    %v689 = vadd.f32 %v688, %v675
    %v690 = vmul.f32 %v689, 270.0
    %v691 = vsub.f32 %v690, 108.0
    %v692 = vmul.f32 %v691, -0.154
    %v693 = vmul.f32 %v692, 1.442695
    %v694 = vpow.pop %v693
    %v695 = vsub.f32 1.0, %v694
    %v696 = vadd.f32 %v695, 1e-06
    %v697 = vrcp.pop %v696
    %v698 = vmul.f32 %v691, %v697
    %v699 = vmax.f32 %v698, 0.0
    %v700 = vmul.f32 %v670, 0.1
    %v701 = vsub.f32 %v670, %v700
    %v702 = vsub.f32 1.0, %v670
    %v703 = vmul.f32 %v702, %v699
    %v704 = vmul.f32 %v703, 0.00641
    %v705 = vadd.f32 %v701, %v704
    %v706 = vmul.f32 %v675, 0.006737947
    %s707 = scalar_lea.vmem %s2, 38
    %v708 = vld [vmem:[%s707] sm:$0x3]
    %v709 = vmul.f32 %v708, 0.014141815
    %v710 = vadd.f32 %v706, %v709
    %vm711 = vcmp.gt.f32.partialorder %v705, 0.5
    %v712 = vsel %vm711, 1, 0
    %v713 = vcvt.s32.f32 %v712
    %v714 = vmax.f32 %v679, %v713
    %v715 = vsub.f32 1.0, %v714
    %v716 = vadd.f32 %v681, %v715
    %v717 = vsel %vm51, %v705, 0.0
    %718 = vadd.xlane.f32.xlu0 %v717
    %v719 = vpop.xlane.xlu0 %718
    %v720 = vmul.f32 %v705, 0.3106
    %v721 = vmul.f32 %v719, -0.0497
    %v722 = vadd.f32 %v720, %v721
    %v723 = vadd.f32 %v722, %v17
    %v724 = vadd.f32 %v723, %v710
    %v725 = vmul.f32 %v724, 270.0
    %v726 = vsub.f32 %v725, 108.0
    %v727 = vmul.f32 %v726, -0.154
    %v728 = vmul.f32 %v727, 1.442695
    %v729 = vpow.pop %v728
    %v730 = vsub.f32 1.0, %v729
    %v731 = vadd.f32 %v730, 1e-06
    %v732 = vrcp.pop %v731
    %v733 = vmul.f32 %v726, %v732
    %v734 = vmax.f32 %v733, 0.0
    %v735 = vmul.f32 %v705, 0.1
    %v736 = vsub.f32 %v705, %v735
    %v737 = vsub.f32 1.0, %v705
    %v738 = vmul.f32 %v737, %v734
    %v739 = vmul.f32 %v738, 0.00641
    %v740 = vadd.f32 %v736, %v739
    %v741 = vmul.f32 %v710, 0.006737947
    %s742 = scalar_lea.vmem %s2, 40
    %v743 = vld [vmem:[%s742] sm:$0x3]
    %v744 = vmul.f32 %v743, 0.014141815
    %v745 = vadd.f32 %v741, %v744
    %vm746 = vcmp.gt.f32.partialorder %v740, 0.5
    %v747 = vsel %vm746, 1, 0
    %v748 = vcvt.s32.f32 %v747
    %v749 = vmax.f32 %v714, %v748
    %v750 = vsub.f32 1.0, %v749
    %v751 = vadd.f32 %v716, %v750
    %v752 = vsel %vm51, %v740, 0.0
    %753 = vadd.xlane.f32.xlu0 %v752
    %v754 = vpop.xlane.xlu0 %753
    %v755 = vmul.f32 %v740, 0.3106
    %v756 = vmul.f32 %v754, -0.0497
    %v757 = vadd.f32 %v755, %v756
    %v758 = vadd.f32 %v757, %v17
    %v759 = vadd.f32 %v758, %v745
    %v760 = vmul.f32 %v759, 270.0
    %v761 = vsub.f32 %v760, 108.0
    %v762 = vmul.f32 %v761, -0.154
    %v763 = vmul.f32 %v762, 1.442695
    %v764 = vpow.pop %v763
    %v765 = vsub.f32 1.0, %v764
    %v766 = vadd.f32 %v765, 1e-06
    %v767 = vrcp.pop %v766
    %v768 = vmul.f32 %v761, %v767
    %v769 = vmax.f32 %v768, 0.0
    %v770 = vmul.f32 %v740, 0.1
    %v771 = vsub.f32 %v740, %v770
    %v772 = vsub.f32 1.0, %v740
    %v773 = vmul.f32 %v772, %v769
    %v774 = vmul.f32 %v773, 0.00641
    %v775 = vadd.f32 %v771, %v774
    %v776 = vmul.f32 %v745, 0.006737947
    %s777 = scalar_lea.vmem %s2, 42
    %v778 = vld [vmem:[%s777] sm:$0x3]
    %v779 = vmul.f32 %v778, 0.014141815
    %v780 = vadd.f32 %v776, %v779
    %vm781 = vcmp.gt.f32.partialorder %v775, 0.5
    %v782 = vsel %vm781, 1, 0
    %v783 = vcvt.s32.f32 %v782
    %v784 = vmax.f32 %v749, %v783
    %v785 = vsub.f32 1.0, %v784
    %v786 = vadd.f32 %v751, %v785
    %v787 = vsel %vm51, %v775, 0.0
    %788 = vadd.xlane.f32.xlu0 %v787
    %v789 = vpop.xlane.xlu0 %788
    %v790 = vmul.f32 %v775, 0.3106
    %v791 = vmul.f32 %v789, -0.0497
    %v792 = vadd.f32 %v790, %v791
    %v793 = vadd.f32 %v792, %v17
    %v794 = vadd.f32 %v793, %v780
    %v795 = vmul.f32 %v794, 270.0
    %v796 = vsub.f32 %v795, 108.0
    %v797 = vmul.f32 %v796, -0.154
    %v798 = vmul.f32 %v797, 1.442695
    %v799 = vpow.pop %v798
    %v800 = vsub.f32 1.0, %v799
    %v801 = vadd.f32 %v800, 1e-06
    %v802 = vrcp.pop %v801
    %v803 = vmul.f32 %v796, %v802
    %v804 = vmax.f32 %v803, 0.0
    %v805 = vmul.f32 %v775, 0.1
    %v806 = vsub.f32 %v775, %v805
    %v807 = vsub.f32 1.0, %v775
    %v808 = vmul.f32 %v807, %v804
    %v809 = vmul.f32 %v808, 0.00641
    %v810 = vadd.f32 %v806, %v809
    %v811 = vmul.f32 %v780, 0.006737947
    %s812 = scalar_lea.vmem %s2, 44
    %v813 = vld [vmem:[%s812] sm:$0x3]
    %v814 = vmul.f32 %v813, 0.014141815
    %v815 = vadd.f32 %v811, %v814
    %vm816 = vcmp.gt.f32.partialorder %v810, 0.5
    %v817 = vsel %vm816, 1, 0
    %v818 = vcvt.s32.f32 %v817
    %v819 = vmax.f32 %v784, %v818
    %v820 = vsub.f32 1.0, %v819
    %v821 = vadd.f32 %v786, %v820
    %v822 = vsel %vm51, %v810, 0.0
    %823 = vadd.xlane.f32.xlu0 %v822
    %v824 = vpop.xlane.xlu0 %823
    %v825 = vmul.f32 %v810, 0.3106
    %v826 = vmul.f32 %v824, -0.0497
    %v827 = vadd.f32 %v825, %v826
    %v828 = vadd.f32 %v827, %v17
    %v829 = vadd.f32 %v828, %v815
    %v830 = vmul.f32 %v829, 270.0
    %v831 = vsub.f32 %v830, 108.0
    %v832 = vmul.f32 %v831, -0.154
    %v833 = vmul.f32 %v832, 1.442695
    %v834 = vpow.pop %v833
    %v835 = vsub.f32 1.0, %v834
    %v836 = vadd.f32 %v835, 1e-06
    %v837 = vrcp.pop %v836
    %v838 = vmul.f32 %v831, %v837
    %v839 = vmax.f32 %v838, 0.0
    %v840 = vmul.f32 %v810, 0.1
    %v841 = vsub.f32 %v810, %v840
    %v842 = vsub.f32 1.0, %v810
    %v843 = vmul.f32 %v842, %v839
    %v844 = vmul.f32 %v843, 0.00641
    %v845 = vadd.f32 %v841, %v844
    %v846 = vmul.f32 %v815, 0.006737947
    %s847 = scalar_lea.vmem %s2, 46
    %v848 = vld [vmem:[%s847] sm:$0x3]
    %v849 = vmul.f32 %v848, 0.014141815
    %v850 = vadd.f32 %v846, %v849
    %vm851 = vcmp.gt.f32.partialorder %v845, 0.5
    %v852 = vsel %vm851, 1, 0
    %v853 = vcvt.s32.f32 %v852
    %v854 = vmax.f32 %v819, %v853
    %v855 = vsub.f32 1.0, %v854
    %v856 = vadd.f32 %v821, %v855
    %v857 = vsel %vm51, %v845, 0.0
    %858 = vadd.xlane.f32.xlu0 %v857
    %v859 = vpop.xlane.xlu0 %858
    %v860 = vmul.f32 %v845, 0.3106
    %v861 = vmul.f32 %v859, -0.0497
    %v862 = vadd.f32 %v860, %v861
    %v863 = vadd.f32 %v862, %v17
    %v864 = vadd.f32 %v863, %v850
    %v865 = vmul.f32 %v864, 270.0
    %v866 = vsub.f32 %v865, 108.0
    %v867 = vmul.f32 %v866, -0.154
    %v868 = vmul.f32 %v867, 1.442695
    %v869 = vpow.pop %v868
    %v870 = vsub.f32 1.0, %v869
    %v871 = vadd.f32 %v870, 1e-06
    %v872 = vrcp.pop %v871
    %v873 = vmul.f32 %v866, %v872
    %v874 = vmax.f32 %v873, 0.0
    %v875 = vmul.f32 %v845, 0.1
    %v876 = vsub.f32 %v845, %v875
    %v877 = vsub.f32 1.0, %v845
    %v878 = vmul.f32 %v877, %v874
    %v879 = vmul.f32 %v878, 0.00641
    %v880 = vadd.f32 %v876, %v879
    %v881 = vmul.f32 %v850, 0.006737947
    %s882 = scalar_lea.vmem %s2, 48
    %v883 = vld [vmem:[%s882] sm:$0x3]
    %v884 = vmul.f32 %v883, 0.014141815
    %v885 = vadd.f32 %v881, %v884
    %vm886 = vcmp.gt.f32.partialorder %v880, 0.5
    %v887 = vsel %vm886, 1, 0
    %v888 = vcvt.s32.f32 %v887
    %v889 = vmax.f32 %v854, %v888
    %v890 = vsub.f32 1.0, %v889
    %v891 = vadd.f32 %v856, %v890
    %v892 = vsel %vm51, %v880, 0.0
    %893 = vadd.xlane.f32.xlu0 %v892
    %v894 = vpop.xlane.xlu0 %893
    %v895 = vmul.f32 %v880, 0.3106
    %v896 = vmul.f32 %v894, -0.0497
    %v897 = vadd.f32 %v895, %v896
    %v898 = vadd.f32 %v897, %v17
    %v899 = vadd.f32 %v898, %v885
    %v900 = vmul.f32 %v899, 270.0
    %v901 = vsub.f32 %v900, 108.0
    %v902 = vmul.f32 %v901, -0.154
    %v903 = vmul.f32 %v902, 1.442695
    %v904 = vpow.pop %v903
    %v905 = vsub.f32 1.0, %v904
    %v906 = vadd.f32 %v905, 1e-06
    %v907 = vrcp.pop %v906
    %v908 = vmul.f32 %v901, %v907
    %v909 = vmax.f32 %v908, 0.0
    %v910 = vmul.f32 %v880, 0.1
    %v911 = vsub.f32 %v880, %v910
    %v912 = vsub.f32 1.0, %v880
    %v913 = vmul.f32 %v912, %v909
    %v914 = vmul.f32 %v913, 0.00641
    %v915 = vadd.f32 %v911, %v914
    %v916 = vmul.f32 %v885, 0.006737947
    %s917 = scalar_lea.vmem %s2, 50
    %v918 = vld [vmem:[%s917] sm:$0x3]
    %v919 = vmul.f32 %v918, 0.014141815
    %v920 = vadd.f32 %v916, %v919
    %vm921 = vcmp.gt.f32.partialorder %v915, 0.5
    %v922 = vsel %vm921, 1, 0
    %v923 = vcvt.s32.f32 %v922
    %v924 = vmax.f32 %v889, %v923
    %v925 = vsub.f32 1.0, %v924
    %v926 = vadd.f32 %v891, %v925
    %v927 = vsel %vm51, %v915, 0.0
    %928 = vadd.xlane.f32.xlu0 %v927
    %v929 = vpop.xlane.xlu0 %928
    %v930 = vmul.f32 %v915, 0.3106
    %v931 = vmul.f32 %v929, -0.0497
    %v932 = vadd.f32 %v930, %v931
    %v933 = vadd.f32 %v932, %v17
    %v934 = vadd.f32 %v933, %v920
    %v935 = vmul.f32 %v934, 270.0
    %v936 = vsub.f32 %v935, 108.0
    %v937 = vmul.f32 %v936, -0.154
    %v938 = vmul.f32 %v937, 1.442695
    %v939 = vpow.pop %v938
    %v940 = vsub.f32 1.0, %v939
    %v941 = vadd.f32 %v940, 1e-06
    %v942 = vrcp.pop %v941
    %v943 = vmul.f32 %v936, %v942
    %v944 = vmax.f32 %v943, 0.0
    %v945 = vmul.f32 %v915, 0.1
    %v946 = vsub.f32 %v915, %v945
    %v947 = vsub.f32 1.0, %v915
    %v948 = vmul.f32 %v947, %v944
    %v949 = vmul.f32 %v948, 0.00641
    %v950 = vadd.f32 %v946, %v949
    %v951 = vmul.f32 %v920, 0.006737947
    %s952 = scalar_lea.vmem %s2, 52
    %v953 = vld [vmem:[%s952] sm:$0x3]
    %v954 = vmul.f32 %v953, 0.014141815
    %v955 = vadd.f32 %v951, %v954
    %vm956 = vcmp.gt.f32.partialorder %v950, 0.5
    %v957 = vsel %vm956, 1, 0
    %v958 = vcvt.s32.f32 %v957
    %v959 = vmax.f32 %v924, %v958
    %v960 = vsub.f32 1.0, %v959
    %v961 = vadd.f32 %v926, %v960
    %v962 = vsel %vm51, %v950, 0.0
    %963 = vadd.xlane.f32.xlu0 %v962
    %v964 = vpop.xlane.xlu0 %963
    %v965 = vmul.f32 %v950, 0.3106
    %v966 = vmul.f32 %v964, -0.0497
    %v967 = vadd.f32 %v965, %v966
    %v968 = vadd.f32 %v967, %v17
    %v969 = vadd.f32 %v968, %v955
    %v970 = vmul.f32 %v969, 270.0
    %v971 = vsub.f32 %v970, 108.0
    %v972 = vmul.f32 %v971, -0.154
    %v973 = vmul.f32 %v972, 1.442695
    %v974 = vpow.pop %v973
    %v975 = vsub.f32 1.0, %v974
    %v976 = vadd.f32 %v975, 1e-06
    %v977 = vrcp.pop %v976
    %v978 = vmul.f32 %v971, %v977
    %v979 = vmax.f32 %v978, 0.0
    %v980 = vmul.f32 %v950, 0.1
    %v981 = vsub.f32 %v950, %v980
    %v982 = vsub.f32 1.0, %v950
    %v983 = vmul.f32 %v982, %v979
    %v984 = vmul.f32 %v983, 0.00641
    %v985 = vadd.f32 %v981, %v984
    %v986 = vmul.f32 %v955, 0.006737947
    %s987 = scalar_lea.vmem %s2, 54
    %v988 = vld [vmem:[%s987] sm:$0x3]
    %v989 = vmul.f32 %v988, 0.014141815
    %v990 = vadd.f32 %v986, %v989
    %vm991 = vcmp.gt.f32.partialorder %v985, 0.5
    %v992 = vsel %vm991, 1, 0
    %v993 = vcvt.s32.f32 %v992
    %v994 = vmax.f32 %v959, %v993
    %v995 = vsub.f32 1.0, %v994
    %v996 = vadd.f32 %v961, %v995
    %v997 = vsel %vm51, %v985, 0.0
    %998 = vadd.xlane.f32.xlu0 %v997
    %v999 = vpop.xlane.xlu0 %998
    %v1000 = vmul.f32 %v985, 0.3106
    %v1001 = vmul.f32 %v999, -0.0497
    %v1002 = vadd.f32 %v1000, %v1001
    %v1003 = vadd.f32 %v1002, %v17
    %v1004 = vadd.f32 %v1003, %v990
    %v1005 = vmul.f32 %v1004, 270.0
    %v1006 = vsub.f32 %v1005, 108.0
    %v1007 = vmul.f32 %v1006, -0.154
    %v1008 = vmul.f32 %v1007, 1.442695
    %v1009 = vpow.pop %v1008
    %v1010 = vsub.f32 1.0, %v1009
    %v1011 = vadd.f32 %v1010, 1e-06
    %v1012 = vrcp.pop %v1011
    %v1013 = vmul.f32 %v1006, %v1012
    %v1014 = vmax.f32 %v1013, 0.0
    %v1015 = vmul.f32 %v985, 0.1
    %v1016 = vsub.f32 %v985, %v1015
    %v1017 = vsub.f32 1.0, %v985
    %v1018 = vmul.f32 %v1017, %v1014
    %v1019 = vmul.f32 %v1018, 0.00641
    %v1020 = vadd.f32 %v1016, %v1019
    %v1021 = vmul.f32 %v990, 0.006737947
    %s1022 = scalar_lea.vmem %s2, 56
    %v1023 = vld [vmem:[%s1022] sm:$0x3]
    %v1024 = vmul.f32 %v1023, 0.014141815
    %v1025 = vadd.f32 %v1021, %v1024
    %vm1026 = vcmp.gt.f32.partialorder %v1020, 0.5
    %v1027 = vsel %vm1026, 1, 0
    %v1028 = vcvt.s32.f32 %v1027
    %v1029 = vmax.f32 %v994, %v1028
    %v1030 = vsub.f32 1.0, %v1029
    %v1031 = vadd.f32 %v996, %v1030
    %v1032 = vsel %vm51, %v1020, 0.0
    %1033 = vadd.xlane.f32.xlu0 %v1032
    %v1034 = vpop.xlane.xlu0 %1033
    %v1035 = vmul.f32 %v1020, 0.3106
    %v1036 = vmul.f32 %v1034, -0.0497
    %v1037 = vadd.f32 %v1035, %v1036
    %v1038 = vadd.f32 %v1037, %v17
    %v1039 = vadd.f32 %v1038, %v1025
    %v1040 = vmul.f32 %v1039, 270.0
    %v1041 = vsub.f32 %v1040, 108.0
    %v1042 = vmul.f32 %v1041, -0.154
    %v1043 = vmul.f32 %v1042, 1.442695
    %v1044 = vpow.pop %v1043
    %v1045 = vsub.f32 1.0, %v1044
    %v1046 = vadd.f32 %v1045, 1e-06
    %v1047 = vrcp.pop %v1046
    %v1048 = vmul.f32 %v1041, %v1047
    %v1049 = vmax.f32 %v1048, 0.0
    %v1050 = vmul.f32 %v1020, 0.1
    %v1051 = vsub.f32 %v1020, %v1050
    %v1052 = vsub.f32 1.0, %v1020
    %v1053 = vmul.f32 %v1052, %v1049
    %v1054 = vmul.f32 %v1053, 0.00641
    %v1055 = vadd.f32 %v1051, %v1054
    %v1056 = vmul.f32 %v1025, 0.006737947
    %s1057 = scalar_lea.vmem %s2, 58
    %v1058 = vld [vmem:[%s1057] sm:$0x3]
    %v1059 = vmul.f32 %v1058, 0.014141815
    %v1060 = vadd.f32 %v1056, %v1059
    %vm1061 = vcmp.gt.f32.partialorder %v1055, 0.5
    %v1062 = vsel %vm1061, 1, 0
    %v1063 = vcvt.s32.f32 %v1062
    %v1064 = vmax.f32 %v1029, %v1063
    %v1065 = vsub.f32 1.0, %v1064
    %v1066 = vadd.f32 %v1031, %v1065
    %v1067 = vsel %vm51, %v1055, 0.0
    %1068 = vadd.xlane.f32.xlu0 %v1067
    %v1069 = vpop.xlane.xlu0 %1068
    %v1070 = vmul.f32 %v1055, 0.3106
    %v1071 = vmul.f32 %v1069, -0.0497
    %v1072 = vadd.f32 %v1070, %v1071
    %v1073 = vadd.f32 %v1072, %v17
    %v1074 = vadd.f32 %v1073, %v1060
    %v1075 = vmul.f32 %v1074, 270.0
    %v1076 = vsub.f32 %v1075, 108.0
    %v1077 = vmul.f32 %v1076, -0.154
    %v1078 = vmul.f32 %v1077, 1.442695
    %v1079 = vpow.pop %v1078
    %v1080 = vsub.f32 1.0, %v1079
    %v1081 = vadd.f32 %v1080, 1e-06
    %v1082 = vrcp.pop %v1081
    %v1083 = vmul.f32 %v1076, %v1082
    %v1084 = vmax.f32 %v1083, 0.0
    %v1085 = vmul.f32 %v1055, 0.1
    %v1086 = vsub.f32 %v1055, %v1085
    %v1087 = vsub.f32 1.0, %v1055
    %v1088 = vmul.f32 %v1087, %v1084
    %v1089 = vmul.f32 %v1088, 0.00641
    %v1090 = vadd.f32 %v1086, %v1089
    %v1091 = vmul.f32 %v1060, 0.006737947
    %s1092 = scalar_lea.vmem %s2, 60
    %v1093 = vld [vmem:[%s1092] sm:$0x3]
    %v1094 = vmul.f32 %v1093, 0.014141815
    %v1095 = vadd.f32 %v1091, %v1094
    %vm1096 = vcmp.gt.f32.partialorder %v1090, 0.5
    %v1097 = vsel %vm1096, 1, 0
    %v1098 = vcvt.s32.f32 %v1097
    %v1099 = vmax.f32 %v1064, %v1098
    %v1100 = vsub.f32 1.0, %v1099
    %v1101 = vadd.f32 %v1066, %v1100
    %v1102 = vsel %vm51, %v1090, 0.0
    %1103 = vadd.xlane.f32.xlu0 %v1102
    %v1104 = vpop.xlane.xlu0 %1103
    %v1105 = vmul.f32 %v1090, 0.3106
    %v1106 = vmul.f32 %v1104, -0.0497
    %v1107 = vadd.f32 %v1105, %v1106
    %v1108 = vadd.f32 %v1107, %v17
    %v1109 = vadd.f32 %v1108, %v1095
    %v1110 = vmul.f32 %v1109, 270.0
    %v1111 = vsub.f32 %v1110, 108.0
    %v1112 = vmul.f32 %v1111, -0.154
    %v1113 = vmul.f32 %v1112, 1.442695
    %v1114 = vpow.pop %v1113
    %v1115 = vsub.f32 1.0, %v1114
    %v1116 = vadd.f32 %v1115, 1e-06
    %v1117 = vrcp.pop %v1116
    %v1118 = vmul.f32 %v1111, %v1117
    %v1119 = vmax.f32 %v1118, 0.0
    %v1120 = vmul.f32 %v1090, 0.1
    %v1121 = vsub.f32 %v1090, %v1120
    %v1122 = vsub.f32 1.0, %v1090
    %v1123 = vmul.f32 %v1122, %v1119
    %v1124 = vmul.f32 %v1123, 0.00641
    %v1125 = vadd.f32 %v1121, %v1124
    %v1126 = vmul.f32 %v1095, 0.006737947
    %s1127 = scalar_lea.vmem %s2, 62
    %v1128 = vld [vmem:[%s1127] sm:$0x3]
    %v1129 = vmul.f32 %v1128, 0.014141815
    %v1130 = vadd.f32 %v1126, %v1129
    %vm1131 = vcmp.gt.f32.partialorder %v1125, 0.5
    %v1132 = vsel %vm1131, 1, 0
    %v1133 = vcvt.s32.f32 %v1132
    %v1134 = vmax.f32 %v1099, %v1133
    %v1135 = vsub.f32 1.0, %v1134
    %v1136 = vadd.f32 %v1101, %v1135
    %v1137 = vsel %vm51, %v1125, 0.0
    %1138 = vadd.xlane.f32.xlu0 %v1137
    %v1139 = vpop.xlane.xlu0 %1138
    %v1140 = vmul.f32 %v1125, 0.3106
    %v1141 = vmul.f32 %v1139, -0.0497
    %v1142 = vadd.f32 %v1140, %v1141
    %v1143 = vadd.f32 %v1142, %v17
    %v1144 = vadd.f32 %v1143, %v1130
    %v1145 = vmul.f32 %v1144, 270.0
    %v1146 = vsub.f32 %v1145, 108.0
    %v1147 = vmul.f32 %v1146, -0.154
    %v1148 = vmul.f32 %v1147, 1.442695
    %v1149 = vpow.pop %v1148
    %v1150 = vsub.f32 1.0, %v1149
    %v1151 = vadd.f32 %v1150, 1e-06
    %v1152 = vrcp.pop %v1151
    %v1153 = vmul.f32 %v1146, %v1152
    %v1154 = vmax.f32 %v1153, 0.0
    %v1155 = vmul.f32 %v1125, 0.1
    %v1156 = vsub.f32 %v1125, %v1155
    %v1157 = vsub.f32 1.0, %v1125
    %v1158 = vmul.f32 %v1157, %v1154
    %v1159 = vmul.f32 %v1158, 0.00641
    %v1160 = vadd.f32 %v1156, %v1159
    %v1161 = vmul.f32 %v1130, 0.006737947
    %s1162 = scalar_lea.vmem %s2, 64
    %v1163 = vld [vmem:[%s1162] sm:$0x3]
    %v1164 = vmul.f32 %v1163, 0.014141815
    %v1165 = vadd.f32 %v1161, %v1164
    %vm1166 = vcmp.gt.f32.partialorder %v1160, 0.5
    %v1167 = vsel %vm1166, 1, 0
    %v1168 = vcvt.s32.f32 %v1167
    %v1169 = vmax.f32 %v1134, %v1168
    %v1170 = vsub.f32 1.0, %v1169
    %v1171 = vadd.f32 %v1136, %v1170
    %v1172 = vsel %vm51, %v1160, 0.0
    %1173 = vadd.xlane.f32.xlu0 %v1172
    %v1174 = vpop.xlane.xlu0 %1173
    %v1175 = vmul.f32 %v1160, 0.3106
    %v1176 = vmul.f32 %v1174, -0.0497
    %v1177 = vadd.f32 %v1175, %v1176
    %v1178 = vadd.f32 %v1177, %v17
    %v1179 = vadd.f32 %v1178, %v1165
    %v1180 = vmul.f32 %v1179, 270.0
    %v1181 = vsub.f32 %v1180, 108.0
    %v1182 = vmul.f32 %v1181, -0.154
    %v1183 = vmul.f32 %v1182, 1.442695
    %v1184 = vpow.pop %v1183
    %v1185 = vsub.f32 1.0, %v1184
    %v1186 = vadd.f32 %v1185, 1e-06
    %v1187 = vrcp.pop %v1186
    %v1188 = vmul.f32 %v1181, %v1187
    %v1189 = vmax.f32 %v1188, 0.0
    %v1190 = vmul.f32 %v1160, 0.1
    %v1191 = vsub.f32 %v1160, %v1190
    %v1192 = vsub.f32 1.0, %v1160
    %v1193 = vmul.f32 %v1192, %v1189
    %v1194 = vmul.f32 %v1193, 0.00641
    %v1195 = vadd.f32 %v1191, %v1194
    %v1196 = vmul.f32 %v1165, 0.006737947
    %s1197 = scalar_lea.vmem %s2, 66
    %v1198 = vld [vmem:[%s1197] sm:$0x3]
    %v1199 = vmul.f32 %v1198, 0.014141815
    %v1200 = vadd.f32 %v1196, %v1199
    %vm1201 = vcmp.gt.f32.partialorder %v1195, 0.5
    %v1202 = vsel %vm1201, 1, 0
    %v1203 = vcvt.s32.f32 %v1202
    %v1204 = vmax.f32 %v1169, %v1203
    %v1205 = vsub.f32 1.0, %v1204
    %v1206 = vadd.f32 %v1171, %v1205
    %v1207 = vsel %vm51, %v1195, 0.0
    %1208 = vadd.xlane.f32.xlu0 %v1207
    %v1209 = vpop.xlane.xlu0 %1208
    %v1210 = vmul.f32 %v1195, 0.3106
    %v1211 = vmul.f32 %v1209, -0.0497
    %v1212 = vadd.f32 %v1210, %v1211
    %v1213 = vadd.f32 %v1212, %v17
    %v1214 = vadd.f32 %v1213, %v1200
    %v1215 = vmul.f32 %v1214, 270.0
    %v1216 = vsub.f32 %v1215, 108.0
    %v1217 = vmul.f32 %v1216, -0.154
    %v1218 = vmul.f32 %v1217, 1.442695
    %v1219 = vpow.pop %v1218
    %v1220 = vsub.f32 1.0, %v1219
    %v1221 = vadd.f32 %v1220, 1e-06
    %v1222 = vrcp.pop %v1221
    %v1223 = vmul.f32 %v1216, %v1222
    %v1224 = vmax.f32 %v1223, 0.0
    %v1225 = vmul.f32 %v1195, 0.1
    %v1226 = vsub.f32 %v1195, %v1225
    %v1227 = vsub.f32 1.0, %v1195
    %v1228 = vmul.f32 %v1227, %v1224
    %v1229 = vmul.f32 %v1228, 0.00641
    %v1230 = vadd.f32 %v1226, %v1229
    %v1231 = vmul.f32 %v1200, 0.006737947
    %s1232 = scalar_lea.vmem %s2, 68
    %v1233 = vld [vmem:[%s1232] sm:$0x3]
    %v1234 = vmul.f32 %v1233, 0.014141815
    %v1235 = vadd.f32 %v1231, %v1234
    %vm1236 = vcmp.gt.f32.partialorder %v1230, 0.5
    %v1237 = vsel %vm1236, 1, 0
    %v1238 = vcvt.s32.f32 %v1237
    %v1239 = vmax.f32 %v1204, %v1238
    %v1240 = vsub.f32 1.0, %v1239
    %v1241 = vadd.f32 %v1206, %v1240
    %v1242 = vsel %vm51, %v1230, 0.0
    %1243 = vadd.xlane.f32.xlu0 %v1242
    %v1244 = vpop.xlane.xlu0 %1243
    %v1245 = vmul.f32 %v1230, 0.3106
    %v1246 = vmul.f32 %v1244, -0.0497
    %v1247 = vadd.f32 %v1245, %v1246
    %v1248 = vadd.f32 %v1247, %v17
    %v1249 = vadd.f32 %v1248, %v1235
    %v1250 = vmul.f32 %v1249, 270.0
    %v1251 = vsub.f32 %v1250, 108.0
    %v1252 = vmul.f32 %v1251, -0.154
    %v1253 = vmul.f32 %v1252, 1.442695
    %v1254 = vpow.pop %v1253
    %v1255 = vsub.f32 1.0, %v1254
    %v1256 = vadd.f32 %v1255, 1e-06
    %v1257 = vrcp.pop %v1256
    %v1258 = vmul.f32 %v1251, %v1257
    %v1259 = vmax.f32 %v1258, 0.0
    %v1260 = vmul.f32 %v1230, 0.1
    %v1261 = vsub.f32 %v1230, %v1260
    %v1262 = vsub.f32 1.0, %v1230
    %v1263 = vmul.f32 %v1262, %v1259
    %v1264 = vmul.f32 %v1263, 0.00641
    %v1265 = vadd.f32 %v1261, %v1264
    %v1266 = vmul.f32 %v1235, 0.006737947
    %s1267 = scalar_lea.vmem %s2, 70
    %v1268 = vld [vmem:[%s1267] sm:$0x3]
    %v1269 = vmul.f32 %v1268, 0.014141815
    %v1270 = vadd.f32 %v1266, %v1269
    %vm1271 = vcmp.gt.f32.partialorder %v1265, 0.5
    %v1272 = vsel %vm1271, 1, 0
    %v1273 = vcvt.s32.f32 %v1272
    %v1274 = vmax.f32 %v1239, %v1273
    %v1275 = vsub.f32 1.0, %v1274
    %v1276 = vadd.f32 %v1241, %v1275
    %v1277 = vsel %vm51, %v1265, 0.0
    %1278 = vadd.xlane.f32.xlu0 %v1277
    %v1279 = vpop.xlane.xlu0 %1278
    %v1280 = vmul.f32 %v1265, 0.3106
    %v1281 = vmul.f32 %v1279, -0.0497
    %v1282 = vadd.f32 %v1280, %v1281
    %v1283 = vadd.f32 %v1282, %v17
    %v1284 = vadd.f32 %v1283, %v1270
    %v1285 = vmul.f32 %v1284, 270.0
    %v1286 = vsub.f32 %v1285, 108.0
    %v1287 = vmul.f32 %v1286, -0.154
    %v1288 = vmul.f32 %v1287, 1.442695
    %v1289 = vpow.pop %v1288
    %v1290 = vsub.f32 1.0, %v1289
    %v1291 = vadd.f32 %v1290, 1e-06
    %v1292 = vrcp.pop %v1291
    %v1293 = vmul.f32 %v1286, %v1292
    %v1294 = vmax.f32 %v1293, 0.0
    %v1295 = vmul.f32 %v1265, 0.1
    %v1296 = vsub.f32 %v1265, %v1295
    %v1297 = vsub.f32 1.0, %v1265
    %v1298 = vmul.f32 %v1297, %v1294
    %v1299 = vmul.f32 %v1298, 0.00641
    %v1300 = vadd.f32 %v1296, %v1299
    %v1301 = vmul.f32 %v1270, 0.006737947
    %s1302 = scalar_lea.vmem %s2, 72
    %v1303 = vld [vmem:[%s1302] sm:$0x3]
    %v1304 = vmul.f32 %v1303, 0.014141815
    %v1305 = vadd.f32 %v1301, %v1304
    %vm1306 = vcmp.gt.f32.partialorder %v1300, 0.5
    %v1307 = vsel %vm1306, 1, 0
    %v1308 = vcvt.s32.f32 %v1307
    %v1309 = vmax.f32 %v1274, %v1308
    %v1310 = vsub.f32 1.0, %v1309
    %v1311 = vadd.f32 %v1276, %v1310
    %v1312 = vsel %vm51, %v1300, 0.0
    %1313 = vadd.xlane.f32.xlu0 %v1312
    %v1314 = vpop.xlane.xlu0 %1313
    %v1315 = vmul.f32 %v1300, 0.3106
    %v1316 = vmul.f32 %v1314, -0.0497
    %v1317 = vadd.f32 %v1315, %v1316
    %v1318 = vadd.f32 %v1317, %v17
    %v1319 = vadd.f32 %v1318, %v1305
    %v1320 = vmul.f32 %v1319, 270.0
    %v1321 = vsub.f32 %v1320, 108.0
    %v1322 = vmul.f32 %v1321, -0.154
    %v1323 = vmul.f32 %v1322, 1.442695
    %v1324 = vpow.pop %v1323
    %v1325 = vsub.f32 1.0, %v1324
    %v1326 = vadd.f32 %v1325, 1e-06
    %v1327 = vrcp.pop %v1326
    %v1328 = vmul.f32 %v1321, %v1327
    %v1329 = vmax.f32 %v1328, 0.0
    %v1330 = vmul.f32 %v1300, 0.1
    %v1331 = vsub.f32 %v1300, %v1330
    %v1332 = vsub.f32 1.0, %v1300
    %v1333 = vmul.f32 %v1332, %v1329
    %v1334 = vmul.f32 %v1333, 0.00641
    %v1335 = vadd.f32 %v1331, %v1334
    %v1336 = vmul.f32 %v1305, 0.006737947
    %s1337 = scalar_lea.vmem %s2, 74
    %v1338 = vld [vmem:[%s1337] sm:$0x3]
    %v1339 = vmul.f32 %v1338, 0.014141815
    %v1340 = vadd.f32 %v1336, %v1339
    %vm1341 = vcmp.gt.f32.partialorder %v1335, 0.5
    %v1342 = vsel %vm1341, 1, 0
    %v1343 = vcvt.s32.f32 %v1342
    %v1344 = vmax.f32 %v1309, %v1343
    %v1345 = vsub.f32 1.0, %v1344
    %v1346 = vadd.f32 %v1311, %v1345
    %v1347 = vsel %vm51, %v1335, 0.0
    %1348 = vadd.xlane.f32.xlu0 %v1347
    %v1349 = vpop.xlane.xlu0 %1348
    %v1350 = vmul.f32 %v1335, 0.3106
    %v1351 = vmul.f32 %v1349, -0.0497
    %v1352 = vadd.f32 %v1350, %v1351
    %v1353 = vadd.f32 %v1352, %v17
    %v1354 = vadd.f32 %v1353, %v1340
    %v1355 = vmul.f32 %v1354, 270.0
    %v1356 = vsub.f32 %v1355, 108.0
    %v1357 = vmul.f32 %v1356, -0.154
    %v1358 = vmul.f32 %v1357, 1.442695
    %v1359 = vpow.pop %v1358
    %v1360 = vsub.f32 1.0, %v1359
    %v1361 = vadd.f32 %v1360, 1e-06
    %v1362 = vrcp.pop %v1361
    %v1363 = vmul.f32 %v1356, %v1362
    %v1364 = vmax.f32 %v1363, 0.0
    %v1365 = vmul.f32 %v1335, 0.1
    %v1366 = vsub.f32 %v1335, %v1365
    %v1367 = vsub.f32 1.0, %v1335
    %v1368 = vmul.f32 %v1367, %v1364
    %v1369 = vmul.f32 %v1368, 0.00641
    %v1370 = vadd.f32 %v1366, %v1369
    %v1371 = vmul.f32 %v1340, 0.006737947
    %s1372 = scalar_lea.vmem %s2, 76
    %v1373 = vld [vmem:[%s1372] sm:$0x3]
    %v1374 = vmul.f32 %v1373, 0.014141815
    %v1375 = vadd.f32 %v1371, %v1374
    %vm1376 = vcmp.gt.f32.partialorder %v1370, 0.5
    %v1377 = vsel %vm1376, 1, 0
    %v1378 = vcvt.s32.f32 %v1377
    %v1379 = vmax.f32 %v1344, %v1378
    %v1380 = vsub.f32 1.0, %v1379
    %v1381 = vadd.f32 %v1346, %v1380
    %v1382 = vsel %vm51, %v1370, 0.0
    %1383 = vadd.xlane.f32.xlu0 %v1382
    %v1384 = vpop.xlane.xlu0 %1383
    %v1385 = vmul.f32 %v1370, 0.3106
    %v1386 = vmul.f32 %v1384, -0.0497
    %v1387 = vadd.f32 %v1385, %v1386
    %v1388 = vadd.f32 %v1387, %v17
    %v1389 = vadd.f32 %v1388, %v1375
    %v1390 = vmul.f32 %v1389, 270.0
    %v1391 = vsub.f32 %v1390, 108.0
    %v1392 = vmul.f32 %v1391, -0.154
    %v1393 = vmul.f32 %v1392, 1.442695
    %v1394 = vpow.pop %v1393
    %v1395 = vsub.f32 1.0, %v1394
    %v1396 = vadd.f32 %v1395, 1e-06
    %v1397 = vrcp.pop %v1396
    %v1398 = vmul.f32 %v1391, %v1397
    %v1399 = vmax.f32 %v1398, 0.0
    %v1400 = vmul.f32 %v1370, 0.1
    %v1401 = vsub.f32 %v1370, %v1400
    %v1402 = vsub.f32 1.0, %v1370
    %v1403 = vmul.f32 %v1402, %v1399
    %v1404 = vmul.f32 %v1403, 0.00641
    %v1405 = vadd.f32 %v1401, %v1404
    %v1406 = vmul.f32 %v1375, 0.006737947
    %s1407 = scalar_lea.vmem %s2, 78
    %v1408 = vld [vmem:[%s1407] sm:$0x3]
    %v1409 = vmul.f32 %v1408, 0.014141815
    %v1410 = vadd.f32 %v1406, %v1409
    %vm1411 = vcmp.gt.f32.partialorder %v1405, 0.5
    %v1412 = vsel %vm1411, 1, 0
    %v1413 = vcvt.s32.f32 %v1412
    %v1414 = vmax.f32 %v1379, %v1413
    %v1415 = vsub.f32 1.0, %v1414
    %v1416 = vadd.f32 %v1381, %v1415
    %v1417 = vsel %vm51, %v1405, 0.0
    %1418 = vadd.xlane.f32.xlu0 %v1417
    %v1419 = vpop.xlane.xlu0 %1418
    %v1420 = vmul.f32 %v1405, 0.3106
    %v1421 = vmul.f32 %v1419, -0.0497
    %v1422 = vadd.f32 %v1420, %v1421
    %v1423 = vadd.f32 %v1422, %v17
    %v1424 = vadd.f32 %v1423, %v1410
    %v1425 = vmul.f32 %v1424, 270.0
    %v1426 = vsub.f32 %v1425, 108.0
    %v1427 = vmul.f32 %v1426, -0.154
    %v1428 = vmul.f32 %v1427, 1.442695
    %v1429 = vpow.pop %v1428
    %v1430 = vsub.f32 1.0, %v1429
    %v1431 = vadd.f32 %v1430, 1e-06
    %v1432 = vrcp.pop %v1431
    %v1433 = vmul.f32 %v1426, %v1432
    %v1434 = vmax.f32 %v1433, 0.0
    %v1435 = vmul.f32 %v1405, 0.1
    %v1436 = vsub.f32 %v1405, %v1435
    %v1437 = vsub.f32 1.0, %v1405
    %v1438 = vmul.f32 %v1437, %v1434
    %v1439 = vmul.f32 %v1438, 0.00641
    %v1440 = vadd.f32 %v1436, %v1439
    %v1441 = vmul.f32 %v1410, 0.006737947
    %s1442 = scalar_lea.vmem %s2, 80
    %v1443 = vld [vmem:[%s1442] sm:$0x3]
    %v1444 = vmul.f32 %v1443, 0.014141815
    %v1445 = vadd.f32 %v1441, %v1444
    %vm1446 = vcmp.gt.f32.partialorder %v1440, 0.5
    %v1447 = vsel %vm1446, 1, 0
    %v1448 = vcvt.s32.f32 %v1447
    %v1449 = vmax.f32 %v1414, %v1448
    %v1450 = vsub.f32 1.0, %v1449
    %v1451 = vadd.f32 %v1416, %v1450
    %v1452 = vsel %vm51, %v1440, 0.0
    %1453 = vadd.xlane.f32.xlu0 %v1452
    %v1454 = vpop.xlane.xlu0 %1453
    %v1455 = vmul.f32 %v1440, 0.3106
    %v1456 = vmul.f32 %v1454, -0.0497
    %v1457 = vadd.f32 %v1455, %v1456
    %v1458 = vadd.f32 %v1457, %v17
    %v1459 = vadd.f32 %v1458, %v1445
    %v1460 = vmul.f32 %v1459, 270.0
    %v1461 = vsub.f32 %v1460, 108.0
    %v1462 = vmul.f32 %v1461, -0.154
    %v1463 = vmul.f32 %v1462, 1.442695
    %v1464 = vpow.pop %v1463
    %v1465 = vsub.f32 1.0, %v1464
    %v1466 = vadd.f32 %v1465, 1e-06
    %v1467 = vrcp.pop %v1466
    %v1468 = vmul.f32 %v1461, %v1467
    %v1469 = vmax.f32 %v1468, 0.0
    %v1470 = vmul.f32 %v1440, 0.1
    %v1471 = vsub.f32 %v1440, %v1470
    %v1472 = vsub.f32 1.0, %v1440
    %v1473 = vmul.f32 %v1472, %v1469
    %v1474 = vmul.f32 %v1473, 0.00641
    %v1475 = vadd.f32 %v1471, %v1474
    %v1476 = vmul.f32 %v1445, 0.006737947
    %s1477 = scalar_lea.vmem %s2, 82
    %v1478 = vld [vmem:[%s1477] sm:$0x3]
    %v1479 = vmul.f32 %v1478, 0.014141815
    %v1480 = vadd.f32 %v1476, %v1479
    %vm1481 = vcmp.gt.f32.partialorder %v1475, 0.5
    %v1482 = vsel %vm1481, 1, 0
    %v1483 = vcvt.s32.f32 %v1482
    %v1484 = vmax.f32 %v1449, %v1483
    %v1485 = vsub.f32 1.0, %v1484
    %v1486 = vadd.f32 %v1451, %v1485
    %v1487 = vsel %vm51, %v1475, 0.0
    %1488 = vadd.xlane.f32.xlu0 %v1487
    %v1489 = vpop.xlane.xlu0 %1488
    %v1490 = vmul.f32 %v1475, 0.3106
    %v1491 = vmul.f32 %v1489, -0.0497
    %v1492 = vadd.f32 %v1490, %v1491
    %v1493 = vadd.f32 %v1492, %v17
    %v1494 = vadd.f32 %v1493, %v1480
    %v1495 = vmul.f32 %v1494, 270.0
    %v1496 = vsub.f32 %v1495, 108.0
    %v1497 = vmul.f32 %v1496, -0.154
    %v1498 = vmul.f32 %v1497, 1.442695
    %v1499 = vpow.pop %v1498
    %v1500 = vsub.f32 1.0, %v1499
    %v1501 = vadd.f32 %v1500, 1e-06
    %v1502 = vrcp.pop %v1501
    %v1503 = vmul.f32 %v1496, %v1502
    %v1504 = vmax.f32 %v1503, 0.0
    %v1505 = vmul.f32 %v1475, 0.1
    %v1506 = vsub.f32 %v1475, %v1505
    %v1507 = vsub.f32 1.0, %v1475
    %v1508 = vmul.f32 %v1507, %v1504
    %v1509 = vmul.f32 %v1508, 0.00641
    %v1510 = vadd.f32 %v1506, %v1509
    %v1511 = vmul.f32 %v1480, 0.006737947
    %s1512 = scalar_lea.vmem %s2, 84
    %v1513 = vld [vmem:[%s1512] sm:$0x3]
    %v1514 = vmul.f32 %v1513, 0.014141815
    %v1515 = vadd.f32 %v1511, %v1514
    %vm1516 = vcmp.gt.f32.partialorder %v1510, 0.5
    %v1517 = vsel %vm1516, 1, 0
    %v1518 = vcvt.s32.f32 %v1517
    %v1519 = vmax.f32 %v1484, %v1518
    %v1520 = vsub.f32 1.0, %v1519
    %v1521 = vadd.f32 %v1486, %v1520
    %v1522 = vsel %vm51, %v1510, 0.0
    %1523 = vadd.xlane.f32.xlu0 %v1522
    %v1524 = vpop.xlane.xlu0 %1523
    %v1525 = vmul.f32 %v1510, 0.3106
    %v1526 = vmul.f32 %v1524, -0.0497
    %v1527 = vadd.f32 %v1525, %v1526
    %v1528 = vadd.f32 %v1527, %v17
    %v1529 = vadd.f32 %v1528, %v1515
    %v1530 = vmul.f32 %v1529, 270.0
    %v1531 = vsub.f32 %v1530, 108.0
    %v1532 = vmul.f32 %v1531, -0.154
    %v1533 = vmul.f32 %v1532, 1.442695
    %v1534 = vpow.pop %v1533
    %v1535 = vsub.f32 1.0, %v1534
    %v1536 = vadd.f32 %v1535, 1e-06
    %v1537 = vrcp.pop %v1536
    %v1538 = vmul.f32 %v1531, %v1537
    %v1539 = vmax.f32 %v1538, 0.0
    %v1540 = vmul.f32 %v1510, 0.1
    %v1541 = vsub.f32 %v1510, %v1540
    %v1542 = vsub.f32 1.0, %v1510
    %v1543 = vmul.f32 %v1542, %v1539
    %v1544 = vmul.f32 %v1543, 0.00641
    %v1545 = vadd.f32 %v1541, %v1544
    %v1546 = vmul.f32 %v1515, 0.006737947
    %s1547 = scalar_lea.vmem %s2, 86
    %v1548 = vld [vmem:[%s1547] sm:$0x3]
    %v1549 = vmul.f32 %v1548, 0.014141815
    %v1550 = vadd.f32 %v1546, %v1549
    %vm1551 = vcmp.gt.f32.partialorder %v1545, 0.5
    %v1552 = vsel %vm1551, 1, 0
    %v1553 = vcvt.s32.f32 %v1552
    %v1554 = vmax.f32 %v1519, %v1553
    %v1555 = vsub.f32 1.0, %v1554
    %v1556 = vadd.f32 %v1521, %v1555
    %v1557 = vsel %vm51, %v1545, 0.0
    %1558 = vadd.xlane.f32.xlu0 %v1557
    %v1559 = vpop.xlane.xlu0 %1558
    %v1560 = vmul.f32 %v1545, 0.3106
    %v1561 = vmul.f32 %v1559, -0.0497
    %v1562 = vadd.f32 %v1560, %v1561
    %v1563 = vadd.f32 %v1562, %v17
    %v1564 = vadd.f32 %v1563, %v1550
    %v1565 = vmul.f32 %v1564, 270.0
    %v1566 = vsub.f32 %v1565, 108.0
    %v1567 = vmul.f32 %v1566, -0.154
    %v1568 = vmul.f32 %v1567, 1.442695
    %v1569 = vpow.pop %v1568
    %v1570 = vsub.f32 1.0, %v1569
    %v1571 = vadd.f32 %v1570, 1e-06
    %v1572 = vrcp.pop %v1571
    %v1573 = vmul.f32 %v1566, %v1572
    %v1574 = vmax.f32 %v1573, 0.0
    %v1575 = vmul.f32 %v1545, 0.1
    %v1576 = vsub.f32 %v1545, %v1575
    %v1577 = vsub.f32 1.0, %v1545
    %v1578 = vmul.f32 %v1577, %v1574
    %v1579 = vmul.f32 %v1578, 0.00641
    %v1580 = vadd.f32 %v1576, %v1579
    %v1581 = vmul.f32 %v1550, 0.006737947
    %s1582 = scalar_lea.vmem %s2, 88
    %v1583 = vld [vmem:[%s1582] sm:$0x3]
    %v1584 = vmul.f32 %v1583, 0.014141815
    %v1585 = vadd.f32 %v1581, %v1584
    %vm1586 = vcmp.gt.f32.partialorder %v1580, 0.5
    %v1587 = vsel %vm1586, 1, 0
    %v1588 = vcvt.s32.f32 %v1587
    %v1589 = vmax.f32 %v1554, %v1588
    %v1590 = vsub.f32 1.0, %v1589
    %v1591 = vadd.f32 %v1556, %v1590
    %v1592 = vsel %vm51, %v1580, 0.0
    %1593 = vadd.xlane.f32.xlu0 %v1592
    %v1594 = vpop.xlane.xlu0 %1593
    %v1595 = vmul.f32 %v1580, 0.3106
    %v1596 = vmul.f32 %v1594, -0.0497
    %v1597 = vadd.f32 %v1595, %v1596
    %v1598 = vadd.f32 %v1597, %v17
    %v1599 = vadd.f32 %v1598, %v1585
    %v1600 = vmul.f32 %v1599, 270.0
    %v1601 = vsub.f32 %v1600, 108.0
    %v1602 = vmul.f32 %v1601, -0.154
    %v1603 = vmul.f32 %v1602, 1.442695
    %v1604 = vpow.pop %v1603
    %v1605 = vsub.f32 1.0, %v1604
    %v1606 = vadd.f32 %v1605, 1e-06
    %v1607 = vrcp.pop %v1606
    %v1608 = vmul.f32 %v1601, %v1607
    %v1609 = vmax.f32 %v1608, 0.0
    %v1610 = vmul.f32 %v1580, 0.1
    %v1611 = vsub.f32 %v1580, %v1610
    %v1612 = vsub.f32 1.0, %v1580
    %v1613 = vmul.f32 %v1612, %v1609
    %v1614 = vmul.f32 %v1613, 0.00641
    %v1615 = vadd.f32 %v1611, %v1614
    %v1616 = vmul.f32 %v1585, 0.006737947
    %s1617 = scalar_lea.vmem %s2, 90
    %v1618 = vld [vmem:[%s1617] sm:$0x3]
    %v1619 = vmul.f32 %v1618, 0.014141815
    %v1620 = vadd.f32 %v1616, %v1619
    %vm1621 = vcmp.gt.f32.partialorder %v1615, 0.5
    %v1622 = vsel %vm1621, 1, 0
    %v1623 = vcvt.s32.f32 %v1622
    %v1624 = vmax.f32 %v1589, %v1623
    %v1625 = vsub.f32 1.0, %v1624
    %v1626 = vadd.f32 %v1591, %v1625
    %v1627 = vsel %vm51, %v1615, 0.0
    %1628 = vadd.xlane.f32.xlu0 %v1627
    %v1629 = vpop.xlane.xlu0 %1628
    %v1630 = vmul.f32 %v1615, 0.3106
    %v1631 = vmul.f32 %v1629, -0.0497
    %v1632 = vadd.f32 %v1630, %v1631
    %v1633 = vadd.f32 %v1632, %v17
    %v1634 = vadd.f32 %v1633, %v1620
    %v1635 = vmul.f32 %v1634, 270.0
    %v1636 = vsub.f32 %v1635, 108.0
    %v1637 = vmul.f32 %v1636, -0.154
    %v1638 = vmul.f32 %v1637, 1.442695
    %v1639 = vpow.pop %v1638
    %v1640 = vsub.f32 1.0, %v1639
    %v1641 = vadd.f32 %v1640, 1e-06
    %v1642 = vrcp.pop %v1641
    %v1643 = vmul.f32 %v1636, %v1642
    %v1644 = vmax.f32 %v1643, 0.0
    %v1645 = vmul.f32 %v1615, 0.1
    %v1646 = vsub.f32 %v1615, %v1645
    %v1647 = vsub.f32 1.0, %v1615
    %v1648 = vmul.f32 %v1647, %v1644
    %v1649 = vmul.f32 %v1648, 0.00641
    %v1650 = vadd.f32 %v1646, %v1649
    %v1651 = vmul.f32 %v1620, 0.006737947
    %s1652 = scalar_lea.vmem %s2, 92
    %v1653 = vld [vmem:[%s1652] sm:$0x3]
    %v1654 = vmul.f32 %v1653, 0.014141815
    %v1655 = vadd.f32 %v1651, %v1654
    %vm1656 = vcmp.gt.f32.partialorder %v1650, 0.5
    %v1657 = vsel %vm1656, 1, 0
    %v1658 = vcvt.s32.f32 %v1657
    %v1659 = vmax.f32 %v1624, %v1658
    %v1660 = vsub.f32 1.0, %v1659
    %v1661 = vadd.f32 %v1626, %v1660
    %v1662 = vsel %vm51, %v1650, 0.0
    %1663 = vadd.xlane.f32.xlu0 %v1662
    %v1664 = vpop.xlane.xlu0 %1663
    %v1665 = vmul.f32 %v1650, 0.3106
    %v1666 = vmul.f32 %v1664, -0.0497
    %v1667 = vadd.f32 %v1665, %v1666
    %v1668 = vadd.f32 %v1667, %v17
    %v1669 = vadd.f32 %v1668, %v1655
    %v1670 = vmul.f32 %v1669, 270.0
    %v1671 = vsub.f32 %v1670, 108.0
    %v1672 = vmul.f32 %v1671, -0.154
    %v1673 = vmul.f32 %v1672, 1.442695
    %v1674 = vpow.pop %v1673
    %v1675 = vsub.f32 1.0, %v1674
    %v1676 = vadd.f32 %v1675, 1e-06
    %v1677 = vrcp.pop %v1676
    %v1678 = vmul.f32 %v1671, %v1677
    %v1679 = vmax.f32 %v1678, 0.0
    %v1680 = vmul.f32 %v1650, 0.1
    %v1681 = vsub.f32 %v1650, %v1680
    %v1682 = vsub.f32 1.0, %v1650
    %v1683 = vmul.f32 %v1682, %v1679
    %v1684 = vmul.f32 %v1683, 0.00641
    %v1685 = vadd.f32 %v1681, %v1684
    %v1686 = vmul.f32 %v1655, 0.006737947
    %s1687 = scalar_lea.vmem %s2, 94
    %v1688 = vld [vmem:[%s1687] sm:$0x3]
    %v1689 = vmul.f32 %v1688, 0.014141815
    %v1690 = vadd.f32 %v1686, %v1689
    %vm1691 = vcmp.gt.f32.partialorder %v1685, 0.5
    %v1692 = vsel %vm1691, 1, 0
    %v1693 = vcvt.s32.f32 %v1692
    %v1694 = vmax.f32 %v1659, %v1693
    %v1695 = vsub.f32 1.0, %v1694
    %v1696 = vadd.f32 %v1661, %v1695
    %v1697 = vsel %vm51, %v1685, 0.0
    %1698 = vadd.xlane.f32.xlu0 %v1697
    %v1699 = vpop.xlane.xlu0 %1698
    %v1700 = vmul.f32 %v1685, 0.3106
    %v1701 = vmul.f32 %v1699, -0.0497
    %v1702 = vadd.f32 %v1700, %v1701
    %v1703 = vadd.f32 %v1702, %v17
    %v1704 = vadd.f32 %v1703, %v1690
    %v1705 = vmul.f32 %v1704, 270.0
    %v1706 = vsub.f32 %v1705, 108.0
    %v1707 = vmul.f32 %v1706, -0.154
    %v1708 = vmul.f32 %v1707, 1.442695
    %v1709 = vpow.pop %v1708
    %v1710 = vsub.f32 1.0, %v1709
    %v1711 = vadd.f32 %v1710, 1e-06
    %v1712 = vrcp.pop %v1711
    %v1713 = vmul.f32 %v1706, %v1712
    %v1714 = vmax.f32 %v1713, 0.0
    %v1715 = vmul.f32 %v1685, 0.1
    %v1716 = vsub.f32 %v1685, %v1715
    %v1717 = vsub.f32 1.0, %v1685
    %v1718 = vmul.f32 %v1717, %v1714
    %v1719 = vmul.f32 %v1718, 0.00641
    %v1720 = vadd.f32 %v1716, %v1719
    %v1721 = vmul.f32 %v1690, 0.006737947
    %s1722 = scalar_lea.vmem %s2, 96
    %v1723 = vld [vmem:[%s1722] sm:$0x3]
    %v1724 = vmul.f32 %v1723, 0.014141815
    %v1725 = vadd.f32 %v1721, %v1724
    %vm1726 = vcmp.gt.f32.partialorder %v1720, 0.5
    %v1727 = vsel %vm1726, 1, 0
    %v1728 = vcvt.s32.f32 %v1727
    %v1729 = vmax.f32 %v1694, %v1728
    %v1730 = vsub.f32 1.0, %v1729
    %v1731 = vadd.f32 %v1696, %v1730
    %v1732 = vsel %vm51, %v1720, 0.0
    %1733 = vadd.xlane.f32.xlu0 %v1732
    %v1734 = vpop.xlane.xlu0 %1733
    %v1735 = vmul.f32 %v1720, 0.3106
    %v1736 = vmul.f32 %v1734, -0.0497
    %v1737 = vadd.f32 %v1735, %v1736
    %v1738 = vadd.f32 %v1737, %v17
    %v1739 = vadd.f32 %v1738, %v1725
    %v1740 = vmul.f32 %v1739, 270.0
    %v1741 = vsub.f32 %v1740, 108.0
    %v1742 = vmul.f32 %v1741, -0.154
    %v1743 = vmul.f32 %v1742, 1.442695
    %v1744 = vpow.pop %v1743
    %v1745 = vsub.f32 1.0, %v1744
    %v1746 = vadd.f32 %v1745, 1e-06
    %v1747 = vrcp.pop %v1746
    %v1748 = vmul.f32 %v1741, %v1747
    %v1749 = vmax.f32 %v1748, 0.0
    %v1750 = vmul.f32 %v1720, 0.1
    %v1751 = vsub.f32 %v1720, %v1750
    %v1752 = vsub.f32 1.0, %v1720
    %v1753 = vmul.f32 %v1752, %v1749
    %v1754 = vmul.f32 %v1753, 0.00641
    %v1755 = vadd.f32 %v1751, %v1754
    %vm1756 = vcmp.gt.f32.partialorder %v1755, 0.5
    %v1757 = vsel %vm1756, 1, 0
    %v1758 = vcvt.s32.f32 %v1757
    %v1759 = vmax.f32 %v1729, %v1758
    %v1760 = vsub.f32 1.0, %v1759
    %v1761 = vadd.f32 %v1731, %v1760
    %vm1762 = vcmp.gt.f32.partialorder %v1759, 0.0
    %v1763 = vsel %vm1762, %v1761, 49.0
    %v1764 = vmul.f32 %v1763, 0.01
    %1765 = vst.msk [vmem:[#allocation2] sm:$0x3] %vm51, %v1764
    // Predicated region
    $region14: #{tpu_custom_call.1} parent=1 // pred_check
      _
    $region15: #{tpu_custom_call.1} parent=1 // pred_check_branch
      %1767 = sbr.rel (0) target = $region17
    $region16: #{tpu_custom_call.1} parent=1 // pred_region
      %s1769 = ssub.s32 32, 32
      %1770 = vsyncadd [#allocation3], %s1769
      %s1772 = sshll.u32 [#allocation2], 4
      %s1773 = int_to_ptr.vmem [resolvable:$true] %s1772
      %1775 = dma.vmem_to_hbm [thread:$0]  %s1773, 32, %s3, [#allocation3]
    $region17: #{tpu_custom_call.1} parent=1 // pred_fallthru
      _
    // Predicated region
    $region18: #{tpu_custom_call.1} parent=1 // pred_check
      _
    $region19: #{tpu_custom_call.1} parent=1 // pred_check_branch
      %1777 = sbr.rel (0) target = $region21
    $region20: #{tpu_custom_call.1} parent=1 // pred_region
      %1778 = dma.done [#allocation3], 32
    $region21: #{tpu_custom_call.1} parent=1 // pred_fallthru
      _
    %1779 = vsyncpa [#allocation3], 1

</llo_original>
